<compile_context>
chip_gen: v7x
topology: tpu7x:2x2x1
jax: 0.10.0
libtpu: 0.0.40
codegen_flags: <defaults>
</compile_context>

<pallas_src>
import math

import jax
import jax.numpy as jnp
from jax.experimental import pallas as pl
from jax.experimental.pallas import tpu as pltpu


# ------------------------------- fused kernel -------------------------------
def _mceu_kernel(
    ss_ref,                      # [1, 1, 2H] f32   AdaLN shift||scale (precomputed)
    hr_ref, hc_ref,              # [1, ti, H], [1, tj, H] f32
    pr_ref, pc_ref,              # [1, 3, ti], [1, 3, tj] f32 (pos, N-minor)
    ed_ref,                      # [1, C, ti, tj] bf16   (edge_attr ++ dist channels)
    adj_ref,                     # [1, ti, tj]    bf16   {0,1}
    adjx_ref,                    # [1, EX, ti, tj] bf16  {0,1}
    w_row_ref, w_col_ref,        # [H, H] f32
    w_ed_ref,                    # [C, H] f32
    b_in_ref,                    # [1, H] f32
    w1_ref,                      # [H, H] bf16
    b1_ref,                      # [1, H] f32
    w2_ref,                      # [H, 1+EX] bf16
    cs_ref,                      # SMEM [1] f32  (CoorsNorm scale)
    pos_out_ref,                 # [1, 3, ti]
    acc_ref,                     # VMEM [3, ti] f32  (agg accumulator over j tiles)
):
    f32 = jnp.float32
    bf16 = jnp.bfloat16

    ti = hr_ref.shape[1]
    tj = hc_ref.shape[1]
    hdim = hr_ref.shape[2]
    cch = ed_ref.shape[1]
    ex = adjx_ref.shape[1]
    rows = ti * tj
    j_id = pl.program_id(2)

    @pl.when(j_id == 0)
    def _():
        acc_ref[...] = jnp.zeros_like(acc_ref)

    # ---- AdaLN shift/scale (hoisted time MLP) -------------------------------
    ss = ss_ref[0]                                               # [1, 2H]
    shift = ss[:, :hdim]
    scale = ss[:, hdim:]

    # ---- input_lin without materializing cat([h_i, h_j, e, d]) --------------
    row_term = jnp.dot(hr_ref[0], w_row_ref[...], preferred_element_type=f32)   # [ti, H]
    col_term = jnp.dot(hc_ref[0], w_col_ref[...], preferred_element_type=f32)   # [tj, H]

    x3 = row_term[:, None, :] + col_term[None, :, :] + b_in_ref[...]            # [ti, tj, H]
    # Edge/dist channel contribution: C is tiny (ED+DD), so per-channel VPU FMAs
    # keep j lane-dense and avoid a [rows, C]-layout transpose of the edge block.
    ed = ed_ref[0]                                               # [C, ti, tj] bf16
    for c in range(cch):
        x3 = x3 + ed[c].astype(f32)[:, :, None] * w_ed_ref[c]
    x = x3.reshape(rows, hdim)

    # ---- LayerNorm (no affine, eps=1e-6) + AdaLN modulate --------------------
    mu = jnp.mean(x, axis=-1, keepdims=True)
    xc = x - mu
    var = jnp.mean(xc * xc, axis=-1, keepdims=True)
    y = xc * jax.lax.rsqrt(var + 1e-6)
    y = y * (1.0 + scale) + shift

    # ---- coord MLP: Linear -> SiLU -> Linear(no bias) -> tanh ----------------
    z = jnp.dot(y.astype(bf16), w1_ref[...], preferred_element_type=f32) + b1_ref[...]
    z = z * jax.nn.sigmoid(z)
    t3 = jnp.dot(z.astype(bf16), w2_ref[...],
                 preferred_element_type=f32).reshape(ti, tj, 1 + ex)

    # ---- inv = mean over heads of tanh(t) * cat([1, adj_extra]) --------------
    # tanh is applied on dense [ti, tj] planes (j on lanes), not on the 3-lane
    # [rows, 1+EX] layout.
    adjx = adjx_ref[0]                                            # [EX, ti, tj] bf16
    su = jnp.tanh(t3[..., 0])
    for e in range(ex):
        su = su + jnp.tanh(t3[..., 1 + e]) * adjx[e].astype(f32)
    inv = su * (1.0 / (1 + ex))                                   # [ti, tj]

    # ---- CoorsNorm(pos_i - pos_j) * inv, adjacency-masked sum over j ---------
    p_i = pr_ref[0]                                               # [3, ti]
    p_j = pc_ref[0]                                               # [3, tj]
    diff = p_i[:, :, None] - p_j[:, None, :]                      # [3, ti, tj]
    nrm = jnp.sqrt(jnp.sum(diff * diff, axis=0))                  # [ti, tj]
    wgt = (adj_ref[0].astype(f32) * inv
           * (cs_ref[0] / jnp.maximum(nrm, 1e-8)))                # [ti, tj]
    acc_ref[...] += jnp.sum(diff * wgt[None, :, :], axis=2)       # [3, ti]

    @pl.when(j_id == pl.num_programs(2) - 1)
    def _():
        pos_out_ref[0] = (p_i + acc_ref[...]).astype(pos_out_ref.dtype)


# --------------------------------- wrapper ----------------------------------
def multi_cond_equi_update(params, h, pos, edge_attr, dist, adj, adj_extra,
                           time_emb, *, row_tile=None, col_tile=None):
    """pos_out = MultiCondEquiUpdate(h, pos, edges..., time_emb) in dense-mask form.

    h:[B,N,H] pos:[B,N,3] edge_attr:[B,N,N,ED] dist:[B,N,N,DD] adj:[B,N,N]{0,1}
    adj_extra:[B,N,N,EX] time_emb:[B,TD]
    """
    B, N, H = h.shape
    ED = edge_attr.shape[-1]
    DD = dist.shape[-1]
    EX = adj_extra.shape[-1]
    C = ED + DD

    f32 = jnp.float32
    bf16 = jnp.bfloat16

    def pick(t):
        if t is None:
            t = 128 if N % 128 == 0 else N
        # N-minor blocks need the lane dim to be a multiple of 128 or the full N.
        assert N % t == 0 and (t == N or t % 128 == 0), \
            "tile must divide N and be a multiple of 128 (or equal N)"
        # TODO(synk): pad N (and zero the padded rows/cols of adj) for large
        # graphs whose N is not a multiple of 128.
        return t

    ti = pick(row_tile)
    tj = pick(col_tile)
    grid = (B, N // ti, N // tj)

    # ---- parameters (split/fused so the [E, 2H+ED+DD] concat never exists) ---
    in_w = params["in_w"].astype(f32)                       # [2H+ED+DD, H]
    w_row, w_col = in_w[:H], in_w[H:2 * H]
    w_ed = in_w[2 * H:]                                     # [C, H] edge++dist channels
    b_in = params["in_b"].astype(f32).reshape(1, H)
    w1 = params["mlp1_w"].astype(bf16)                      # pre-cast MXU weight
    b1 = params["mlp1_b"].astype(f32).reshape(1, H)
    w2 = params["mlp2_w"].astype(bf16)                      # [H, 1+EX]
    cs = params["coord_scale"].astype(f32).reshape(1)

    # time conditioning hoisted out of the kernel: shift||scale per batch
    te = time_emb.astype(f32)
    te = te * jax.nn.sigmoid(te)
    ss = (te @ params["time_w"].astype(f32)
          + params["time_b"].astype(f32))[:, None, :]       # [B, 1, 2H]

    # ---- N-minor (lane-dense) transport layouts, bf16 for the O(N^2) streams.
    # NOTE: in production the producer should emit these layouts directly.
    ed_cat = jnp.concatenate([edge_attr, dist], axis=-1)     # [B, N, N, C]
    ed_cat = jnp.moveaxis(ed_cat, -1, 1).astype(bf16)        # [B, C, N, N]
    adj_b = adj.astype(bf16)                                 # [B, N, N]
    adjx_b = jnp.moveaxis(adj_extra, -1, 1).astype(bf16)     # [B, EX, N, N]
    h_f = h.astype(f32)                                      # single cast, passed twice
    pos_t = jnp.swapaxes(pos, 1, 2).astype(f32)              # [B, 3, N], passed twice

    def const(arr):
        zeros = (0,) * arr.ndim
        return pl.BlockSpec(arr.shape, lambda b, i, j: zeros)

    in_specs = [
        pl.BlockSpec((1, 1, 2 * H), lambda b, i, j: (b, 0, 0)),       # shift||scale
        pl.BlockSpec((1, ti, H), lambda b, i, j: (b, i, 0)),          # h (row tile)
        pl.BlockSpec((1, tj, H), lambda b, i, j: (b, j, 0)),          # h (col tile)
        pl.BlockSpec((1, 3, ti), lambda b, i, j: (b, 0, i)),          # pos (row tile)
        pl.BlockSpec((1, 3, tj), lambda b, i, j: (b, 0, j)),          # pos (col tile)
        pl.BlockSpec((1, C, ti, tj), lambda b, i, j: (b, 0, i, j)),   # edge++dist
        pl.BlockSpec((1, ti, tj), lambda b, i, j: (b, i, j)),         # adj
        pl.BlockSpec((1, EX, ti, tj), lambda b, i, j: (b, 0, i, j)),  # adj_extra
        const(w_row), const(w_col), const(w_ed), const(b_in),
        const(w1), const(b1), const(w2),
        pl.BlockSpec((1,), lambda b, i, j: (0,),
                     memory_space=pltpu.MemorySpace.SMEM),            # CoorsNorm scale
    ]
    out_spec = pl.BlockSpec((1, 3, ti), lambda b, i, j: (b, 0, i))

    # Generation-aware VMEM budget: ~5/8 of physical (≈40 MiB on v7x, 80 MiB on
    # v5e/v6e), capped at 100 MiB.
    vmem_limit = 80 * 1024 * 1024
    try:
        cap = int(pltpu.get_tpu_info().vmem_capacity_bytes)
        vmem_limit = min(cap * 5 // 8, 100 * 1024 * 1024)
    except Exception:
        pass

    pos_out_t = pl.pallas_call(
        _mceu_kernel,
        grid=grid,
        in_specs=in_specs,
        out_specs=out_spec,
        out_shape=jax.ShapeDtypeStruct((B, 3, N), pos.dtype),
        scratch_shapes=[pltpu.VMEM((3, ti), jnp.float32)],
        compiler_params=pltpu.CompilerParams(
            dimension_semantics=("parallel", "parallel", "arbitrary"),
            vmem_limit_bytes=vmem_limit,
        ),
    )(ss, h_f, h_f, pos_t, pos_t, ed_cat, adj_b, adjx_b,
      w_row, w_col, w_ed, b_in, w1, b1, w2, cs)

    return jnp.swapaxes(pos_out_t, 1, 2)                     # back to [B, N, 3]


# ----------------------- pure-JAX reference (f32) ----------------------------
def multi_cond_equi_update_ref(params, h, pos, edge_attr, dist, adj, adj_extra, time_emb):
    B, N, H = h.shape
    hi = jnp.broadcast_to(h[:, :, None, :], (B, N, N, H))
    hj = jnp.broadcast_to(h[:, None, :, :], (B, N, N, H))
    h_input = jnp.concatenate([hi, hj, edge_attr, dist], axis=-1)

    coord_diff = pos[:, :, None, :] - pos[:, None, :, :]
    nrm = jnp.sqrt(jnp.sum(coord_diff * coord_diff, axis=-1, keepdims=True))
    coord_diff = coord_diff / jnp.maximum(nrm, 1e-8) * params["coord_scale"]

    te = time_emb * jax.nn.sigmoid(time_emb)
    ss = te @ params["time_w"] + params["time_b"]
    shift, scale = ss[:, :H], ss[:, H:]

    x = h_input @ params["in_w"] + params["in_b"]
    mu = jnp.mean(x, axis=-1, keepdims=True)
    var = jnp.mean((x - mu) ** 2, axis=-1, keepdims=True)
    x = (x - mu) / jnp.sqrt(var + 1e-6)
    x = x * (1.0 + scale[:, None, None, :]) + shift[:, None, None, :]

    z = x @ params["mlp1_w"] + params["mlp1_b"]
    z = z * jax.nn.sigmoid(z)
    u = jnp.tanh(z @ params["mlp2_w"])

    adjs = jnp.concatenate([jnp.ones(u.shape[:-1] + (1,), u.dtype), adj_extra], axis=-1)
    inv = jnp.mean(u * adjs, axis=-1, keepdims=True)
    trans = coord_diff * inv
    agg = jnp.sum(trans * adj[..., None], axis=2)
    return pos + agg


# ----------------------------------- main ------------------------------------
if __name__ == "__main__":
    key = jax.random.PRNGKey(0)
    ks = jax.random.split(key, 10)

    B, N = 2, 8
    H, ED, DD, TD, EXTRA = 32, 8, 1, 128, 2   # hidden, edge, dist, time dims; extra heads

    def lin(k, fi, fo, bias=True):
        w = jax.random.normal(k, (fi, fo), jnp.float32) / math.sqrt(fi)
        b = (0.02 * jax.random.normal(jax.random.fold_in(k, 1), (fo,), jnp.float32)
             if bias else None)
        return w, b

    tw, tb = lin(ks[0], TD, 2 * H)
    iw, ib = lin(ks[1], 2 * H + ED + DD, H)
    m1w, m1b = lin(ks[2], H, H)
    m2w, _ = lin(ks[3], H, 1 + EXTRA, bias=False)
    params = dict(time_w=tw, time_b=tb, in_w=iw, in_b=ib,
                  mlp1_w=m1w, mlp1_b=m1b, mlp2_w=m2w,
                  coord_scale=jnp.full((1,), 0.01, jnp.float32))

    h = jax.random.normal(ks[4], (B, N, H), jnp.float32)
    pos = jax.random.normal(ks[5], (B, N, 3), jnp.float32)
    edge_attr = jax.random.normal(ks[6], (B, N, N, ED), jnp.float32)

    node_mask = jnp.ones((B, N), jnp.float32).at[1, N - 1].set(0.0)
    adj = node_mask[:, :, None] * node_mask[:, None, :] * (1.0 - jnp.eye(N)[None])
    adj_extra = (jax.random.uniform(ks[7], (B, N, N, EXTRA)) > 0.5).astype(jnp.float32)

    diff = pos[:, :, None, :] - pos[:, None, :, :]
    dist = jnp.sum(diff * diff, axis=-1, keepdims=True)
    time_emb = jax.random.normal(ks[8], (B, TD), jnp.float32)

    out = jax.jit(multi_cond_equi_update)(params, h, pos, edge_attr, dist,
                                          adj, adj_extra, time_emb)
    jax.block_until_ready(out)

    ref = multi_cond_equi_update_ref(params, h, pos, edge_attr, dist,
                                     adj, adj_extra, time_emb)
    err = float(jnp.max(jnp.abs(out - ref)))

    assert out.shape == (B, N, 3)
    assert not bool(jnp.any(jnp.isnan(out)))
    assert err < 2e-2, f"max abs error vs reference: {err}"
    print("KERNEL_OK")
</pallas_src>

<mosaic_0001>
module attributes {stable_mosaic.version = 11 : i64} {
  func.func @_mceu_kernel(%arg0: i32, %arg1: i32, %arg2: i32, %arg3: memref<1x1x64xf32, #tpu.memory_space<vmem>>, %arg4: memref<1x8x32xf32, #tpu.memory_space<vmem>>, %arg5: memref<1x8x32xf32, #tpu.memory_space<vmem>>, %arg6: memref<1x3x8xf32, #tpu.memory_space<vmem>>, %arg7: memref<1x3x8xf32, #tpu.memory_space<vmem>>, %arg8: memref<1x9x8x8xbf16, #tpu.memory_space<vmem>>, %arg9: memref<1x8x8xbf16, #tpu.memory_space<vmem>>, %arg10: memref<1x2x8x8xbf16, #tpu.memory_space<vmem>>, %arg11: memref<32x32xf32, #tpu.memory_space<vmem>>, %arg12: memref<32x32xf32, #tpu.memory_space<vmem>>, %arg13: memref<9x32xf32, #tpu.memory_space<vmem>>, %arg14: memref<1x32xf32, #tpu.memory_space<vmem>>, %arg15: memref<32x32xbf16, #tpu.memory_space<vmem>>, %arg16: memref<1x32xf32, #tpu.memory_space<vmem>>, %arg17: memref<32x3xbf16, #tpu.memory_space<vmem>>, %arg18: memref<1xf32, #tpu.memory_space<smem>>, %arg19: memref<1x3x8xf32, #tpu.memory_space<vmem>>, %arg20: memref<3x8xf32, #tpu.memory_space<vmem>>) attributes {dimension_semantics = [#tpu.dimension_semantics<parallel>, #tpu.dimension_semantics<parallel>, #tpu.dimension_semantics<arbitrary>], iteration_bounds = array<i64: 2, 1, 1>, scalar_prefetch = 0 : i64, scratch_operands = 1 : i64, tpu.core_type = #tpu.core_type<tc>, window_params = [{transform_indices = @transform_0, window_bounds = array<i64: 1, 1, 64>}, {transform_indices = @transform_1, window_bounds = array<i64: 1, 8, 32>}, {transform_indices = @transform_2, window_bounds = array<i64: 1, 8, 32>}, {transform_indices = @transform_3, window_bounds = array<i64: 1, 3, 8>}, {transform_indices = @transform_4, window_bounds = array<i64: 1, 3, 8>}, {transform_indices = @transform_5, window_bounds = array<i64: 1, 9, 8, 8>}, {transform_indices = @transform_6, window_bounds = array<i64: 1, 8, 8>}, {transform_indices = @transform_7, window_bounds = array<i64: 1, 2, 8, 8>}, {pipeline_mode = #tpu.pipeline_mode<synchronous>, transform_indices = @transform_8, window_bounds = array<i64: 32, 32>}, {pipeline_mode = #tpu.pipeline_mode<synchronous>, transform_indices = @transform_9, window_bounds = array<i64: 32, 32>}, {pipeline_mode = #tpu.pipeline_mode<synchronous>, transform_indices = @transform_10, window_bounds = array<i64: 9, 32>}, {pipeline_mode = #tpu.pipeline_mode<synchronous>, transform_indices = @transform_11, window_bounds = array<i64: 1, 32>}, {pipeline_mode = #tpu.pipeline_mode<synchronous>, transform_indices = @transform_12, window_bounds = array<i64: 32, 32>}, {pipeline_mode = #tpu.pipeline_mode<synchronous>, transform_indices = @transform_13, window_bounds = array<i64: 1, 32>}, {pipeline_mode = #tpu.pipeline_mode<synchronous>, transform_indices = @transform_14, window_bounds = array<i64: 32, 3>}, {transform_indices = @transform_15, window_bounds = array<i64: 1>}, {transform_indices = @transform_16, window_bounds = array<i64: 1, 3, 8>}]} {
    %c0_i32 = arith.constant 0 : i32
    %0 = arith.cmpi eq, %arg2, %c0_i32 : i32
    %1 = arith.extui %0 : i1 to i32
    %c0_i32_0 = arith.constant 0 : i32
    %2 = arith.cmpi ne, %1, %c0_i32_0 : i32
    scf.if %2 {
      %cst_69 = arith.constant 0.000000e+00 : f32
      %219 = vector.broadcast %cst_69 : f32 to vector<3x8xf32>
      %c0_70 = arith.constant 0 : index
      %c0_71 = arith.constant 0 : index
      %220 = vector.load %arg20[%c0_70, %c0_71] : memref<3x8xf32, #tpu.memory_space<vmem>>, vector<3x8xf32>
      tpu.vector_store %arg20[%c0_70, %c0_71], %219 {strides = array<i32>} : memref<3x8xf32, #tpu.memory_space<vmem>>, vector<3x8xf32>,
    } else {
    }
    %c0 = arith.constant 0 : index
    %c0_1 = arith.constant 0 : index
    %c0_2 = arith.constant 0 : index
    %3 = vector.load %arg3[%c0, %c0_1, %c0_2] : memref<1x1x64xf32, #tpu.memory_space<vmem>>, vector<1x1x64xf32>
    %4 = vector.shape_cast %3 : vector<1x1x64xf32> to vector<1x64xf32>
    %5 = vector.extract_strided_slice %4 {offsets = [0, 0], sizes = [1, 32], strides = [1, 1]} : vector<1x64xf32> to vector<1x32xf32>
    %6 = vector.extract_strided_slice %4 {offsets = [0, 32], sizes = [1, 32], strides = [1, 1]} : vector<1x64xf32> to vector<1x32xf32>
    %c0_3 = arith.constant 0 : index
    %c0_4 = arith.constant 0 : index
    %c0_5 = arith.constant 0 : index
    %7 = vector.load %arg4[%c0_3, %c0_4, %c0_5] : memref<1x8x32xf32, #tpu.memory_space<vmem>>, vector<1x8x32xf32>
    %8 = vector.shape_cast %7 : vector<1x8x32xf32> to vector<8x32xf32>
    %c0_6 = arith.constant 0 : index
    %c0_7 = arith.constant 0 : index
    %9 = vector.load %arg11[%c0_6, %c0_7] : memref<32x32xf32, #tpu.memory_space<vmem>>, vector<32x32xf32>
    %cst = arith.constant dense<0.000000e+00> : vector<8x32xf32>
    %10 = tpu.matmul %8, %9, %cst {dimension_numbers = #tpu.dot_dimension_numbers<[1], [0], [0], [1], [0, 0, 1, 1], [], []>} : vector<8x32xf32>, vector<32x32xf32>, vector<8x32xf32> -> vector<8x32xf32>
    %c0_8 = arith.constant 0 : index
    %c0_9 = arith.constant 0 : index
    %c0_10 = arith.constant 0 : index
    %11 = vector.load %arg5[%c0_8, %c0_9, %c0_10] : memref<1x8x32xf32, #tpu.memory_space<vmem>>, vector<1x8x32xf32>
    %12 = vector.shape_cast %11 : vector<1x8x32xf32> to vector<8x32xf32>
    %c0_11 = arith.constant 0 : index
    %c0_12 = arith.constant 0 : index
    %13 = vector.load %arg12[%c0_11, %c0_12] : memref<32x32xf32, #tpu.memory_space<vmem>>, vector<32x32xf32>
    %cst_13 = arith.constant dense<0.000000e+00> : vector<8x32xf32>
    %14 = tpu.matmul %12, %13, %cst_13 {dimension_numbers = #tpu.dot_dimension_numbers<[1], [0], [0], [1], [0, 0, 1, 1], [], []>} : vector<8x32xf32>, vector<32x32xf32>, vector<8x32xf32> -> vector<8x32xf32>
    %15 = vector.shape_cast %10 : vector<8x32xf32> to vector<8x1x32xf32>
    %16 = vector.shape_cast %14 : vector<8x32xf32> to vector<1x8x32xf32>
    %17 = vector.broadcast %15 : vector<8x1x32xf32> to vector<8x8x32xf32>
    %18 = vector.broadcast %16 : vector<1x8x32xf32> to vector<8x8x32xf32>
    %19 = arith.addf %17, %18 : vector<8x8x32xf32>
    %c0_14 = arith.constant 0 : index
    %c0_15 = arith.constant 0 : index
    %20 = vector.load %arg14[%c0_14, %c0_15] : memref<1x32xf32, #tpu.memory_space<vmem>>, vector<1x32xf32>
    %21 = vector.shape_cast %20 : vector<1x32xf32> to vector<1x1x32xf32>
    %22 = vector.broadcast %21 : vector<1x1x32xf32> to vector<8x8x32xf32>
    %23 = arith.addf %19, %22 : vector<8x8x32xf32>
    %c0_16 = arith.constant 0 : index
    %c0_17 = arith.constant 0 : index
    %c0_18 = arith.constant 0 : index
    %c0_19 = arith.constant 0 : index
    %24 = vector.load %arg8[%c0_16, %c0_17, %c0_18, %c0_19] : memref<1x9x8x8xbf16, #tpu.memory_space<vmem>>, vector<1x9x8x8xbf16>
    %25 = vector.shape_cast %24 : vector<1x9x8x8xbf16> to vector<9x8x8xbf16>
    %26 = vector.extract_strided_slice %25 {offsets = [0, 0, 0], sizes = [1, 8, 8], strides = [1, 1, 1]} : vector<9x8x8xbf16> to vector<1x8x8xbf16>
    %27 = vector.shape_cast %26 : vector<1x8x8xbf16> to vector<8x8xbf16>
    %28 = arith.extf %27 : vector<8x8xbf16> to vector<8x8xf32>
    %29 = vector.shape_cast %28 : vector<8x8xf32> to vector<8x8x1xf32>
    %c0_20 = arith.constant 0 : index
    %c0_21 = arith.constant 0 : index
    %30 = vector.load %arg13[%c0_20, %c0_21] : memref<9x32xf32, #tpu.memory_space<vmem>>, vector<1x32xf32>
    %31 = vector.shape_cast %30 : vector<1x32xf32> to vector<32xf32>
    %32 = vector.shape_cast %31 : vector<32xf32> to vector<1x1x32xf32>
    %33 = vector.broadcast %29 : vector<8x8x1xf32> to vector<8x8x32xf32>
    %34 = vector.broadcast %32 : vector<1x1x32xf32> to vector<8x8x32xf32>
    %35 = arith.mulf %33, %34 : vector<8x8x32xf32>
    %36 = arith.addf %23, %35 : vector<8x8x32xf32>
    %37 = vector.extract_strided_slice %25 {offsets = [1, 0, 0], sizes = [1, 8, 8], strides = [1, 1, 1]} : vector<9x8x8xbf16> to vector<1x8x8xbf16>
    %38 = vector.shape_cast %37 : vector<1x8x8xbf16> to vector<8x8xbf16>
    %39 = arith.extf %38 : vector<8x8xbf16> to vector<8x8xf32>
    %40 = vector.shape_cast %39 : vector<8x8xf32> to vector<8x8x1xf32>
    %c1 = arith.constant 1 : index
    %c0_22 = arith.constant 0 : index
    %41 = vector.load %arg13[%c1, %c0_22] : memref<9x32xf32, #tpu.memory_space<vmem>>, vector<1x32xf32>
    %42 = vector.shape_cast %41 : vector<1x32xf32> to vector<32xf32>
    %43 = vector.shape_cast %42 : vector<32xf32> to vector<1x1x32xf32>
    %44 = vector.broadcast %40 : vector<8x8x1xf32> to vector<8x8x32xf32>
    %45 = vector.broadcast %43 : vector<1x1x32xf32> to vector<8x8x32xf32>
    %46 = arith.mulf %44, %45 : vector<8x8x32xf32>
    %47 = arith.addf %36, %46 : vector<8x8x32xf32>
    %48 = vector.extract_strided_slice %25 {offsets = [2, 0, 0], sizes = [1, 8, 8], strides = [1, 1, 1]} : vector<9x8x8xbf16> to vector<1x8x8xbf16>
    %49 = vector.shape_cast %48 : vector<1x8x8xbf16> to vector<8x8xbf16>
    %50 = arith.extf %49 : vector<8x8xbf16> to vector<8x8xf32>
    %51 = vector.shape_cast %50 : vector<8x8xf32> to vector<8x8x1xf32>
    %c2 = arith.constant 2 : index
    %c0_23 = arith.constant 0 : index
    %52 = vector.load %arg13[%c2, %c0_23] : memref<9x32xf32, #tpu.memory_space<vmem>>, vector<1x32xf32>
    %53 = vector.shape_cast %52 : vector<1x32xf32> to vector<32xf32>
    %54 = vector.shape_cast %53 : vector<32xf32> to vector<1x1x32xf32>
    %55 = vector.broadcast %51 : vector<8x8x1xf32> to vector<8x8x32xf32>
    %56 = vector.broadcast %54 : vector<1x1x32xf32> to vector<8x8x32xf32>
    %57 = arith.mulf %55, %56 : vector<8x8x32xf32>
    %58 = arith.addf %47, %57 : vector<8x8x32xf32>
    %59 = vector.extract_strided_slice %25 {offsets = [3, 0, 0], sizes = [1, 8, 8], strides = [1, 1, 1]} : vector<9x8x8xbf16> to vector<1x8x8xbf16>
    %60 = vector.shape_cast %59 : vector<1x8x8xbf16> to vector<8x8xbf16>
    %61 = arith.extf %60 : vector<8x8xbf16> to vector<8x8xf32>
    %62 = vector.shape_cast %61 : vector<8x8xf32> to vector<8x8x1xf32>
    %c3 = arith.constant 3 : index
    %c0_24 = arith.constant 0 : index
    %63 = vector.load %arg13[%c3, %c0_24] : memref<9x32xf32, #tpu.memory_space<vmem>>, vector<1x32xf32>
    %64 = vector.shape_cast %63 : vector<1x32xf32> to vector<32xf32>
    %65 = vector.shape_cast %64 : vector<32xf32> to vector<1x1x32xf32>
    %66 = vector.broadcast %62 : vector<8x8x1xf32> to vector<8x8x32xf32>
    %67 = vector.broadcast %65 : vector<1x1x32xf32> to vector<8x8x32xf32>
    %68 = arith.mulf %66, %67 : vector<8x8x32xf32>
    %69 = arith.addf %58, %68 : vector<8x8x32xf32>
    %70 = vector.extract_strided_slice %25 {offsets = [4, 0, 0], sizes = [1, 8, 8], strides = [1, 1, 1]} : vector<9x8x8xbf16> to vector<1x8x8xbf16>
    %71 = vector.shape_cast %70 : vector<1x8x8xbf16> to vector<8x8xbf16>
    %72 = arith.extf %71 : vector<8x8xbf16> to vector<8x8xf32>
    %73 = vector.shape_cast %72 : vector<8x8xf32> to vector<8x8x1xf32>
    %c4 = arith.constant 4 : index
    %c0_25 = arith.constant 0 : index
    %74 = vector.load %arg13[%c4, %c0_25] : memref<9x32xf32, #tpu.memory_space<vmem>>, vector<1x32xf32>
    %75 = vector.shape_cast %74 : vector<1x32xf32> to vector<32xf32>
    %76 = vector.shape_cast %75 : vector<32xf32> to vector<1x1x32xf32>
    %77 = vector.broadcast %73 : vector<8x8x1xf32> to vector<8x8x32xf32>
    %78 = vector.broadcast %76 : vector<1x1x32xf32> to vector<8x8x32xf32>
    %79 = arith.mulf %77, %78 : vector<8x8x32xf32>
    %80 = arith.addf %69, %79 : vector<8x8x32xf32>
    %81 = vector.extract_strided_slice %25 {offsets = [5, 0, 0], sizes = [1, 8, 8], strides = [1, 1, 1]} : vector<9x8x8xbf16> to vector<1x8x8xbf16>
    %82 = vector.shape_cast %81 : vector<1x8x8xbf16> to vector<8x8xbf16>
    %83 = arith.extf %82 : vector<8x8xbf16> to vector<8x8xf32>
    %84 = vector.shape_cast %83 : vector<8x8xf32> to vector<8x8x1xf32>
    %c5 = arith.constant 5 : index
    %c0_26 = arith.constant 0 : index
    %85 = vector.load %arg13[%c5, %c0_26] : memref<9x32xf32, #tpu.memory_space<vmem>>, vector<1x32xf32>
    %86 = vector.shape_cast %85 : vector<1x32xf32> to vector<32xf32>
    %87 = vector.shape_cast %86 : vector<32xf32> to vector<1x1x32xf32>
    %88 = vector.broadcast %84 : vector<8x8x1xf32> to vector<8x8x32xf32>
    %89 = vector.broadcast %87 : vector<1x1x32xf32> to vector<8x8x32xf32>
    %90 = arith.mulf %88, %89 : vector<8x8x32xf32>
    %91 = arith.addf %80, %90 : vector<8x8x32xf32>
    %92 = vector.extract_strided_slice %25 {offsets = [6, 0, 0], sizes = [1, 8, 8], strides = [1, 1, 1]} : vector<9x8x8xbf16> to vector<1x8x8xbf16>
    %93 = vector.shape_cast %92 : vector<1x8x8xbf16> to vector<8x8xbf16>
    %94 = arith.extf %93 : vector<8x8xbf16> to vector<8x8xf32>
    %95 = vector.shape_cast %94 : vector<8x8xf32> to vector<8x8x1xf32>
    %c6 = arith.constant 6 : index
    %c0_27 = arith.constant 0 : index
    %96 = vector.load %arg13[%c6, %c0_27] : memref<9x32xf32, #tpu.memory_space<vmem>>, vector<1x32xf32>
    %97 = vector.shape_cast %96 : vector<1x32xf32> to vector<32xf32>
    %98 = vector.shape_cast %97 : vector<32xf32> to vector<1x1x32xf32>
    %99 = vector.broadcast %95 : vector<8x8x1xf32> to vector<8x8x32xf32>
    %100 = vector.broadcast %98 : vector<1x1x32xf32> to vector<8x8x32xf32>
    %101 = arith.mulf %99, %100 : vector<8x8x32xf32>
    %102 = arith.addf %91, %101 : vector<8x8x32xf32>
    %103 = vector.extract_strided_slice %25 {offsets = [7, 0, 0], sizes = [1, 8, 8], strides = [1, 1, 1]} : vector<9x8x8xbf16> to vector<1x8x8xbf16>
    %104 = vector.shape_cast %103 : vector<1x8x8xbf16> to vector<8x8xbf16>
    %105 = arith.extf %104 : vector<8x8xbf16> to vector<8x8xf32>
    %106 = vector.shape_cast %105 : vector<8x8xf32> to vector<8x8x1xf32>
    %c7 = arith.constant 7 : index
    %c0_28 = arith.constant 0 : index
    %107 = vector.load %arg13[%c7, %c0_28] : memref<9x32xf32, #tpu.memory_space<vmem>>, vector<1x32xf32>
    %108 = vector.shape_cast %107 : vector<1x32xf32> to vector<32xf32>
    %109 = vector.shape_cast %108 : vector<32xf32> to vector<1x1x32xf32>
    %110 = vector.broadcast %106 : vector<8x8x1xf32> to vector<8x8x32xf32>
    %111 = vector.broadcast %109 : vector<1x1x32xf32> to vector<8x8x32xf32>
    %112 = arith.mulf %110, %111 : vector<8x8x32xf32>
    %113 = arith.addf %102, %112 : vector<8x8x32xf32>
    %114 = vector.extract_strided_slice %25 {offsets = [8, 0, 0], sizes = [1, 8, 8], strides = [1, 1, 1]} : vector<9x8x8xbf16> to vector<1x8x8xbf16>
    %115 = vector.shape_cast %114 : vector<1x8x8xbf16> to vector<8x8xbf16>
    %116 = arith.extf %115 : vector<8x8xbf16> to vector<8x8xf32>
    %117 = vector.shape_cast %116 : vector<8x8xf32> to vector<8x8x1xf32>
    %c8 = arith.constant 8 : index
    %c0_29 = arith.constant 0 : index
    %118 = vector.load %arg13[%c8, %c0_29] : memref<9x32xf32, #tpu.memory_space<vmem>>, vector<1x32xf32>
    %119 = vector.shape_cast %118 : vector<1x32xf32> to vector<32xf32>
    %120 = vector.shape_cast %119 : vector<32xf32> to vector<1x1x32xf32>
    %121 = vector.broadcast %117 : vector<8x8x1xf32> to vector<8x8x32xf32>
    %122 = vector.broadcast %120 : vector<1x1x32xf32> to vector<8x8x32xf32>
    %123 = arith.mulf %121, %122 : vector<8x8x32xf32>
    %124 = arith.addf %113, %123 : vector<8x8x32xf32>
    %125 = vector.shape_cast %124 : vector<8x8x32xf32> to vector<64x32xf32>
    %cst_30 = arith.constant dense<0.000000e+00> : vector<64xf32>
    %126 = vector.multi_reduction <add>, %125, %cst_30 [1] : vector<64x32xf32> to vector<64xf32>
    %127 = vector.shape_cast %126 : vector<64xf32> to vector<64x1xf32>
    %cst_31 = arith.constant 3.200000e+01 : f32
    %128 = vector.broadcast %cst_31 : f32 to vector<64x1xf32>
    %129 = arith.divf %127, %128 : vector<64x1xf32>
    %130 = vector.broadcast %129 : vector<64x1xf32> to vector<64x32xf32>
    %131 = arith.subf %125, %130 : vector<64x32xf32>
    %132 = arith.mulf %131, %131 : vector<64x32xf32>
    %cst_32 = arith.constant dense<0.000000e+00> : vector<64xf32>
    %133 = vector.multi_reduction <add>, %132, %cst_32 [1] : vector<64x32xf32> to vector<64xf32>
    %134 = vector.shape_cast %133 : vector<64xf32> to vector<64x1xf32>
    %cst_33 = arith.constant 3.200000e+01 : f32
    %135 = vector.broadcast %cst_33 : f32 to vector<64x1xf32>
    %136 = arith.divf %134, %135 : vector<64x1xf32>
    %cst_34 = arith.constant 9.99999997E-7 : f32
    %137 = vector.broadcast %cst_34 : f32 to vector<64x1xf32>
    %138 = arith.addf %136, %137 : vector<64x1xf32>
    %139 = math.rsqrt %138 : vector<64x1xf32>
    %140 = vector.broadcast %139 : vector<64x1xf32> to vector<64x32xf32>
    %141 = arith.mulf %131, %140 : vector<64x32xf32>
    %cst_35 = arith.constant 1.000000e+00 : f32
    %142 = vector.broadcast %cst_35 : f32 to vector<1x32xf32>
    %143 = arith.addf %142, %6 : vector<1x32xf32>
    %144 = vector.broadcast %143 : vector<1x32xf32> to vector<64x32xf32>
    %145 = arith.mulf %141, %144 : vector<64x32xf32>
    %146 = vector.broadcast %5 : vector<1x32xf32> to vector<64x32xf32>
    %147 = arith.addf %145, %146 : vector<64x32xf32>
    %148 = arith.truncf %147 : vector<64x32xf32> to vector<64x32xbf16>
    %c0_36 = arith.constant 0 : index
    %c0_37 = arith.constant 0 : index
    %149 = vector.load %arg15[%c0_36, %c0_37] : memref<32x32xbf16, #tpu.memory_space<vmem>>, vector<32x32xbf16>
    %cst_38 = arith.constant dense<0.000000e+00> : vector<64x32xf32>
    %150 = tpu.matmul %148, %149, %cst_38 {dimension_numbers = #tpu.dot_dimension_numbers<[1], [0], [0], [1], [0, 0, 1, 1], [], []>} : vector<64x32xbf16>, vector<32x32xbf16>, vector<64x32xf32> -> vector<64x32xf32>
    %c0_39 = arith.constant 0 : index
    %c0_40 = arith.constant 0 : index
    %151 = vector.load %arg16[%c0_39, %c0_40] : memref<1x32xf32, #tpu.memory_space<vmem>>, vector<1x32xf32>
    %152 = vector.broadcast %151 : vector<1x32xf32> to vector<64x32xf32>
    %153 = arith.addf %150, %152 : vector<64x32xf32>
    %154 = arith.negf %153 : vector<64x32xf32>
    %155 = math.exp %154 : vector<64x32xf32>
    %cst_41 = arith.constant 1.000000e+00 : f32
    %156 = vector.broadcast %cst_41 : f32 to vector<64x32xf32>
    %157 = arith.addf %156, %155 : vector<64x32xf32>
    %158 = arith.divf %156, %157 : vector<64x32xf32>
    %159 = arith.mulf %153, %158 : vector<64x32xf32>
    %160 = arith.truncf %159 : vector<64x32xf32> to vector<64x32xbf16>
    %c0_42 = arith.constant 0 : index
    %c0_43 = arith.constant 0 : index
    %161 = vector.load %arg17[%c0_42, %c0_43] : memref<32x3xbf16, #tpu.memory_space<vmem>>, vector<32x3xbf16>
    %cst_44 = arith.constant dense<0.000000e+00> : vector<64x3xf32>
    %162 = tpu.matmul %160, %161, %cst_44 {dimension_numbers = #tpu.dot_dimension_numbers<[1], [0], [0], [1], [0, 0, 1, 1], [], []>} : vector<64x32xbf16>, vector<32x3xbf16>, vector<64x3xf32> -> vector<64x3xf32>
    %163 = vector.shape_cast %162 : vector<64x3xf32> to vector<8x8x3xf32>
    %c0_45 = arith.constant 0 : index
    %c0_46 = arith.constant 0 : index
    %c0_47 = arith.constant 0 : index
    %c0_48 = arith.constant 0 : index
    %164 = vector.load %arg10[%c0_45, %c0_46, %c0_47, %c0_48] : memref<1x2x8x8xbf16, #tpu.memory_space<vmem>>, vector<1x2x8x8xbf16>
    %165 = vector.shape_cast %164 : vector<1x2x8x8xbf16> to vector<2x8x8xbf16>
    %166 = vector.extract_strided_slice %163 {offsets = [0, 0, 0], sizes = [8, 8, 1], strides = [1, 1, 1]} : vector<8x8x3xf32> to vector<8x8x1xf32>
    %167 = vector.shape_cast %166 : vector<8x8x1xf32> to vector<8x8xf32>
    %168 = math.tanh %167 : vector<8x8xf32>
    %169 = vector.extract_strided_slice %163 {offsets = [0, 0, 1], sizes = [8, 8, 1], strides = [1, 1, 1]} : vector<8x8x3xf32> to vector<8x8x1xf32>
    %170 = vector.shape_cast %169 : vector<8x8x1xf32> to vector<8x8xf32>
    %171 = math.tanh %170 : vector<8x8xf32>
    %172 = vector.extract_strided_slice %165 {offsets = [0, 0, 0], sizes = [1, 8, 8], strides = [1, 1, 1]} : vector<2x8x8xbf16> to vector<1x8x8xbf16>
    %173 = vector.shape_cast %172 : vector<1x8x8xbf16> to vector<8x8xbf16>
    %174 = arith.extf %173 : vector<8x8xbf16> to vector<8x8xf32>
    %175 = arith.mulf %171, %174 : vector<8x8xf32>
    %176 = arith.addf %168, %175 : vector<8x8xf32>
    %177 = vector.extract_strided_slice %163 {offsets = [0, 0, 2], sizes = [8, 8, 1], strides = [1, 1, 1]} : vector<8x8x3xf32> to vector<8x8x1xf32>
    %178 = vector.shape_cast %177 : vector<8x8x1xf32> to vector<8x8xf32>
    %179 = math.tanh %178 : vector<8x8xf32>
    %180 = vector.extract_strided_slice %165 {offsets = [1, 0, 0], sizes = [1, 8, 8], strides = [1, 1, 1]} : vector<2x8x8xbf16> to vector<1x8x8xbf16>
    %181 = vector.shape_cast %180 : vector<1x8x8xbf16> to vector<8x8xbf16>
    %182 = arith.extf %181 : vector<8x8xbf16> to vector<8x8xf32>
    %183 = arith.mulf %179, %182 : vector<8x8xf32>
    %184 = arith.addf %176, %183 : vector<8x8xf32>
    %cst_49 = arith.constant 0.333333343 : f32
    %185 = vector.broadcast %cst_49 : f32 to vector<8x8xf32>
    %186 = arith.mulf %184, %185 : vector<8x8xf32>
    %c0_50 = arith.constant 0 : index
    %c0_51 = arith.constant 0 : index
    %c0_52 = arith.constant 0 : index
    %187 = vector.load %arg6[%c0_50, %c0_51, %c0_52] : memref<1x3x8xf32, #tpu.memory_space<vmem>>, vector<1x3x8xf32>
    %188 = vector.shape_cast %187 : vector<1x3x8xf32> to vector<3x8xf32>
    %c0_53 = arith.constant 0 : index
    %c0_54 = arith.constant 0 : index
    %c0_55 = arith.constant 0 : index
    %189 = vector.load %arg7[%c0_53, %c0_54, %c0_55] : memref<1x3x8xf32, #tpu.memory_space<vmem>>, vector<1x3x8xf32>
    %190 = vector.shape_cast %189 : vector<1x3x8xf32> to vector<3x8xf32>
    %191 = vector.shape_cast %188 : vector<3x8xf32> to vector<3x8x1xf32>
    %192 = vector.shape_cast %190 : vector<3x8xf32> to vector<3x1x8xf32>
    %193 = vector.broadcast %191 : vector<3x8x1xf32> to vector<3x8x8xf32>
    %194 = vector.broadcast %192 : vector<3x1x8xf32> to vector<3x8x8xf32>
    %195 = arith.subf %193, %194 : vector<3x8x8xf32>
    %196 = arith.mulf %195, %195 : vector<3x8x8xf32>
    %cst_56 = arith.constant dense<0.000000e+00> : vector<8x8xf32>
    %197 = vector.multi_reduction <add>, %196, %cst_56 [0] : vector<3x8x8xf32> to vector<8x8xf32>
    %198 = math.sqrt %197 : vector<8x8xf32>
    %c0_57 = arith.constant 0 : index
    %c0_58 = arith.constant 0 : index
    %c0_59 = arith.constant 0 : index
    %199 = vector.load %arg9[%c0_57, %c0_58, %c0_59] : memref<1x8x8xbf16, #tpu.memory_space<vmem>>, vector<1x8x8xbf16>
    %200 = vector.shape_cast %199 : vector<1x8x8xbf16> to vector<8x8xbf16>
    %201 = arith.extf %200 : vector<8x8xbf16> to vector<8x8xf32>
    %202 = arith.mulf %201, %186 : vector<8x8xf32>
    %c0_60 = arith.constant 0 : index
    %203 = memref.load %arg18[%c0_60] : memref<1xf32, #tpu.memory_space<smem>>
    %cst_61 = arith.constant 9.99999993E-9 : f32
    %204 = vector.broadcast %cst_61 : f32 to vector<8x8xf32>
    %205 = arith.maximumf %198, %204 : vector<8x8xf32>
    %206 = vector.broadcast %203 : f32 to vector<8x8xf32>
    %207 = arith.divf %206, %205 : vector<8x8xf32>
    %208 = arith.mulf %202, %207 : vector<8x8xf32>
    %c0_62 = arith.constant 0 : index
    %c0_63 = arith.constant 0 : index
    %209 = vector.load %arg20[%c0_62, %c0_63] : memref<3x8xf32, #tpu.memory_space<vmem>>, vector<3x8xf32>
    %210 = vector.shape_cast %208 : vector<8x8xf32> to vector<1x8x8xf32>
    %211 = vector.broadcast %210 : vector<1x8x8xf32> to vector<3x8x8xf32>
    %212 = arith.mulf %195, %211 : vector<3x8x8xf32>
    %cst_64 = arith.constant dense<0.000000e+00> : vector<3x8xf32>
    %213 = vector.multi_reduction <add>, %212, %cst_64 [2] : vector<3x8x8xf32> to vector<3x8xf32>
    %214 = arith.addf %209, %213 : vector<3x8xf32>
    %c0_65 = arith.constant 0 : index
    %c0_66 = arith.constant 0 : index
    %215 = vector.load %arg20[%c0_65, %c0_66] : memref<3x8xf32, #tpu.memory_space<vmem>>, vector<3x8xf32>
    tpu.vector_store %arg20[%c0_65, %c0_66], %214 {strides = array<i32>} : memref<3x8xf32, #tpu.memory_space<vmem>>, vector<3x8xf32>,
    %c0_i32_67 = arith.constant 0 : i32
    %216 = arith.cmpi eq, %arg2, %c0_i32_67 : i32
    %217 = arith.extui %216 : i1 to i32
    %c0_i32_68 = arith.constant 0 : i32
    %218 = arith.cmpi ne, %217, %c0_i32_68 : i32
    scf.if %218 {
      %c0_69 = arith.constant 0 : index
      %c0_70 = arith.constant 0 : index
      %219 = vector.load %arg20[%c0_69, %c0_70] : memref<3x8xf32, #tpu.memory_space<vmem>>, vector<3x8xf32>
      %220 = arith.addf %188, %219 : vector<3x8xf32>
      %c0_71 = arith.constant 0 : index
      %c0_72 = arith.constant 0 : index
      %c0_73 = arith.constant 0 : index
      %221 = vector.load %arg19[%c0_71, %c0_72, %c0_73] : memref<1x3x8xf32, #tpu.memory_space<vmem>>, vector<1x3x8xf32>
      %222 = vector.shape_cast %221 : vector<1x3x8xf32> to vector<3x8xf32>
      %223 = vector.shape_cast %220 : vector<3x8xf32> to vector<1x3x8xf32>
      tpu.vector_store %arg19[%c0_71, %c0_72, %c0_73], %223 {strides = array<i32>} : memref<1x3x8xf32, #tpu.memory_space<vmem>>, vector<1x3x8xf32>,
    } else {
    }
    return
  }
  func.func @transform_0(%arg0: i32, %arg1: i32, %arg2: i32) -> (i32, i32, i32) {
    %c0_i32 = arith.constant 0 : i32
    %c0_i32_0 = arith.constant 0 : i32
    %c0_i32_1 = arith.constant 0 : i32
    return %arg0, %c0_i32, %c0_i32_0 : i32, i32, i32
  }
  func.func @transform_1(%arg0: i32, %arg1: i32, %arg2: i32) -> (i32, i32, i32) {
    %c0_i32 = arith.constant 0 : i32
    %c0_i32_0 = arith.constant 0 : i32
    return %arg0, %arg1, %c0_i32 : i32, i32, i32
  }
  func.func @transform_2(%arg0: i32, %arg1: i32, %arg2: i32) -> (i32, i32, i32) {
    %c0_i32 = arith.constant 0 : i32
    %c0_i32_0 = arith.constant 0 : i32
    return %arg0, %arg2, %c0_i32 : i32, i32, i32
  }
  func.func @transform_3(%arg0: i32, %arg1: i32, %arg2: i32) -> (i32, i32, i32) {
    %c0_i32 = arith.constant 0 : i32
    %c0_i32_0 = arith.constant 0 : i32
    return %arg0, %c0_i32, %arg1 : i32, i32, i32
  }
  func.func @transform_4(%arg0: i32, %arg1: i32, %arg2: i32) -> (i32, i32, i32) {
    %c0_i32 = arith.constant 0 : i32
    %c0_i32_0 = arith.constant 0 : i32
    return %arg0, %c0_i32, %arg2 : i32, i32, i32
  }
  func.func @transform_5(%arg0: i32, %arg1: i32, %arg2: i32) -> (i32, i32, i32, i32) {
    %c0_i32 = arith.constant 0 : i32
    %c0_i32_0 = arith.constant 0 : i32
    return %arg0, %c0_i32, %arg1, %arg2 : i32, i32, i32, i32
  }
  func.func @transform_6(%arg0: i32, %arg1: i32, %arg2: i32) -> (i32, i32, i32) {
    %c0_i32 = arith.constant 0 : i32
    return %arg0, %arg1, %arg2 : i32, i32, i32
  }
  func.func @transform_7(%arg0: i32, %arg1: i32, %arg2: i32) -> (i32, i32, i32, i32) {
    %c0_i32 = arith.constant 0 : i32
    %c0_i32_0 = arith.constant 0 : i32
    return %arg0, %c0_i32, %arg1, %arg2 : i32, i32, i32, i32
  }
  func.func @transform_8(%arg0: i32, %arg1: i32, %arg2: i32) -> (i32, i32) {
    %c0_i32 = arith.constant 0 : i32
    %c0_i32_0 = arith.constant 0 : i32
    %c0_i32_1 = arith.constant 0 : i32
    return %c0_i32, %c0_i32_0 : i32, i32
  }
  func.func @transform_9(%arg0: i32, %arg1: i32, %arg2: i32) -> (i32, i32) {
    %c0_i32 = arith.constant 0 : i32
    %c0_i32_0 = arith.constant 0 : i32
    %c0_i32_1 = arith.constant 0 : i32
    return %c0_i32, %c0_i32_0 : i32, i32
  }
  func.func @transform_10(%arg0: i32, %arg1: i32, %arg2: i32) -> (i32, i32) {
    %c0_i32 = arith.constant 0 : i32
    %c0_i32_0 = arith.constant 0 : i32
    %c0_i32_1 = arith.constant 0 : i32
    return %c0_i32, %c0_i32_0 : i32, i32
  }
  func.func @transform_11(%arg0: i32, %arg1: i32, %arg2: i32) -> (i32, i32) {
    %c0_i32 = arith.constant 0 : i32
    %c0_i32_0 = arith.constant 0 : i32
    %c0_i32_1 = arith.constant 0 : i32
    return %c0_i32, %c0_i32_0 : i32, i32
  }
  func.func @transform_12(%arg0: i32, %arg1: i32, %arg2: i32) -> (i32, i32) {
    %c0_i32 = arith.constant 0 : i32
    %c0_i32_0 = arith.constant 0 : i32
    %c0_i32_1 = arith.constant 0 : i32
    return %c0_i32, %c0_i32_0 : i32, i32
  }
  func.func @transform_13(%arg0: i32, %arg1: i32, %arg2: i32) -> (i32, i32) {
    %c0_i32 = arith.constant 0 : i32
    %c0_i32_0 = arith.constant 0 : i32
    %c0_i32_1 = arith.constant 0 : i32
    return %c0_i32, %c0_i32_0 : i32, i32
  }
  func.func @transform_14(%arg0: i32, %arg1: i32, %arg2: i32) -> (i32, i32) {
    %c0_i32 = arith.constant 0 : i32
    %c0_i32_0 = arith.constant 0 : i32
    %c0_i32_1 = arith.constant 0 : i32
    return %c0_i32, %c0_i32_0 : i32, i32
  }
  func.func @transform_15(%arg0: i32, %arg1: i32, %arg2: i32) -> i32 {
    %c0_i32 = arith.constant 0 : i32
    %c0_i32_0 = arith.constant 0 : i32
    return %c0_i32 : i32
  }
  func.func @transform_16(%arg0: i32, %arg1: i32, %arg2: i32) -> (i32, i32, i32) {
    %c0_i32 = arith.constant 0 : i32
    %c0_i32_0 = arith.constant 0 : i32
    return %arg0, %c0_i32, %arg1 : i32, i32, i32
  }
}

</mosaic_0001>

<llo_original>
// kernel: multi_cond_equi_update.1
$region0: #{multi_cond_equi_update.1}
  #allocation0 [shape = 'u32[]', space=smem, size = 0x4, offset = 0x4, fixed_abs, tag = 'smem constant byte address 0x4 - core index']
  #allocation1 [shape = 'u32[144,128]{1,0:T(1,128)}', space=vmem, size = 0x12000, scoped, tag = 'internal scratch']
  #allocation2 [shape = 'f32[3,8]{1,0:T(4,128)}', space=vmem, size = 0x800, scoped, tag = 'scratch operand']
  #allocation3 [shape = 'f32[1]{0:T(128)S(6)}', space=smem, size = 0x200, scoped, tag = 'scoped memory for multi_cond_equi_update.1']
  %s0 = inlined_call_operand.hbm [shape: f32[2,1,64], index: 0, kind: input, shape index: {}]
  %s1 = inlined_call_operand.hbm [shape: f32[2,8,32], index: 1, kind: input, shape index: {}, may-alias: {1,2}]
  %s2 = inlined_call_operand.hbm [shape: f32[2,8,32], index: 2, kind: input, shape index: {}, may-alias: {1,2}]
  %s3 = inlined_call_operand.hbm [shape: f32[2,3,8], index: 3, kind: input, shape index: {}, may-alias: {3,4}]
  %s4 = inlined_call_operand.hbm [shape: f32[2,3,8], index: 4, kind: input, shape index: {}, may-alias: {3,4}]
  %s5 = inlined_call_operand.hbm [shape: bf16[2,9,8,8], index: 5, kind: input, shape index: {}]
  %s6 = inlined_call_operand.hbm [shape: bf16[2,8,8], index: 6, kind: input, shape index: {}]
  %s7 = inlined_call_operand.hbm [shape: bf16[2,2,8,8], index: 7, kind: input, shape index: {}]
  %s8 = inlined_call_operand.hbm [shape: f32[32,32], index: 8, kind: input, shape index: {}]
  %s9 = inlined_call_operand.hbm [shape: f32[32,32], index: 9, kind: input, shape index: {}]
  %s10 = inlined_call_operand.hbm [shape: f32[9,32], index: 10, kind: input, shape index: {}]
  %s11 = inlined_call_operand.hbm [shape: f32[1,32], index: 11, kind: input, shape index: {}]
  %s12 = inlined_call_operand.hbm [shape: bf16[32,32], index: 12, kind: input, shape index: {}]
  %s13 = inlined_call_operand.hbm [shape: f32[1,32], index: 13, kind: input, shape index: {}]
  %s14 = inlined_call_operand.hbm [shape: bf16[32,3], index: 14, kind: input, shape index: {}]
  %s15 = inlined_call_operand.<no memory space> [shape: f32[1], index: 15, kind: input, shape index: {}]
  %s16 = inlined_call_operand.hbm [shape: f32[2,3,8], index: 16, kind: output, shape index: {}]
  %s17 = sld [smem:[#allocation0]]
  $region165: #{multi_cond_equi_update.1} parent=0
    _
  %s19 = ssub.s32 1, %s17
  %s20 = scalar_select 0, %s19, %s17
  %21 = sst [smem:[#allocation3]] %s15
  $region1: #{multi_cond_equi_update.1} parent=0
    #allocation4 [shape = 'u8[1024]{0}', space=vmem, size = 0x400, scoped, tag = 'input window, operand 0']
    #allocation5 [shape = 's32[2]{0}', space=sflag, size = 0x8, scoped, tag = 'scoped memory for multi_cond_equi_update.1']
    #allocation6 [shape = 's32[2]{0}', space=sflag, size = 0x8, scoped, tag = 'scoped memory for multi_cond_equi_update.1']
    #allocation7 [shape = 'u8[8192]{0}', space=vmem, size = 0x2000, scoped, tag = 'input window, operand 1']
    #allocation8 [shape = 's32[2]{0}', space=sflag, size = 0x8, scoped, tag = 'scoped memory for multi_cond_equi_update.1']
    #allocation9 [shape = 'u8[8192]{0}', space=vmem, size = 0x2000, scoped, tag = 'input window, operand 2']
    #allocation10 [shape = 'u8[4096]{0}', space=vmem, size = 0x1000, scoped, tag = 'input window, operand 3']
    #allocation11 [shape = 's32[2]{0}', space=sflag, size = 0x8, scoped, tag = 'scoped memory for multi_cond_equi_update.1']
    #allocation12 [shape = 'u8[4096]{0}', space=vmem, size = 0x1000, scoped, tag = 'input window, operand 4']
    #allocation13 [shape = 'u8[36864]{0}', space=vmem, size = 0x9000, scoped, tag = 'input window, operand 5']
    #allocation14 [shape = 's32[2]{0}', space=sflag, size = 0x8, scoped, tag = 'scoped memory for multi_cond_equi_update.1']
    #allocation15 [shape = 'u8[4096]{0}', space=vmem, size = 0x1000, scoped, tag = 'input window, operand 6']
    #allocation16 [shape = 'u8[8192]{0}', space=vmem, size = 0x2000, scoped, tag = 'input window, operand 7']
    #allocation17 [shape = 's32[2]{0}', space=sflag, size = 0x8, scoped, tag = 'scoped memory for multi_cond_equi_update.1']
    #allocation18 [shape = 'u8[16384]{0}', space=vmem, size = 0x4000, scoped, tag = 'input window, operand 8, single buffered']
    #allocation19 [shape = 'u8[16384]{0}', space=vmem, size = 0x4000, scoped, tag = 'input window, operand 9, single buffered']
    #allocation20 [shape = 's32[1]{0}', space=sflag, size = 0x4, scoped, tag = 'scoped memory for multi_cond_equi_update.1']
    #allocation21 [shape = 'u8[8192]{0}', space=vmem, size = 0x2000, scoped, tag = 'input window, operand 10, single buffered']
    #allocation22 [shape = 'u8[512]{0}', space=vmem, size = 0x400, scoped, tag = 'input window, operand 11, single buffered']
    #allocation23 [shape = 's32[1]{0}', space=sflag, size = 0x4, scoped, tag = 'scoped memory for multi_cond_equi_update.1']
    #allocation24 [shape = 'u8[8192]{0}', space=vmem, size = 0x2000, scoped, tag = 'input window, operand 12, single buffered']
    #allocation25 [shape = 'u8[512]{0}', space=vmem, size = 0x400, scoped, tag = 'input window, operand 13, single buffered']
    #allocation26 [shape = 's32[1]{0}', space=sflag, size = 0x4, scoped, tag = 'scoped memory for multi_cond_equi_update.1']
    #allocation27 [shape = 'u8[8192]{0}', space=vmem, size = 0x2000, scoped, tag = 'input window, operand 14, single buffered']
    #allocation28 [shape = 'u8[4096]{0}', space=vmem, size = 0x1000, scoped, tag = 'output window, operand 0']
    %22 = vsyncpa [#allocation5], 0
    %s23 = scalar_lea.sflag [#allocation5], 1
    %24 = vsyncpa %s23, 0
    %25 = vsyncpa [#allocation8], 0
    %s26 = scalar_lea.sflag [#allocation8], 1
    %27 = vsyncpa %s26, 0
    %28 = vsyncpa [#allocation11], 0
    %s29 = scalar_lea.sflag [#allocation11], 1
    %30 = vsyncpa %s29, 0
    %31 = vsyncpa [#allocation14], 0
    %s32 = scalar_lea.sflag [#allocation14], 1
    %33 = vsyncpa %s32, 0
    %34 = vsyncpa [#allocation17], 0
    %s35 = scalar_lea.sflag [#allocation17], 1
    %36 = vsyncpa %s35, 0
    %37 = vsyncpa [#allocation20], 0
    %38 = vsyncpa [#allocation23], 0
    %39 = vsyncpa [#allocation26], 0
    %40 = vsyncpa [#allocation6], 0
    %s41 = scalar_lea.sflag [#allocation6], 1
    %42 = vsyncpa %s41, 0
    loop: start=0, step=1, limit=4
    $region2: #{multi_cond_equi_update.1} parent=1 // loop_pre_header
      _
    $region3: #{multi_cond_equi_update.1} parent=1 // loop_header
      %s44 = sphi 0, %s48
      %p45 = scmp.ge.s32.totalorder %s44, 4
      %s51 = sphi 0, %s70
      %s52 = sphi 0, %s66
      %s53 = sphi 0, %s62
      %s54 = sphi 0, %s51
      %s55 = sphi 0, %s52
      %s56 = sphi 0, %s53
      %s57 = sphi 0, %s54
      %s58 = sphi 0, %s55
      %s59 = sphi 0, %s56
      %s73 = sphi 0, %s75
      %s76 = sphi 0, %s73
      %s77 = sphi 0, %s76
      %s93 = sphi 0, %s77
      %s101 = sphi 0, %s103
      %s104 = sphi 0, %s101
      %s105 = sphi 0, %s104
      %s121 = sphi 0, %s105
      %s129 = sphi 0, %s131
      %s132 = sphi 0, %s129
      %s133 = sphi 0, %s132
      %s149 = sphi 0, %s133
      %s157 = sphi 0, %s159
      %s160 = sphi 0, %s157
      %s161 = sphi 0, %s160
      %s177 = sphi 0, %s161
      %s185 = sphi 0, %s187
      %s188 = sphi 0, %s185
      %s189 = sphi 0, %s188
      %s205 = sphi 0, %s189
      %s215 = sphi 0, %s217
      %s218 = sphi 0, %s215
      %s219 = sphi 0, %s218
      %s235 = sphi 0, %s219
      %s245 = sphi 0, %s247
      %s248 = sphi 0, %s245
      %s249 = sphi 0, %s248
      %s265 = sphi 0, %s249
      %s275 = sphi 0, %s277
      %s278 = sphi 0, %s275
      %s279 = sphi 0, %s278
      %s295 = sphi 0, %s279
      %s299 = sphi 0, %s299
      %s301 = sphi 0, %s299
      %s302 = sphi 0, %s301
      %s316 = sphi 0, %s302
      %s320 = sphi 0, %s320
      %s322 = sphi 0, %s320
      %s323 = sphi 0, %s322
      %s337 = sphi 0, %s323
      %s341 = sphi 0, %s341
      %s343 = sphi 0, %s341
      %s344 = sphi 0, %s343
      %s358 = sphi 0, %s344
      %s362 = sphi 0, %s362
      %s364 = sphi 0, %s362
      %s365 = sphi 0, %s364
      %s379 = sphi 0, %s365
      %s383 = sphi 0, %s383
      %s385 = sphi 0, %s383
      %s386 = sphi 0, %s385
      %s400 = sphi 0, %s386
      %s404 = sphi 0, %s404
      %s406 = sphi 0, %s404
      %s407 = sphi 0, %s406
      %s421 = sphi 0, %s407
      %s425 = sphi 0, %s425
      %s427 = sphi 0, %s425
      %s428 = sphi 0, %s427
      %s442 = sphi 0, %s428
      %s446 = sphi 0, %s446
      %s448 = sphi 0, %s446
      %s449 = sphi 0, %s448
      %s463 = sphi 0, %s449
      %s471 = sphi 0, %s473
      %s474 = sphi 0, %s471
      %s475 = sphi 0, %s474
      %s491 = sphi 0, %s475
    $region4: #{multi_cond_equi_update.1} parent=1 // loop_header_branch
      %47 = sbr.rel (%p45) target = $region8
    $region5: #{multi_cond_equi_update.1} parent=1 // loop_body
      %s49 = ssub.s32 %s44, 1
      %s50 = ssub.s32 %s44, 2
      %s60 = sadd.s32 1, %s53
      %p61 = scmp.ge.s32.totalorder %s60, 1
      %s62 = scalar_select %p61, 0, %s60
      %s63 = sadd.s32 1, %s52
      %s64 = scalar_select %p61, %s63, %s52
      %p65 = scmp.ge.s32.totalorder %s64, 1
      %s66 = scalar_select %p65, 0, %s64
      %s67 = sadd.s32 1, %s51
      %s68 = scalar_select %p65, %s67, %s51
      %p69 = scmp.ge.s32.totalorder %s68, 2
      %s70 = scalar_select %p69, 0, %s68
      %s71 = ssub.s32 %s51, %s70
      %p72 = scmp.eq.s32.totalorder %s71, 0
      %s74 = sadd.s32 %s73, 1
      %s75 = scalar_select %p72, %s73, %s74
      %p78 = pneg %p72
      %p79 = scmp.eq.s32.totalorder %s44, 1
      %p80 = por %p78, %p79
      %p81 = scmp.ne.s32.totalorder %s73, %s76
      %p82 = scmp.eq.s32.totalorder %s44, 0
      %p83 = por %p81, %p82
      %p84 = scmp.ne.s32.totalorder %s73, %s76
      %p85 = scmp.eq.s32.totalorder %s49, 1
      %p86 = por %p84, %p85
      %p87 = scmp.ne.s32.totalorder %s76, %s77
      %p88 = scmp.eq.s32.totalorder %s49, 0
      %p89 = por %p87, %p88
      %p90 = scmp.ne.s32.totalorder %s76, %s77
      %p91 = scmp.eq.s32.totalorder %s50, 1
      %p92 = por %p90, %p91
      %p94 = scmp.ne.s32.totalorder %s77, %s93
      %p95 = scmp.eq.s32.totalorder %s50, 0
      %p96 = por %p94, %p95
      %s97 = ssub.s32 %s51, %s70
      %s98 = ssub.s32 %s52, %s66
      %s99 = sor.u32 %s97, %s98
      %p100 = scmp.eq.s32.totalorder %s99, 0
      %s102 = sadd.s32 %s101, 1
      %s103 = scalar_select %p100, %s101, %s102
      %p106 = pneg %p100
      %p107 = scmp.eq.s32.totalorder %s44, 1
      %p108 = por %p106, %p107
      %p109 = scmp.ne.s32.totalorder %s101, %s104
      %p110 = scmp.eq.s32.totalorder %s44, 0
      %p111 = por %p109, %p110
      %p112 = scmp.ne.s32.totalorder %s101, %s104
      %p113 = scmp.eq.s32.totalorder %s49, 1
      %p114 = por %p112, %p113
      %p115 = scmp.ne.s32.totalorder %s104, %s105
      %p116 = scmp.eq.s32.totalorder %s49, 0
      %p117 = por %p115, %p116
      %p118 = scmp.ne.s32.totalorder %s104, %s105
      %p119 = scmp.eq.s32.totalorder %s50, 1
      %p120 = por %p118, %p119
      %p122 = scmp.ne.s32.totalorder %s105, %s121
      %p123 = scmp.eq.s32.totalorder %s50, 0
      %p124 = por %p122, %p123
      %s125 = ssub.s32 %s51, %s70
      %s126 = ssub.s32 %s53, %s62
      %s127 = sor.u32 %s125, %s126
      %p128 = scmp.eq.s32.totalorder %s127, 0
      %s130 = sadd.s32 %s129, 1
      %s131 = scalar_select %p128, %s129, %s130
      %p134 = pneg %p128
      %p135 = scmp.eq.s32.totalorder %s44, 1
      %p136 = por %p134, %p135
      %p137 = scmp.ne.s32.totalorder %s129, %s132
      %p138 = scmp.eq.s32.totalorder %s44, 0
      %p139 = por %p137, %p138
      %p140 = scmp.ne.s32.totalorder %s129, %s132
      %p141 = scmp.eq.s32.totalorder %s49, 1
      %p142 = por %p140, %p141
      %p143 = scmp.ne.s32.totalorder %s132, %s133
      %p144 = scmp.eq.s32.totalorder %s49, 0
      %p145 = por %p143, %p144
      %p146 = scmp.ne.s32.totalorder %s132, %s133
      %p147 = scmp.eq.s32.totalorder %s50, 1
      %p148 = por %p146, %p147
      %p150 = scmp.ne.s32.totalorder %s133, %s149
      %p151 = scmp.eq.s32.totalorder %s50, 0
      %p152 = por %p150, %p151
      %s153 = ssub.s32 %s51, %s70
      %s154 = ssub.s32 %s52, %s66
      %s155 = sor.u32 %s153, %s154
      %p156 = scmp.eq.s32.totalorder %s155, 0
      %s158 = sadd.s32 %s157, 1
      %s159 = scalar_select %p156, %s157, %s158
      %p162 = pneg %p156
      %p163 = scmp.eq.s32.totalorder %s44, 1
      %p164 = por %p162, %p163
      %p165 = scmp.ne.s32.totalorder %s157, %s160
      %p166 = scmp.eq.s32.totalorder %s44, 0
      %p167 = por %p165, %p166
      %p168 = scmp.ne.s32.totalorder %s157, %s160
      %p169 = scmp.eq.s32.totalorder %s49, 1
      %p170 = por %p168, %p169
      %p171 = scmp.ne.s32.totalorder %s160, %s161
      %p172 = scmp.eq.s32.totalorder %s49, 0
      %p173 = por %p171, %p172
      %p174 = scmp.ne.s32.totalorder %s160, %s161
      %p175 = scmp.eq.s32.totalorder %s50, 1
      %p176 = por %p174, %p175
      %p178 = scmp.ne.s32.totalorder %s161, %s177
      %p179 = scmp.eq.s32.totalorder %s50, 0
      %p180 = por %p178, %p179
      %s181 = ssub.s32 %s51, %s70
      %s182 = ssub.s32 %s53, %s62
      %s183 = sor.u32 %s181, %s182
      %p184 = scmp.eq.s32.totalorder %s183, 0
      %s186 = sadd.s32 %s185, 1
      %s187 = scalar_select %p184, %s185, %s186
      %p190 = pneg %p184
      %p191 = scmp.eq.s32.totalorder %s44, 1
      %p192 = por %p190, %p191
      %p193 = scmp.ne.s32.totalorder %s185, %s188
      %p194 = scmp.eq.s32.totalorder %s44, 0
      %p195 = por %p193, %p194
      %p196 = scmp.ne.s32.totalorder %s185, %s188
      %p197 = scmp.eq.s32.totalorder %s49, 1
      %p198 = por %p196, %p197
      %p199 = scmp.ne.s32.totalorder %s188, %s189
      %p200 = scmp.eq.s32.totalorder %s49, 0
      %p201 = por %p199, %p200
      %p202 = scmp.ne.s32.totalorder %s188, %s189
      %p203 = scmp.eq.s32.totalorder %s50, 1
      %p204 = por %p202, %p203
      %p206 = scmp.ne.s32.totalorder %s189, %s205
      %p207 = scmp.eq.s32.totalorder %s50, 0
      %p208 = por %p206, %p207
      %s209 = ssub.s32 %s51, %s70
      %s210 = ssub.s32 %s52, %s66
      %s211 = sor.u32 %s209, %s210
      %s212 = ssub.s32 %s53, %s62
      %s213 = sor.u32 %s211, %s212
      %p214 = scmp.eq.s32.totalorder %s213, 0
      %s216 = sadd.s32 %s215, 1
      %s217 = scalar_select %p214, %s215, %s216
      %p220 = pneg %p214
      %p221 = scmp.eq.s32.totalorder %s44, 1
      %p222 = por %p220, %p221
      %p223 = scmp.ne.s32.totalorder %s215, %s218
      %p224 = scmp.eq.s32.totalorder %s44, 0
      %p225 = por %p223, %p224
      %p226 = scmp.ne.s32.totalorder %s215, %s218
      %p227 = scmp.eq.s32.totalorder %s49, 1
      %p228 = por %p226, %p227
      %p229 = scmp.ne.s32.totalorder %s218, %s219
      %p230 = scmp.eq.s32.totalorder %s49, 0
      %p231 = por %p229, %p230
      %p232 = scmp.ne.s32.totalorder %s218, %s219
      %p233 = scmp.eq.s32.totalorder %s50, 1
      %p234 = por %p232, %p233
      %p236 = scmp.ne.s32.totalorder %s219, %s235
      %p237 = scmp.eq.s32.totalorder %s50, 0
      %p238 = por %p236, %p237
      %s239 = ssub.s32 %s51, %s70
      %s240 = ssub.s32 %s52, %s66
      %s241 = sor.u32 %s239, %s240
      %s242 = ssub.s32 %s53, %s62
      %s243 = sor.u32 %s241, %s242
      %p244 = scmp.eq.s32.totalorder %s243, 0
      %s246 = sadd.s32 %s245, 1
      %s247 = scalar_select %p244, %s245, %s246
      %p250 = pneg %p244
      %p251 = scmp.eq.s32.totalorder %s44, 1
      %p252 = por %p250, %p251
      %p253 = scmp.ne.s32.totalorder %s245, %s248
      %p254 = scmp.eq.s32.totalorder %s44, 0
      %p255 = por %p253, %p254
      %p256 = scmp.ne.s32.totalorder %s245, %s248
      %p257 = scmp.eq.s32.totalorder %s49, 1
      %p258 = por %p256, %p257
      %p259 = scmp.ne.s32.totalorder %s248, %s249
      %p260 = scmp.eq.s32.totalorder %s49, 0
      %p261 = por %p259, %p260
      %p262 = scmp.ne.s32.totalorder %s248, %s249
      %p263 = scmp.eq.s32.totalorder %s50, 1
      %p264 = por %p262, %p263
      %p266 = scmp.ne.s32.totalorder %s249, %s265
      %p267 = scmp.eq.s32.totalorder %s50, 0
      %p268 = por %p266, %p267
      %s269 = ssub.s32 %s51, %s70
      %s270 = ssub.s32 %s52, %s66
      %s271 = sor.u32 %s269, %s270
      %s272 = ssub.s32 %s53, %s62
      %s273 = sor.u32 %s271, %s272
      %p274 = scmp.eq.s32.totalorder %s273, 0
      %s276 = sadd.s32 %s275, 1
      %s277 = scalar_select %p274, %s275, %s276
      %p280 = pneg %p274
      %p281 = scmp.eq.s32.totalorder %s44, 1
      %p282 = por %p280, %p281
      %p283 = scmp.ne.s32.totalorder %s275, %s278
      %p284 = scmp.eq.s32.totalorder %s44, 0
      %p285 = por %p283, %p284
      %p286 = scmp.ne.s32.totalorder %s275, %s278
      %p287 = scmp.eq.s32.totalorder %s49, 1
      %p288 = por %p286, %p287
      %p289 = scmp.ne.s32.totalorder %s278, %s279
      %p290 = scmp.eq.s32.totalorder %s49, 0
      %p291 = por %p289, %p290
      %p292 = scmp.ne.s32.totalorder %s278, %s279
      %p293 = scmp.eq.s32.totalorder %s50, 1
      %p294 = por %p292, %p293
      %p296 = scmp.ne.s32.totalorder %s279, %s295
      %p297 = scmp.eq.s32.totalorder %s50, 0
      %p298 = por %p296, %p297
      %s300 = sadd.s32 %s299, 1
      %p303 = scmp.eq.s32.totalorder %s44, 1
      %p304 = scmp.ne.s32.totalorder %s299, %s301
      %p305 = scmp.eq.s32.totalorder %s44, 0
      %p306 = por %p304, %p305
      %p307 = scmp.ne.s32.totalorder %s299, %s301
      %p308 = scmp.eq.s32.totalorder %s49, 1
      %p309 = por %p307, %p308
      %p310 = scmp.ne.s32.totalorder %s301, %s302
      %p311 = scmp.eq.s32.totalorder %s49, 0
      %p312 = por %p310, %p311
      %p313 = scmp.ne.s32.totalorder %s301, %s302
      %p314 = scmp.eq.s32.totalorder %s50, 1
      %p315 = por %p313, %p314
      %p317 = scmp.ne.s32.totalorder %s302, %s316
      %p318 = scmp.eq.s32.totalorder %s50, 0
      %p319 = por %p317, %p318
      %s321 = sadd.s32 %s320, 1
      %p324 = scmp.eq.s32.totalorder %s44, 1
      %p325 = scmp.ne.s32.totalorder %s320, %s322
      %p326 = scmp.eq.s32.totalorder %s44, 0
      %p327 = por %p325, %p326
      %p328 = scmp.ne.s32.totalorder %s320, %s322
      %p329 = scmp.eq.s32.totalorder %s49, 1
      %p330 = por %p328, %p329
      %p331 = scmp.ne.s32.totalorder %s322, %s323
      %p332 = scmp.eq.s32.totalorder %s49, 0
      %p333 = por %p331, %p332
      %p334 = scmp.ne.s32.totalorder %s322, %s323
      %p335 = scmp.eq.s32.totalorder %s50, 1
      %p336 = por %p334, %p335
      %p338 = scmp.ne.s32.totalorder %s323, %s337
      %p339 = scmp.eq.s32.totalorder %s50, 0
      %p340 = por %p338, %p339
      %s342 = sadd.s32 %s341, 1
      %p345 = scmp.eq.s32.totalorder %s44, 1
      %p346 = scmp.ne.s32.totalorder %s341, %s343
      %p347 = scmp.eq.s32.totalorder %s44, 0
      %p348 = por %p346, %p347
      %p349 = scmp.ne.s32.totalorder %s341, %s343
      %p350 = scmp.eq.s32.totalorder %s49, 1
      %p351 = por %p349, %p350
      %p352 = scmp.ne.s32.totalorder %s343, %s344
      %p353 = scmp.eq.s32.totalorder %s49, 0
      %p354 = por %p352, %p353
      %p355 = scmp.ne.s32.totalorder %s343, %s344
      %p356 = scmp.eq.s32.totalorder %s50, 1
      %p357 = por %p355, %p356
      %p359 = scmp.ne.s32.totalorder %s344, %s358
      %p360 = scmp.eq.s32.totalorder %s50, 0
      %p361 = por %p359, %p360
      %s363 = sadd.s32 %s362, 1
      %p366 = scmp.eq.s32.totalorder %s44, 1
      %p367 = scmp.ne.s32.totalorder %s362, %s364
      %p368 = scmp.eq.s32.totalorder %s44, 0
      %p369 = por %p367, %p368
      %p370 = scmp.ne.s32.totalorder %s362, %s364
      %p371 = scmp.eq.s32.totalorder %s49, 1
      %p372 = por %p370, %p371
      %p373 = scmp.ne.s32.totalorder %s364, %s365
      %p374 = scmp.eq.s32.totalorder %s49, 0
      %p375 = por %p373, %p374
      %p376 = scmp.ne.s32.totalorder %s364, %s365
      %p377 = scmp.eq.s32.totalorder %s50, 1
      %p378 = por %p376, %p377
      %p380 = scmp.ne.s32.totalorder %s365, %s379
      %p381 = scmp.eq.s32.totalorder %s50, 0
      %p382 = por %p380, %p381
      %s384 = sadd.s32 %s383, 1
      %p387 = scmp.eq.s32.totalorder %s44, 1
      %p388 = scmp.ne.s32.totalorder %s383, %s385
      %p389 = scmp.eq.s32.totalorder %s44, 0
      %p390 = por %p388, %p389
      %p391 = scmp.ne.s32.totalorder %s383, %s385
      %p392 = scmp.eq.s32.totalorder %s49, 1
      %p393 = por %p391, %p392
      %p394 = scmp.ne.s32.totalorder %s385, %s386
      %p395 = scmp.eq.s32.totalorder %s49, 0
      %p396 = por %p394, %p395
      %p397 = scmp.ne.s32.totalorder %s385, %s386
      %p398 = scmp.eq.s32.totalorder %s50, 1
      %p399 = por %p397, %p398
      %p401 = scmp.ne.s32.totalorder %s386, %s400
      %p402 = scmp.eq.s32.totalorder %s50, 0
      %p403 = por %p401, %p402
      %s405 = sadd.s32 %s404, 1
      %p408 = scmp.eq.s32.totalorder %s44, 1
      %p409 = scmp.ne.s32.totalorder %s404, %s406
      %p410 = scmp.eq.s32.totalorder %s44, 0
      %p411 = por %p409, %p410
      %p412 = scmp.ne.s32.totalorder %s404, %s406
      %p413 = scmp.eq.s32.totalorder %s49, 1
      %p414 = por %p412, %p413
      %p415 = scmp.ne.s32.totalorder %s406, %s407
      %p416 = scmp.eq.s32.totalorder %s49, 0
      %p417 = por %p415, %p416
      %p418 = scmp.ne.s32.totalorder %s406, %s407
      %p419 = scmp.eq.s32.totalorder %s50, 1
      %p420 = por %p418, %p419
      %p422 = scmp.ne.s32.totalorder %s407, %s421
      %p423 = scmp.eq.s32.totalorder %s50, 0
      %p424 = por %p422, %p423
      %s426 = sadd.s32 %s425, 1
      %p429 = scmp.eq.s32.totalorder %s44, 1
      %p430 = scmp.ne.s32.totalorder %s425, %s427
      %p431 = scmp.eq.s32.totalorder %s44, 0
      %p432 = por %p430, %p431
      %p433 = scmp.ne.s32.totalorder %s425, %s427
      %p434 = scmp.eq.s32.totalorder %s49, 1
      %p435 = por %p433, %p434
      %p436 = scmp.ne.s32.totalorder %s427, %s428
      %p437 = scmp.eq.s32.totalorder %s49, 0
      %p438 = por %p436, %p437
      %p439 = scmp.ne.s32.totalorder %s427, %s428
      %p440 = scmp.eq.s32.totalorder %s50, 1
      %p441 = por %p439, %p440
      %p443 = scmp.ne.s32.totalorder %s428, %s442
      %p444 = scmp.eq.s32.totalorder %s50, 0
      %p445 = por %p443, %p444
      %s447 = sadd.s32 %s446, 1
      %p450 = scmp.eq.s32.totalorder %s44, 1
      %p451 = scmp.ne.s32.totalorder %s446, %s448
      %p452 = scmp.eq.s32.totalorder %s44, 0
      %p453 = por %p451, %p452
      %p454 = scmp.ne.s32.totalorder %s446, %s448
      %p455 = scmp.eq.s32.totalorder %s49, 1
      %p456 = por %p454, %p455
      %p457 = scmp.ne.s32.totalorder %s448, %s449
      %p458 = scmp.eq.s32.totalorder %s49, 0
      %p459 = por %p457, %p458
      %p460 = scmp.ne.s32.totalorder %s448, %s449
      %p461 = scmp.eq.s32.totalorder %s50, 1
      %p462 = por %p460, %p461
      %p464 = scmp.ne.s32.totalorder %s449, %s463
      %p465 = scmp.eq.s32.totalorder %s50, 0
      %p466 = por %p464, %p465
      %s467 = ssub.s32 %s51, %s70
      %s468 = ssub.s32 %s52, %s66
      %s469 = sor.u32 %s467, %s468
      %p470 = scmp.eq.s32.totalorder %s469, 0
      %s472 = sadd.s32 %s471, 1
      %s473 = scalar_select %p470, %s471, %s472
      %p476 = pneg %p470
      %p477 = scmp.eq.s32.totalorder %s44, 1
      %p478 = por %p476, %p477
      %p479 = scmp.ne.s32.totalorder %s471, %s474
      %p480 = scmp.eq.s32.totalorder %s44, 0
      %p481 = por %p479, %p480
      %p482 = scmp.ne.s32.totalorder %s471, %s474
      %p483 = scmp.eq.s32.totalorder %s49, 1
      %p484 = por %p482, %p483
      %p485 = scmp.ne.s32.totalorder %s474, %s475
      %p486 = scmp.eq.s32.totalorder %s49, 0
      %p487 = por %p485, %p486
      %p488 = scmp.ne.s32.totalorder %s474, %s475
      %p489 = scmp.eq.s32.totalorder %s50, 1
      %p490 = por %p488, %p489
      %p492 = scmp.ne.s32.totalorder %s475, %s491
      %p493 = scmp.eq.s32.totalorder %s50, 0
      %p494 = por %p492, %p493
      %p495 = scmp.le.s32.totalorder 1, %s44
      %p496 = scmp.lt.s32.totalorder %s44, 3
      %p497 = pnand %p495, %p496
      %p498 = pneg %p497
      // Predicated region
      $region9: #{multi_cond_equi_update.1} parent=5 // pred_check
        _
      $region10: #{multi_cond_equi_update.1} parent=5 // pred_check_branch
        %500 = sbr.rel (%p497) target = $region12
      $region11: #{multi_cond_equi_update.1} parent=5 // pred_region
        %s501 = ssub.s32 %s44, 1
        // Predicated region
        $region13: #{multi_cond_equi_update.1} parent=11 // pred_check
          %p502 = pneg %p312
        $region14: #{multi_cond_equi_update.1} parent=11 // pred_check_branch
          %504 = sbr.rel (%p502) target = $region16
        $region15: #{multi_cond_equi_update.1} parent=11 // pred_region
          %s506 = ssub.s32 512, 512
          %507 = vsyncadd [#allocation17], %s506
          %s508 = sshll.u32 [#allocation18], 4
          %s509 = int_to_ptr.vmem [resolvable:$true] %s508
          %514 = dma.hbm_to_vmem [thread:$0]  %s8, 512, %s509, [#allocation17], 128, 128, 8
        $region16: #{multi_cond_equi_update.1} parent=11 // pred_fallthru
          _
        // Predicated region
        $region17: #{multi_cond_equi_update.1} parent=11 // pred_check
          %p515 = pneg %p333
        $region18: #{multi_cond_equi_update.1} parent=11 // pred_check_branch
          %517 = sbr.rel (%p515) target = $region20
        $region19: #{multi_cond_equi_update.1} parent=11 // pred_region
          %s519 = ssub.s32 512, 512
          %520 = vsyncadd [#allocation20], %s519
          %s521 = sshll.u32 [#allocation19], 4
          %s522 = int_to_ptr.vmem [resolvable:$true] %s521
          %527 = dma.hbm_to_vmem [thread:$0]  %s9, 512, %s522, [#allocation20], 128, 128, 8
        $region20: #{multi_cond_equi_update.1} parent=11 // pred_fallthru
          _
        // Predicated region
        $region21: #{multi_cond_equi_update.1} parent=11 // pred_check
          %p528 = pneg %p354
        $region22: #{multi_cond_equi_update.1} parent=11 // pred_check_branch
          %530 = sbr.rel (%p528) target = $region24
        $region23: #{multi_cond_equi_update.1} parent=11 // pred_region
          %s532 = ssub.s32 256, 256
          %533 = vsyncadd [#allocation20], %s532
          %s534 = sshll.u32 [#allocation21], 4
          %s535 = int_to_ptr.vmem [resolvable:$true] %s534
          %540 = dma.hbm_to_vmem [thread:$0]  %s10, 256, %s535, [#allocation20], 128, 128, 8
        $region24: #{multi_cond_equi_update.1} parent=11 // pred_fallthru
          _
        // Predicated region
        $region25: #{multi_cond_equi_update.1} parent=11 // pred_check
          %p541 = pneg %p375
        $region26: #{multi_cond_equi_update.1} parent=11 // pred_check_branch
          %543 = sbr.rel (%p541) target = $region28
        $region27: #{multi_cond_equi_update.1} parent=11 // pred_region
          %s545 = ssub.s32 16, 16
          %546 = vsyncadd [#allocation23], %s545
          %s548 = sshll.u32 [#allocation22], 4
          %s549 = int_to_ptr.vmem [resolvable:$true] %s548
          %551 = dma.hbm_to_vmem [thread:$0]  %s11, 16, %s549, [#allocation23]
        $region28: #{multi_cond_equi_update.1} parent=11 // pred_fallthru
          _
        // Predicated region
        $region29: #{multi_cond_equi_update.1} parent=11 // pred_check
          %p552 = pneg %p396
        $region30: #{multi_cond_equi_update.1} parent=11 // pred_check_branch
          %554 = sbr.rel (%p552) target = $region32
        $region31: #{multi_cond_equi_update.1} parent=11 // pred_region
          %s556 = ssub.s32 256, 256
          %557 = vsyncadd [#allocation23], %s556
          %s558 = sshll.u32 [#allocation24], 4
          %s559 = int_to_ptr.vmem [resolvable:$true] %s558
          %564 = dma.hbm_to_vmem [thread:$0]  %s12, 256, %s559, [#allocation23], 64, 64, 4
        $region32: #{multi_cond_equi_update.1} parent=11 // pred_fallthru
          _
        // Predicated region
        $region33: #{multi_cond_equi_update.1} parent=11 // pred_check
          %p565 = pneg %p417
        $region34: #{multi_cond_equi_update.1} parent=11 // pred_check_branch
          %567 = sbr.rel (%p565) target = $region36
        $region35: #{multi_cond_equi_update.1} parent=11 // pred_region
          %s569 = ssub.s32 16, 16
          %570 = vsyncadd [#allocation26], %s569
          %s572 = sshll.u32 [#allocation25], 4
          %s573 = int_to_ptr.vmem [resolvable:$true] %s572
          %575 = dma.hbm_to_vmem [thread:$0]  %s13, 16, %s573, [#allocation26]
        $region36: #{multi_cond_equi_update.1} parent=11 // pred_fallthru
          _
        // Predicated region
        $region37: #{multi_cond_equi_update.1} parent=11 // pred_check
          %p576 = pneg %p438
        $region38: #{multi_cond_equi_update.1} parent=11 // pred_check_branch
          %578 = sbr.rel (%p576) target = $region40
        $region39: #{multi_cond_equi_update.1} parent=11 // pred_region
          %s580 = ssub.s32 256, 256
          %581 = vsyncadd [#allocation26], %s580
          %s582 = sshll.u32 [#allocation27], 4
          %s583 = int_to_ptr.vmem [resolvable:$true] %s582
          %588 = dma.hbm_to_vmem [thread:$0]  %s14, 256, %s583, [#allocation26], 64, 64, 4
        $region40: #{multi_cond_equi_update.1} parent=11 // pred_fallthru
          _
        // Predicated region
        $region41: #{multi_cond_equi_update.1} parent=11 // pred_check
          %p589 = pneg %p459
        $region42: #{multi_cond_equi_update.1} parent=11 // pred_check_branch
          %591 = sbr.rel (%p589) target = $region44
        $region43: #{multi_cond_equi_update.1} parent=11 // pred_region
          _
        $region44: #{multi_cond_equi_update.1} parent=11 // pred_fallthru
          _
      $region12: #{multi_cond_equi_update.1} parent=5 // pred_fallthru
        _
      %p592 = scmp.lt.s32.totalorder %s44, 2
      // Predicated region
      $region45: #{multi_cond_equi_update.1} parent=5 // pred_check
        %p593 = pneg %p592
      $region46: #{multi_cond_equi_update.1} parent=5 // pred_check_branch
        %595 = sbr.rel (%p593) target = $region48
      $region47: #{multi_cond_equi_update.1} parent=5 // pred_region
        // Predicated region
        $region49: #{multi_cond_equi_update.1} parent=47 // pred_check
          %p596 = pneg %p83
        $region50: #{multi_cond_equi_update.1} parent=47 // pred_check_branch
          %598 = sbr.rel (%p596) target = $region52
        $region51: #{multi_cond_equi_update.1} parent=47 // pred_region
          %s599 = sand.u32 %s73, 1
          %s600 = scalar_lea.sflag [#allocation5], %s599
          %s601 = sand.u32 %s73, 1
          %s602 = scalar_lea.vmem [#allocation4], %s601
          %s604 = ssub.s32 16, 16
          %605 = vsyncadd %s600, %s604
          %s606 = smul.addr %s51, 16
          %s607 = scalar_lea.hbm %s0, %s606
          %s609 = sshll.u32 %s602, 4
          %s610 = int_to_ptr.vmem [resolvable:$true] %s609
          %612 = dma.hbm_to_vmem [thread:$0]  %s607, 16, %s610, %s600
        $region52: #{multi_cond_equi_update.1} parent=47 // pred_fallthru
          _
        // Predicated region
        $region53: #{multi_cond_equi_update.1} parent=47 // pred_check
          %p613 = pneg %p111
        $region54: #{multi_cond_equi_update.1} parent=47 // pred_check_branch
          %615 = sbr.rel (%p613) target = $region56
        $region55: #{multi_cond_equi_update.1} parent=47 // pred_region
          %s616 = sand.u32 %s44, 1
          %s617 = scalar_lea.sflag [#allocation8], %s616
          %s618 = sand.u32 %s101, 1
          %s619 = smul.addr %s618, 8
          %s620 = scalar_lea.vmem [#allocation7], %s619
          %s622 = ssub.s32 128, 128
          %623 = vsyncadd %s617, %s622
          %s624 = sadd.s32 %s52, %s51
          %s625 = smul.addr %s624, 128
          %s626 = scalar_lea.hbm %s1, %s625
          %s628 = sshll.u32 %s620, 4
          %s629 = int_to_ptr.vmem [resolvable:$true] %s628
          %631 = dma.hbm_to_vmem [thread:$0]  %s626, 128, %s629, %s617
        $region56: #{multi_cond_equi_update.1} parent=47 // pred_fallthru
          _
        // Predicated region
        $region57: #{multi_cond_equi_update.1} parent=47 // pred_check
          %p632 = pneg %p139
        $region58: #{multi_cond_equi_update.1} parent=47 // pred_check_branch
          %634 = sbr.rel (%p632) target = $region60
        $region59: #{multi_cond_equi_update.1} parent=47 // pred_region
          %s635 = sand.u32 %s44, 1
          %s636 = scalar_lea.sflag [#allocation8], %s635
          %s637 = sand.u32 %s129, 1
          %s638 = smul.addr %s637, 8
          %s639 = scalar_lea.vmem [#allocation9], %s638
          %s641 = ssub.s32 128, 128
          %642 = vsyncadd %s636, %s641
          %s643 = sadd.s32 %s53, %s51
          %s644 = smul.addr %s643, 128
          %s645 = scalar_lea.hbm %s2, %s644
          %s647 = sshll.u32 %s639, 4
          %s648 = int_to_ptr.vmem [resolvable:$true] %s647
          %650 = dma.hbm_to_vmem [thread:$0]  %s645, 128, %s648, %s636
        $region60: #{multi_cond_equi_update.1} parent=47 // pred_fallthru
          _
        // Predicated region
        $region61: #{multi_cond_equi_update.1} parent=47 // pred_check
          %p651 = pneg %p167
        $region62: #{multi_cond_equi_update.1} parent=47 // pred_check_branch
          %653 = sbr.rel (%p651) target = $region64
        $region63: #{multi_cond_equi_update.1} parent=47 // pred_region
          %s654 = sand.u32 %s44, 1
          %s655 = scalar_lea.sflag [#allocation11], %s654
          %s656 = sand.u32 %s157, 1
          %s657 = smul.addr %s656, 4
          %s658 = scalar_lea.vmem [#allocation10], %s657
          %s660 = ssub.s32 64, 64
          %661 = vsyncadd %s655, %s660
          %s662 = sadd.s32 %s52, %s51
          %s663 = smul.addr %s662, 64
          %s664 = scalar_lea.hbm %s3, %s663
          %s666 = sshll.u32 %s658, 4
          %s667 = int_to_ptr.vmem [resolvable:$true] %s666
          %669 = dma.hbm_to_vmem [thread:$0]  %s664, 64, %s667, %s655
        $region64: #{multi_cond_equi_update.1} parent=47 // pred_fallthru
          _
        // Predicated region
        $region65: #{multi_cond_equi_update.1} parent=47 // pred_check
          %p670 = pneg %p195
        $region66: #{multi_cond_equi_update.1} parent=47 // pred_check_branch
          %672 = sbr.rel (%p670) target = $region68
        $region67: #{multi_cond_equi_update.1} parent=47 // pred_region
          %s673 = sand.u32 %s44, 1
          %s674 = scalar_lea.sflag [#allocation11], %s673
          %s675 = sand.u32 %s185, 1
          %s676 = smul.addr %s675, 4
          %s677 = scalar_lea.vmem [#allocation12], %s676
          %s679 = ssub.s32 64, 64
          %680 = vsyncadd %s674, %s679
          %s681 = sadd.s32 %s53, %s51
          %s682 = smul.addr %s681, 64
          %s683 = scalar_lea.hbm %s4, %s682
          %s685 = sshll.u32 %s677, 4
          %s686 = int_to_ptr.vmem [resolvable:$true] %s685
          %688 = dma.hbm_to_vmem [thread:$0]  %s683, 64, %s686, %s674
        $region68: #{multi_cond_equi_update.1} parent=47 // pred_fallthru
          _
        // Predicated region
        $region69: #{multi_cond_equi_update.1} parent=47 // pred_check
          %p689 = pneg %p225
        $region70: #{multi_cond_equi_update.1} parent=47 // pred_check_branch
          %691 = sbr.rel (%p689) target = $region72
        $region71: #{multi_cond_equi_update.1} parent=47 // pred_region
          %s692 = sand.u32 %s44, 1
          %s693 = scalar_lea.sflag [#allocation14], %s692
          %s694 = sand.u32 %s215, 1
          %s695 = smul.addr %s694, 36
          %s696 = scalar_lea.vmem [#allocation13], %s695
          %s698 = ssub.s32 576, 576
          %699 = vsyncadd %s693, %s698
          %s700 = sadd.s32 %s53, %s52
          %s701 = smul.addr %s51, 9
          %s702 = sadd.s32 %s700, %s701
          %s703 = smul.addr %s702, 64
          %s704 = scalar_lea.hbm %s5, %s703
          %s705 = sshll.u32 %s696, 4
          %s706 = int_to_ptr.vmem [resolvable:$true] %s705
          %711 = dma.hbm_to_vmem [thread:$0]  %s704, 576, %s706, %s693, 64, 64, 4
        $region72: #{multi_cond_equi_update.1} parent=47 // pred_fallthru
          _
        // Predicated region
        $region73: #{multi_cond_equi_update.1} parent=47 // pred_check
          %p712 = pneg %p255
        $region74: #{multi_cond_equi_update.1} parent=47 // pred_check_branch
          %714 = sbr.rel (%p712) target = $region76
        $region75: #{multi_cond_equi_update.1} parent=47 // pred_region
          %s715 = sand.u32 %s44, 1
          %s716 = scalar_lea.sflag [#allocation14], %s715
          %s717 = sand.u32 %s245, 1
          %s718 = smul.addr %s717, 4
          %s719 = scalar_lea.vmem [#allocation15], %s718
          %s721 = ssub.s32 64, 64
          %722 = vsyncadd %s716, %s721
          %s723 = sadd.s32 %s53, %s52
          %s724 = sadd.s32 %s723, %s51
          %s725 = smul.addr %s724, 64
          %s726 = scalar_lea.hbm %s6, %s725
          %s728 = sshll.u32 %s719, 4
          %s729 = int_to_ptr.vmem [resolvable:$true] %s728
          %731 = dma.hbm_to_vmem [thread:$0]  %s726, 64, %s729, %s716
        $region76: #{multi_cond_equi_update.1} parent=47 // pred_fallthru
          _
        // Predicated region
        $region77: #{multi_cond_equi_update.1} parent=47 // pred_check
          %p732 = pneg %p285
        $region78: #{multi_cond_equi_update.1} parent=47 // pred_check_branch
          %734 = sbr.rel (%p732) target = $region80
        $region79: #{multi_cond_equi_update.1} parent=47 // pred_region
          %s735 = sand.u32 %s44, 1
          %s736 = scalar_lea.sflag [#allocation17], %s735
          %s737 = sand.u32 %s275, 1
          %s738 = smul.addr %s737, 8
          %s739 = scalar_lea.vmem [#allocation16], %s738
          %s741 = ssub.s32 128, 128
          %742 = vsyncadd %s736, %s741
          %s743 = sadd.s32 %s53, %s52
          %s744 = smul.addr %s51, 2
          %s745 = sadd.s32 %s743, %s744
          %s746 = smul.addr %s745, 64
          %s747 = scalar_lea.hbm %s7, %s746
          %s748 = sshll.u32 %s739, 4
          %s749 = int_to_ptr.vmem [resolvable:$true] %s748
          %754 = dma.hbm_to_vmem [thread:$0]  %s747, 128, %s749, %s736, 64, 64, 4
        $region80: #{multi_cond_equi_update.1} parent=47 // pred_fallthru
          _
      $region48: #{multi_cond_equi_update.1} parent=5 // pred_fallthru
        _
      %p755 = scmp.le.s32.totalorder 1, %s44
      %p756 = scmp.lt.s32.totalorder %s44, 3
      %p757 = pnand %p755, %p756
      %p758 = pneg %p757
      // Predicated region
      $region81: #{multi_cond_equi_update.1} parent=5 // pred_check
        _
      $region82: #{multi_cond_equi_update.1} parent=5 // pred_check_branch
        %760 = sbr.rel (%p757) target = $region84
      $region83: #{multi_cond_equi_update.1} parent=5 // pred_region
        %s761 = ssub.s32 %s44, 1
        %s762 = sand.u32 %s76, 1
        %s763 = scalar_lea.sflag [#allocation5], %s762
        %s764 = sand.u32 %s76, 1
        %s765 = scalar_lea.vmem [#allocation4], %s764
        // Predicated region
        $region85: #{multi_cond_equi_update.1} parent=83 // pred_check
          %p766 = pneg %p89
        $region86: #{multi_cond_equi_update.1} parent=83 // pred_check_branch
          %768 = sbr.rel (%p766) target = $region88
        $region87: #{multi_cond_equi_update.1} parent=83 // pred_region
          %769 = dma.done %s763, 16
        $region88: #{multi_cond_equi_update.1} parent=83 // pred_fallthru
          _
        %s770 = sand.u32 %s49, 1
        %s771 = scalar_lea.sflag [#allocation8], %s770
        %s772 = sand.u32 %s104, 1
        %s773 = smul.addr %s772, 8
        %s774 = scalar_lea.vmem [#allocation7], %s773
        // Predicated region
        $region89: #{multi_cond_equi_update.1} parent=83 // pred_check
          %p775 = pneg %p117
        $region90: #{multi_cond_equi_update.1} parent=83 // pred_check_branch
          %777 = sbr.rel (%p775) target = $region92
        $region91: #{multi_cond_equi_update.1} parent=83 // pred_region
          %778 = dma.done %s771, 128
        $region92: #{multi_cond_equi_update.1} parent=83 // pred_fallthru
          _
        %s779 = sand.u32 %s49, 1
        %s780 = scalar_lea.sflag [#allocation8], %s779
        %s781 = sand.u32 %s132, 1
        %s782 = smul.addr %s781, 8
        %s783 = scalar_lea.vmem [#allocation9], %s782
        // Predicated region
        $region93: #{multi_cond_equi_update.1} parent=83 // pred_check
          %p784 = pneg %p145
        $region94: #{multi_cond_equi_update.1} parent=83 // pred_check_branch
          %786 = sbr.rel (%p784) target = $region96
        $region95: #{multi_cond_equi_update.1} parent=83 // pred_region
          %787 = dma.done %s780, 128
        $region96: #{multi_cond_equi_update.1} parent=83 // pred_fallthru
          _
        %s788 = sand.u32 %s49, 1
        %s789 = scalar_lea.sflag [#allocation11], %s788
        %s790 = sand.u32 %s160, 1
        %s791 = smul.addr %s790, 4
        %s792 = scalar_lea.vmem [#allocation10], %s791
        // Predicated region
        $region97: #{multi_cond_equi_update.1} parent=83 // pred_check
          %p793 = pneg %p173
        $region98: #{multi_cond_equi_update.1} parent=83 // pred_check_branch
          %795 = sbr.rel (%p793) target = $region100
        $region99: #{multi_cond_equi_update.1} parent=83 // pred_region
          %796 = dma.done %s789, 64
        $region100: #{multi_cond_equi_update.1} parent=83 // pred_fallthru
          _
        %s797 = sand.u32 %s49, 1
        %s798 = scalar_lea.sflag [#allocation11], %s797
        %s799 = sand.u32 %s188, 1
        %s800 = smul.addr %s799, 4
        %s801 = scalar_lea.vmem [#allocation12], %s800
        // Predicated region
        $region101: #{multi_cond_equi_update.1} parent=83 // pred_check
          %p802 = pneg %p201
        $region102: #{multi_cond_equi_update.1} parent=83 // pred_check_branch
          %804 = sbr.rel (%p802) target = $region104
        $region103: #{multi_cond_equi_update.1} parent=83 // pred_region
          %805 = dma.done %s798, 64
        $region104: #{multi_cond_equi_update.1} parent=83 // pred_fallthru
          _
        %s806 = sand.u32 %s49, 1
        %s807 = scalar_lea.sflag [#allocation14], %s806
        %s808 = sand.u32 %s218, 1
        %s809 = smul.addr %s808, 36
        %s810 = scalar_lea.vmem [#allocation13], %s809
        // Predicated region
        $region105: #{multi_cond_equi_update.1} parent=83 // pred_check
          %p811 = pneg %p231
        $region106: #{multi_cond_equi_update.1} parent=83 // pred_check_branch
          %813 = sbr.rel (%p811) target = $region108
        $region107: #{multi_cond_equi_update.1} parent=83 // pred_region
          %814 = dma.done %s807, 576
        $region108: #{multi_cond_equi_update.1} parent=83 // pred_fallthru
          _
        %s815 = sand.u32 %s49, 1
        %s816 = scalar_lea.sflag [#allocation14], %s815
        %s817 = sand.u32 %s248, 1
        %s818 = smul.addr %s817, 4
        %s819 = scalar_lea.vmem [#allocation15], %s818
        // Predicated region
        $region109: #{multi_cond_equi_update.1} parent=83 // pred_check
          %p820 = pneg %p261
        $region110: #{multi_cond_equi_update.1} parent=83 // pred_check_branch
          %822 = sbr.rel (%p820) target = $region112
        $region111: #{multi_cond_equi_update.1} parent=83 // pred_region
          %823 = dma.done %s816, 64
        $region112: #{multi_cond_equi_update.1} parent=83 // pred_fallthru
          _
        %s824 = sand.u32 %s49, 1
        %s825 = scalar_lea.sflag [#allocation17], %s824
        %s826 = sand.u32 %s278, 1
        %s827 = smul.addr %s826, 8
        %s828 = scalar_lea.vmem [#allocation16], %s827
        // Predicated region
        $region113: #{multi_cond_equi_update.1} parent=83 // pred_check
          %p829 = pneg %p291
        $region114: #{multi_cond_equi_update.1} parent=83 // pred_check_branch
          %831 = sbr.rel (%p829) target = $region116
        $region115: #{multi_cond_equi_update.1} parent=83 // pred_region
          %832 = dma.done %s825, 128
        $region116: #{multi_cond_equi_update.1} parent=83 // pred_fallthru
          _
        // Predicated region
        $region117: #{multi_cond_equi_update.1} parent=83 // pred_check
          %p833 = pneg %p312
        $region118: #{multi_cond_equi_update.1} parent=83 // pred_check_branch
          %835 = sbr.rel (%p833) target = $region120
        $region119: #{multi_cond_equi_update.1} parent=83 // pred_region
          %836 = dma.done [#allocation17], 512
        $region120: #{multi_cond_equi_update.1} parent=83 // pred_fallthru
          _
        // Predicated region
        $region121: #{multi_cond_equi_update.1} parent=83 // pred_check
          %p837 = pneg %p333
        $region122: #{multi_cond_equi_update.1} parent=83 // pred_check_branch
          %839 = sbr.rel (%p837) target = $region124
        $region123: #{multi_cond_equi_update.1} parent=83 // pred_region
          %840 = dma.done [#allocation20], 512
        $region124: #{multi_cond_equi_update.1} parent=83 // pred_fallthru
          _
        // Predicated region
        $region125: #{multi_cond_equi_update.1} parent=83 // pred_check
          %p841 = pneg %p354
        $region126: #{multi_cond_equi_update.1} parent=83 // pred_check_branch
          %843 = sbr.rel (%p841) target = $region128
        $region127: #{multi_cond_equi_update.1} parent=83 // pred_region
          %844 = dma.done [#allocation20], 256
        $region128: #{multi_cond_equi_update.1} parent=83 // pred_fallthru
          _
        // Predicated region
        $region129: #{multi_cond_equi_update.1} parent=83 // pred_check
          %p845 = pneg %p375
        $region130: #{multi_cond_equi_update.1} parent=83 // pred_check_branch
          %847 = sbr.rel (%p845) target = $region132
        $region131: #{multi_cond_equi_update.1} parent=83 // pred_region
          %848 = dma.done [#allocation23], 16
        $region132: #{multi_cond_equi_update.1} parent=83 // pred_fallthru
          _
        // Predicated region
        $region133: #{multi_cond_equi_update.1} parent=83 // pred_check
          %p849 = pneg %p396
        $region134: #{multi_cond_equi_update.1} parent=83 // pred_check_branch
          %851 = sbr.rel (%p849) target = $region136
        $region135: #{multi_cond_equi_update.1} parent=83 // pred_region
          %852 = dma.done [#allocation23], 256
        $region136: #{multi_cond_equi_update.1} parent=83 // pred_fallthru
          _
        // Predicated region
        $region137: #{multi_cond_equi_update.1} parent=83 // pred_check
          %p853 = pneg %p417
        $region138: #{multi_cond_equi_update.1} parent=83 // pred_check_branch
          %855 = sbr.rel (%p853) target = $region140
        $region139: #{multi_cond_equi_update.1} parent=83 // pred_region
          %856 = dma.done [#allocation26], 16
        $region140: #{multi_cond_equi_update.1} parent=83 // pred_fallthru
          _
        // Predicated region
        $region141: #{multi_cond_equi_update.1} parent=83 // pred_check
          %p857 = pneg %p438
        $region142: #{multi_cond_equi_update.1} parent=83 // pred_check_branch
          %859 = sbr.rel (%p857) target = $region144
        $region143: #{multi_cond_equi_update.1} parent=83 // pred_region
          %860 = dma.done [#allocation26], 256
        $region144: #{multi_cond_equi_update.1} parent=83 // pred_fallthru
          _
        %s861 = sand.u32 %s76, 1
        %s862 = scalar_lea.sflag [#allocation5], %s861
        %s863 = sand.u32 %s76, 1
        %s864 = scalar_lea.vmem [#allocation4], %s863
        %p865 = pneg %p89
        %p866 = pneg %p86
        %s867 = sand.u32 %s49, 1
        %s868 = scalar_lea.sflag [#allocation8], %s867
        %s869 = sand.u32 %s104, 1
        %s870 = smul.addr %s869, 8
        %s871 = scalar_lea.vmem [#allocation7], %s870
        %p872 = pneg %p117
        %p873 = pneg %p114
        %s874 = sand.u32 %s49, 1
        %s875 = scalar_lea.sflag [#allocation8], %s874
        %s876 = sand.u32 %s132, 1
        %s877 = smul.addr %s876, 8
        %s878 = scalar_lea.vmem [#allocation9], %s877
        %p879 = pneg %p145
        %p880 = pneg %p142
        %s881 = sand.u32 %s49, 1
        %s882 = scalar_lea.sflag [#allocation11], %s881
        %s883 = sand.u32 %s160, 1
        %s884 = smul.addr %s883, 4
        %s885 = scalar_lea.vmem [#allocation10], %s884
        %p886 = pneg %p173
        %p887 = pneg %p170
        %s888 = sand.u32 %s49, 1
        %s889 = scalar_lea.sflag [#allocation11], %s888
        %s890 = sand.u32 %s188, 1
        %s891 = smul.addr %s890, 4
        %s892 = scalar_lea.vmem [#allocation12], %s891
        %p893 = pneg %p201
        %p894 = pneg %p198
        %s895 = sand.u32 %s49, 1
        %s896 = scalar_lea.sflag [#allocation14], %s895
        %s897 = sand.u32 %s218, 1
        %s898 = smul.addr %s897, 36
        %s899 = scalar_lea.vmem [#allocation13], %s898
        %p900 = pneg %p231
        %p901 = pneg %p228
        %s902 = sand.u32 %s49, 1
        %s903 = scalar_lea.sflag [#allocation14], %s902
        %s904 = sand.u32 %s248, 1
        %s905 = smul.addr %s904, 4
        %s906 = scalar_lea.vmem [#allocation15], %s905
        %p907 = pneg %p261
        %p908 = pneg %p258
        %s909 = sand.u32 %s49, 1
        %s910 = scalar_lea.sflag [#allocation17], %s909
        %s911 = sand.u32 %s278, 1
        %s912 = smul.addr %s911, 8
        %s913 = scalar_lea.vmem [#allocation16], %s912
        %p914 = pneg %p291
        %p915 = pneg %p288
        %p916 = pneg %p312
        %p917 = pneg %p309
        %p918 = pneg %p333
        %p919 = pneg %p330
        %p920 = pneg %p354
        %p921 = pneg %p351
        %p922 = pneg %p375
        %p923 = pneg %p372
        %p924 = pneg %p396
        %p925 = pneg %p393
        %p926 = pneg %p417
        %p927 = pneg %p414
        %p928 = pneg %p438
        %p929 = pneg %p435
        %p930 = pneg %p459
        %p931 = pneg %p456
        %p932 = pneg %p487
        %p933 = pneg %p484
        %s934 = sand.u32 %s474, 1
        %s935 = scalar_lea.sflag [#allocation6], %s934
        %s936 = sand.u32 %s474, 1
        %s937 = smul.addr %s936, 4
        %s938 = scalar_lea.vmem [#allocation28], %s937
        %p940 = scmp.eq.s32.totalorder %s56, 0
        // Predicated region
        $region145: #{multi_cond_equi_update.1} parent=83 // pred_check
          %p941 = pneg %p940
        $region146: #{multi_cond_equi_update.1} parent=83 // pred_check_branch
          %943 = sbr.rel (%p941) target = $region148
        $region147: #{multi_cond_equi_update.1} parent=83 // pred_region
          %vm944 = vcmask 59392
          %945 = vst.msk [vmem:[#allocation2] sm:$0x7] %vm944, 0.0
        $region148: #{multi_cond_equi_update.1} parent=83 // pred_fallthru
          _
        %v946 = vld [vmem:[%s765] sm:$0x1]
        %v947 = vld [vmem:[%s774] sm:$0xff]
        %v948 = vld [vmem:[#allocation18] sm:$0xff]
        %v949 = vld [vmem:[#allocation18 + $0x8] sm:$0xff]
        %v950 = vld [vmem:[#allocation18 + $0x10] sm:$0xff]
        %v951 = vld [vmem:[#allocation18 + $0x18] sm:$0xff]
        %vm952 = vcmask 261120
        %v954 = vsel %vm952, %v947, 0
        %956 = vmatprep.subr.mxu0 0.0
        %957 = vmatpush1.msra.mxu0 %v948
        %958 = vmatprep.subr.mxu0 0.0
        %959 = vmatpush1.msra.mxu0 %v949
        %960 = vmatprep.subr.mxu0 0.0
        %961 = vmatpush1.msra.mxu0 %v950
        %962 = vmatprep.subr.mxu0 0.0
        %963 = vmatpush1.msra.mxu0 %v951
        %964 = vmatprep.subr.mxu0 0.0
        %965 = vmatpush1.msra.mxu0 0.0
        %966 = vmatprep.subr.mxu0 0.0
        %967 = vmatpush1.msra.mxu0 0.0
        %968 = vmatprep.subr.mxu0 0.0
        %969 = vmatpush1.msra.mxu0 0.0
        %970 = vmatprep.subr.mxu0 0.0
        %971 = vmatpush1.msra.mxu0 0.0
        %972 = vmatprep.subr.mxu0 0.0
        %973 = vmatpush1.msra.mxu0 0.0
        %974 = vmatprep.subr.mxu0 0.0
        %975 = vmatpush1.msra.mxu0 0.0
        %976 = vmatprep.subr.mxu0 0.0
        %977 = vmatpush1.msra.mxu0 0.0
        %978 = vmatprep.subr.mxu0 0.0
        %979 = vmatpush1.msra.mxu0 0.0
        %980 = vmatprep.subr.mxu0 0.0
        %981 = vmatpush1.msra.mxu0 0.0
        %982 = vmatprep.subr.mxu0 0.0
        %983 = vmatpush1.msra.mxu0 0.0
        %984 = vmatprep.subr.mxu0 0.0
        %985 = vmatpush1.msra.mxu0 0.0
        %986 = vmatprep.subr.mxu0 0.0
        %987 = vmatpush1.msra.mxu0 0.0
        %988 = vmatprep.subr.mxu0 0.0
        %989 = vmatpush1.msra.mxu0 0.0
        %990 = vmatprep.subr.mxu0 0.0
        %991 = vmatpush1.msra.mxu0 0.0
        %992 = vmatprep.subr.mxu0 0.0
        %993 = vmatpush1.msra.mxu0 0.0
        %994 = vmatprep.subr.mxu0 0.0
        %995 = vmatpush1.msra.mxu0 0.0
        %996 = vmatprep.subr.mxu0 0.0
        %997 = vmatpush1.msra.mxu0 0.0
        %998 = vmatprep.subr.mxu0 0.0
        %999 = vmatpush1.msra.mxu0 0.0
        %1000 = vmatprep.subr.mxu0 0.0
        %1001 = vmatpush1.msra.mxu0 0.0
        %1002 = vmatprep.subr.mxu0 0.0
        %1003 = vmatpush1.msra.mxu0 0.0
        %1004 = vmatprep.subr.mxu0 0.0
        %1005 = vmatpush1.msra.mxu0 0.0
        %1006 = vmatprep.subr.mxu0 0.0
        %1007 = vmatpush1.msra.mxu0 0.0
        %1008 = vmatprep.subr.mxu0 0.0
        %1009 = vmatpush1.msra.mxu0 0.0
        %1010 = vmatprep.subr.mxu0 0.0
        %1011 = vmatpush1.msra.mxu0 0.0
        %1012 = vmatprep.subr.mxu0 0.0
        %1013 = vmatpush1.msra.mxu0 0.0
        %1014 = vmatprep.subr.mxu0 0.0
        %1015 = vmatpush1.msra.mxu0 0.0
        %1016 = vmatprep.subr.mxu0 0.0
        %1017 = vmatpush1.msra.mxu0 0.0
        %1018 = vmatprep.subr.mxu0 0.0
        %1019 = vmatpush1.msra.mxu0 0.0
        %1020 = vmatprep.mubr.f32.mxu0 0.0
        %1021 = vmatmul.mubr.f32.gmra.mrb[0].mxu0 %v954
        %v1022 = vpop.f32.mrb[0].mxu0
        %v1023 = vadd.f32 0.0, %v1022
        %v1024 = vpop.f32.mrb[0].mxu0
        %1025 = vdwg.mxu0
        %v1026 = vld [vmem:[%s783] sm:$0xff]
        %v1027 = vld [vmem:[#allocation19] sm:$0xff]
        %v1028 = vld [vmem:[#allocation19 + $0x8] sm:$0xff]
        %v1029 = vld [vmem:[#allocation19 + $0x10] sm:$0xff]
        %v1030 = vld [vmem:[#allocation19 + $0x18] sm:$0xff]
        %v1032 = vsel %vm952, %v1026, 0
        %1034 = vmatprep.subr.mxu0 0.0
        %1035 = vmatpush1.msra.mxu0 %v1027
        %1036 = vmatprep.subr.mxu0 0.0
        %1037 = vmatpush1.msra.mxu0 %v1028
        %1038 = vmatprep.subr.mxu0 0.0
        %1039 = vmatpush1.msra.mxu0 %v1029
        %1040 = vmatprep.subr.mxu0 0.0
        %1041 = vmatpush1.msra.mxu0 %v1030
        %1042 = vmatprep.subr.mxu0 0.0
        %1043 = vmatpush1.msra.mxu0 0.0
        %1044 = vmatprep.subr.mxu0 0.0
        %1045 = vmatpush1.msra.mxu0 0.0
        %1046 = vmatprep.subr.mxu0 0.0
        %1047 = vmatpush1.msra.mxu0 0.0
        %1048 = vmatprep.subr.mxu0 0.0
        %1049 = vmatpush1.msra.mxu0 0.0
        %1050 = vmatprep.subr.mxu0 0.0
        %1051 = vmatpush1.msra.mxu0 0.0
        %1052 = vmatprep.subr.mxu0 0.0
        %1053 = vmatpush1.msra.mxu0 0.0
        %1054 = vmatprep.subr.mxu0 0.0
        %1055 = vmatpush1.msra.mxu0 0.0
        %1056 = vmatprep.subr.mxu0 0.0
        %1057 = vmatpush1.msra.mxu0 0.0
        %1058 = vmatprep.subr.mxu0 0.0
        %1059 = vmatpush1.msra.mxu0 0.0
        %1060 = vmatprep.subr.mxu0 0.0
        %1061 = vmatpush1.msra.mxu0 0.0
        %1062 = vmatprep.subr.mxu0 0.0
        %1063 = vmatpush1.msra.mxu0 0.0
        %1064 = vmatprep.subr.mxu0 0.0
        %1065 = vmatpush1.msra.mxu0 0.0
        %1066 = vmatprep.subr.mxu0 0.0
        %1067 = vmatpush1.msra.mxu0 0.0
        %1068 = vmatprep.subr.mxu0 0.0
        %1069 = vmatpush1.msra.mxu0 0.0
        %1070 = vmatprep.subr.mxu0 0.0
        %1071 = vmatpush1.msra.mxu0 0.0
        %1072 = vmatprep.subr.mxu0 0.0
        %1073 = vmatpush1.msra.mxu0 0.0
        %1074 = vmatprep.subr.mxu0 0.0
        %1075 = vmatpush1.msra.mxu0 0.0
        %1076 = vmatprep.subr.mxu0 0.0
        %1077 = vmatpush1.msra.mxu0 0.0
        %1078 = vmatprep.subr.mxu0 0.0
        %1079 = vmatpush1.msra.mxu0 0.0
        %1080 = vmatprep.subr.mxu0 0.0
        %1081 = vmatpush1.msra.mxu0 0.0
        %1082 = vmatprep.subr.mxu0 0.0
        %1083 = vmatpush1.msra.mxu0 0.0
        %1084 = vmatprep.subr.mxu0 0.0
        %1085 = vmatpush1.msra.mxu0 0.0
        %1086 = vmatprep.subr.mxu0 0.0
        %1087 = vmatpush1.msra.mxu0 0.0
        %1088 = vmatprep.subr.mxu0 0.0
        %1089 = vmatpush1.msra.mxu0 0.0
        %1090 = vmatprep.subr.mxu0 0.0
        %1091 = vmatpush1.msra.mxu0 0.0
        %1092 = vmatprep.subr.mxu0 0.0
        %1093 = vmatpush1.msra.mxu0 0.0
        %1094 = vmatprep.subr.mxu0 0.0
        %1095 = vmatpush1.msra.mxu0 0.0
        %1096 = vmatprep.subr.mxu0 0.0
        %1097 = vmatpush1.msra.mxu0 0.0
        %1098 = vmatprep.mubr.f32.mxu0 0.0
        %1099 = vmatmul.mubr.f32.gmra.mrb[0].mxu0 %v1032
        %v1100 = vpop.f32.mrb[0].mxu0
        %v1101 = vadd.f32 0.0, %v1100
        %v1102 = vpop.f32.mrb[0].mxu0
        %1103 = vdwg.mxu0
        %v1105 = vcombine.high %v1023, %v1023
        %v1107 = vunpack.c.l.s4 1966171168
        %v1108 = vunpack.c.0.s8 %v1107
        %v1109 = vlaneseq
        %v1110 = vshrl.u32 %v1109, 7
        %v1111 = vsub.s32 %v1108, %v1110
        %v1112 = vrot.slane %v1023, %v1111
        %v1114 = vunpack.c.l.s4 1966171168
        %v1115 = vunpack.c.0.s8 %v1114
        %v1116 = vlaneseq
        %v1117 = vshrl.u32 %v1116, 7
        %v1118 = vsub.s32 %v1115, %v1117
        %v1119 = vrot.slane %v1105, %v1118
        %v1120 = vcombine.high %v1112, %v1112
        %v1121 = vcombine.high %v1119, %v1119
        %v1123 = vunpack.c.l.s4 1966171168
        %v1124 = vunpack.c.0.s8 %v1123
        %v1125 = vlaneseq
        %v1126 = vshrl.u32 %v1125, 7
        %v1127 = vsub.s32 %v1124, %v1126
        %v1128 = vrot.slane %v1112, %v1127
        %v1130 = vunpack.c.l.s4 1966171168
        %v1131 = vunpack.c.0.s8 %v1130
        %v1132 = vlaneseq
        %v1133 = vshrl.u32 %v1132, 7
        %v1134 = vsub.s32 %v1131, %v1133
        %v1135 = vrot.slane %v1119, %v1134
        %v1137 = vunpack.c.l.s4 1966171168
        %v1138 = vunpack.c.0.s8 %v1137
        %v1139 = vlaneseq
        %v1140 = vshrl.u32 %v1139, 7
        %v1141 = vsub.s32 %v1138, %v1140
        %v1142 = vrot.slane %v1120, %v1141
        %v1144 = vunpack.c.l.s4 1966171168
        %v1145 = vunpack.c.0.s8 %v1144
        %v1146 = vlaneseq
        %v1147 = vshrl.u32 %v1146, 7
        %v1148 = vsub.s32 %v1145, %v1147
        %v1149 = vrot.slane %v1121, %v1148
        %v1150 = vcombine.high %v1128, %v1128
        %v1151 = vcombine.high %v1135, %v1135
        %v1152 = vcombine.high %v1142, %v1142
        %v1153 = vcombine.high %v1149, %v1149
        %v1154 = vlaneseq
        %v1155 = vshrl.u32 %v1154, 7
        %v1156 = vsub.s32 0, %v1155
        %v1157 = vrot.slane %v1128, %v1156
        %v1158 = vlaneseq
        %v1159 = vshrl.u32 %v1158, 7
        %v1160 = vsub.s32 0, %v1159
        %v1161 = vrot.slane %v1142, %v1160
        %v1162 = vlaneseq
        %v1163 = vshrl.u32 %v1162, 7
        %v1164 = vsub.s32 0, %v1163
        %v1165 = vrot.slane %v1150, %v1164
        %v1166 = vlaneseq
        %v1167 = vshrl.u32 %v1166, 7
        %v1168 = vsub.s32 0, %v1167
        %v1169 = vrot.slane %v1152, %v1168
        %v1170 = vlaneseq
        %v1171 = vshrl.u32 %v1170, 7
        %v1172 = vsub.s32 0, %v1171
        %v1173 = vrot.slane %v1135, %v1172
        %v1174 = vlaneseq
        %v1175 = vshrl.u32 %v1174, 7
        %v1176 = vsub.s32 0, %v1175
        %v1177 = vrot.slane %v1149, %v1176
        %v1178 = vlaneseq
        %v1179 = vshrl.u32 %v1178, 7
        %v1180 = vsub.s32 0, %v1179
        %v1181 = vrot.slane %v1151, %v1180
        %v1182 = vlaneseq
        %v1183 = vshrl.u32 %v1182, 7
        %v1184 = vsub.s32 0, %v1183
        %v1185 = vrot.slane %v1153, %v1184
        %v1194 = vadd.f32 %v1157, %v1101
        %v1195 = vadd.f32 %v1161, %v1101
        %v1196 = vadd.f32 %v1165, %v1101
        %v1197 = vadd.f32 %v1169, %v1101
        %v1198 = vadd.f32 %v1173, %v1101
        %v1199 = vadd.f32 %v1177, %v1101
        %v1200 = vadd.f32 %v1181, %v1101
        %v1201 = vadd.f32 %v1185, %v1101
        %v1202 = vld [vmem:[#allocation22] sm:$0x1]
        %v1204 = vlaneseq
        %v1205 = vshrl.u32 %v1204, 7
        %v1206 = vsub.s32 0, %v1205
        %v1207 = vrot.slane %v1202, %v1206
        %v1209 = vadd.f32 %v1194, %v1207
        %v1210 = vadd.f32 %v1195, %v1207
        %v1211 = vadd.f32 %v1196, %v1207
        %v1212 = vadd.f32 %v1197, %v1207
        %v1213 = vadd.f32 %v1198, %v1207
        %v1214 = vadd.f32 %v1199, %v1207
        %v1215 = vadd.f32 %v1200, %v1207
        %v1216 = vadd.f32 %v1201, %v1207
        %v1217 = vld [vmem:[%s810] sm:$0xf]
        %v1218 = vld [vmem:[%s810 + $0x4] sm:$0xf]
        %v1219 = vld [vmem:[%s810 + $0x8] sm:$0xf]
        %v1220 = vld [vmem:[%s810 + $0xc] sm:$0xf]
        %v1221 = vld [vmem:[%s810 + $0x10] sm:$0xf]
        %v1222 = vld [vmem:[%s810 + $0x14] sm:$0xf]
        %v1223 = vld [vmem:[%s810 + $0x18] sm:$0xf]
        %v1224 = vld [vmem:[%s810 + $0x1c] sm:$0xf]
        %v1225 = vld [vmem:[%s810 + $0x20] sm:$0xf]
        %v1226 = vunpack.c.l.bf16 %v1217
        %v1227 = vlaneseq
        %v1228 = vshrl.u32 %v1227, 7
        %v1229 = vsub.s32 0, %v1228
        %v1230 = vrot.slane %v1226, %v1229
        %1232 = vbcast.lane.b32.xlu0 %v1230, 256
        %v1233 = vpop.permute.xlu0 %1232
        %v1234 = vlaneseq
        %v1235 = vshrl.u32 %v1234, 7
        %v1236 = vsub.s32 1, %v1235
        %v1237 = vrot.slane %v1226, %v1236
        %1239 = vbcast.lane.b32.xlu0 %v1237, 256
        %v1240 = vpop.permute.xlu0 %1239
        %v1241 = vlaneseq
        %v1242 = vshrl.u32 %v1241, 7
        %v1243 = vsub.s32 2, %v1242
        %v1244 = vrot.slane %v1226, %v1243
        %1246 = vbcast.lane.b32.xlu0 %v1244, 256
        %v1247 = vpop.permute.xlu0 %1246
        %v1248 = vlaneseq
        %v1249 = vshrl.u32 %v1248, 7
        %v1250 = vsub.s32 3, %v1249
        %v1251 = vrot.slane %v1226, %v1250
        %1253 = vbcast.lane.b32.xlu0 %v1251, 256
        %v1254 = vpop.permute.xlu0 %1253
        %v1255 = vlaneseq
        %v1256 = vshrl.u32 %v1255, 7
        %v1257 = vsub.s32 4, %v1256
        %v1258 = vrot.slane %v1226, %v1257
        %1260 = vbcast.lane.b32.xlu0 %v1258, 256
        %v1261 = vpop.permute.xlu0 %1260
        %v1262 = vlaneseq
        %v1263 = vshrl.u32 %v1262, 7
        %v1264 = vsub.s32 5, %v1263
        %v1265 = vrot.slane %v1226, %v1264
        %1267 = vbcast.lane.b32.xlu0 %v1265, 256
        %v1268 = vpop.permute.xlu0 %1267
        %v1269 = vlaneseq
        %v1270 = vshrl.u32 %v1269, 7
        %v1271 = vsub.s32 6, %v1270
        %v1272 = vrot.slane %v1226, %v1271
        %1274 = vbcast.lane.b32.xlu0 %v1272, 256
        %v1275 = vpop.permute.xlu0 %1274
        %v1276 = vlaneseq
        %v1277 = vshrl.u32 %v1276, 7
        %v1278 = vsub.s32 7, %v1277
        %v1279 = vrot.slane %v1226, %v1278
        %1281 = vbcast.lane.b32.xlu0 %v1279, 256
        %v1282 = vpop.permute.xlu0 %1281
        %v1283 = vld [vmem:[#allocation21] sm:$0x1]
        %v1284 = vlaneseq
        %v1285 = vshrl.u32 %v1284, 7
        %v1286 = vsub.s32 0, %v1285
        %v1287 = vrot.slane %v1283, %v1286
        %v1288 = vmul.f32 %v1233, %v1287
        %v1289 = vmul.f32 %v1240, %v1287
        %v1290 = vmul.f32 %v1247, %v1287
        %v1291 = vmul.f32 %v1254, %v1287
        %v1292 = vmul.f32 %v1261, %v1287
        %v1293 = vmul.f32 %v1268, %v1287
        %v1294 = vmul.f32 %v1275, %v1287
        %v1295 = vmul.f32 %v1282, %v1287
        %v1296 = vadd.f32 %v1209, %v1288
        %v1297 = vadd.f32 %v1210, %v1289
        %v1298 = vadd.f32 %v1211, %v1290
        %v1299 = vadd.f32 %v1212, %v1291
        %v1300 = vadd.f32 %v1213, %v1292
        %v1301 = vadd.f32 %v1214, %v1293
        %v1302 = vadd.f32 %v1215, %v1294
        %v1303 = vadd.f32 %v1216, %v1295
        %v1304 = vunpack.c.l.bf16 %v1218
        %v1305 = vlaneseq
        %v1306 = vshrl.u32 %v1305, 7
        %v1307 = vsub.s32 0, %v1306
        %v1308 = vrot.slane %v1304, %v1307
        %1310 = vbcast.lane.b32.xlu0 %v1308, 256
        %v1311 = vpop.permute.xlu0 %1310
        %v1312 = vlaneseq
        %v1313 = vshrl.u32 %v1312, 7
        %v1314 = vsub.s32 1, %v1313
        %v1315 = vrot.slane %v1304, %v1314
        %1317 = vbcast.lane.b32.xlu0 %v1315, 256
        %v1318 = vpop.permute.xlu0 %1317
        %v1319 = vlaneseq
        %v1320 = vshrl.u32 %v1319, 7
        %v1321 = vsub.s32 2, %v1320
        %v1322 = vrot.slane %v1304, %v1321
        %1324 = vbcast.lane.b32.xlu0 %v1322, 256
        %v1325 = vpop.permute.xlu0 %1324
        %v1326 = vlaneseq
        %v1327 = vshrl.u32 %v1326, 7
        %v1328 = vsub.s32 3, %v1327
        %v1329 = vrot.slane %v1304, %v1328
        %1331 = vbcast.lane.b32.xlu0 %v1329, 256
        %v1332 = vpop.permute.xlu0 %1331
        %v1333 = vlaneseq
        %v1334 = vshrl.u32 %v1333, 7
        %v1335 = vsub.s32 4, %v1334
        %v1336 = vrot.slane %v1304, %v1335
        %1338 = vbcast.lane.b32.xlu0 %v1336, 256
        %v1339 = vpop.permute.xlu0 %1338
        %v1340 = vlaneseq
        %v1341 = vshrl.u32 %v1340, 7
        %v1342 = vsub.s32 5, %v1341
        %v1343 = vrot.slane %v1304, %v1342
        %1345 = vbcast.lane.b32.xlu0 %v1343, 256
        %v1346 = vpop.permute.xlu0 %1345
        %v1347 = vlaneseq
        %v1348 = vshrl.u32 %v1347, 7
        %v1349 = vsub.s32 6, %v1348
        %v1350 = vrot.slane %v1304, %v1349
        %1352 = vbcast.lane.b32.xlu0 %v1350, 256
        %v1353 = vpop.permute.xlu0 %1352
        %v1354 = vlaneseq
        %v1355 = vshrl.u32 %v1354, 7
        %v1356 = vsub.s32 7, %v1355
        %v1357 = vrot.slane %v1304, %v1356
        %1359 = vbcast.lane.b32.xlu0 %v1357, 256
        %v1360 = vpop.permute.xlu0 %1359
        %v1361 = vld [vmem:[#allocation21 + $0x1] sm:$0x1]
        %v1362 = vlaneseq
        %v1363 = vshrl.u32 %v1362, 7
        %v1364 = vsub.s32 0, %v1363
        %v1365 = vrot.slane %v1361, %v1364
        %v1366 = vmul.f32 %v1311, %v1365
        %v1367 = vmul.f32 %v1318, %v1365
        %v1368 = vmul.f32 %v1325, %v1365
        %v1369 = vmul.f32 %v1332, %v1365
        %v1370 = vmul.f32 %v1339, %v1365
        %v1371 = vmul.f32 %v1346, %v1365
        %v1372 = vmul.f32 %v1353, %v1365
        %v1373 = vmul.f32 %v1360, %v1365
        %v1374 = vadd.f32 %v1296, %v1366
        %v1375 = vadd.f32 %v1297, %v1367
        %v1376 = vadd.f32 %v1298, %v1368
        %v1377 = vadd.f32 %v1299, %v1369
        %v1378 = vadd.f32 %v1300, %v1370
        %v1379 = vadd.f32 %v1301, %v1371
        %v1380 = vadd.f32 %v1302, %v1372
        %v1381 = vadd.f32 %v1303, %v1373
        %v1382 = vunpack.c.l.bf16 %v1219
        %v1383 = vlaneseq
        %v1384 = vshrl.u32 %v1383, 7
        %v1385 = vsub.s32 0, %v1384
        %v1386 = vrot.slane %v1382, %v1385
        %1388 = vbcast.lane.b32.xlu0 %v1386, 256
        %v1389 = vpop.permute.xlu0 %1388
        %v1390 = vlaneseq
        %v1391 = vshrl.u32 %v1390, 7
        %v1392 = vsub.s32 1, %v1391
        %v1393 = vrot.slane %v1382, %v1392
        %1395 = vbcast.lane.b32.xlu0 %v1393, 256
        %v1396 = vpop.permute.xlu0 %1395
        %v1397 = vlaneseq
        %v1398 = vshrl.u32 %v1397, 7
        %v1399 = vsub.s32 2, %v1398
        %v1400 = vrot.slane %v1382, %v1399
        %1402 = vbcast.lane.b32.xlu0 %v1400, 256
        %v1403 = vpop.permute.xlu0 %1402
        %v1404 = vlaneseq
        %v1405 = vshrl.u32 %v1404, 7
        %v1406 = vsub.s32 3, %v1405
        %v1407 = vrot.slane %v1382, %v1406
        %1409 = vbcast.lane.b32.xlu0 %v1407, 256
        %v1410 = vpop.permute.xlu0 %1409
        %v1411 = vlaneseq
        %v1412 = vshrl.u32 %v1411, 7
        %v1413 = vsub.s32 4, %v1412
        %v1414 = vrot.slane %v1382, %v1413
        %1416 = vbcast.lane.b32.xlu0 %v1414, 256
        %v1417 = vpop.permute.xlu0 %1416
        %v1418 = vlaneseq
        %v1419 = vshrl.u32 %v1418, 7
        %v1420 = vsub.s32 5, %v1419
        %v1421 = vrot.slane %v1382, %v1420
        %1423 = vbcast.lane.b32.xlu0 %v1421, 256
        %v1424 = vpop.permute.xlu0 %1423
        %v1425 = vlaneseq
        %v1426 = vshrl.u32 %v1425, 7
        %v1427 = vsub.s32 6, %v1426
        %v1428 = vrot.slane %v1382, %v1427
        %1430 = vbcast.lane.b32.xlu0 %v1428, 256
        %v1431 = vpop.permute.xlu0 %1430
        %v1432 = vlaneseq
        %v1433 = vshrl.u32 %v1432, 7
        %v1434 = vsub.s32 7, %v1433
        %v1435 = vrot.slane %v1382, %v1434
        %1437 = vbcast.lane.b32.xlu0 %v1435, 256
        %v1438 = vpop.permute.xlu0 %1437
        %v1439 = vld [vmem:[#allocation21 + $0x2] sm:$0x1]
        %v1440 = vlaneseq
        %v1441 = vshrl.u32 %v1440, 7
        %v1442 = vsub.s32 0, %v1441
        %v1443 = vrot.slane %v1439, %v1442
        %v1444 = vmul.f32 %v1389, %v1443
        %v1445 = vmul.f32 %v1396, %v1443
        %v1446 = vmul.f32 %v1403, %v1443
        %v1447 = vmul.f32 %v1410, %v1443
        %v1448 = vmul.f32 %v1417, %v1443
        %v1449 = vmul.f32 %v1424, %v1443
        %v1450 = vmul.f32 %v1431, %v1443
        %v1451 = vmul.f32 %v1438, %v1443
        %v1452 = vadd.f32 %v1374, %v1444
        %v1453 = vadd.f32 %v1375, %v1445
        %v1454 = vadd.f32 %v1376, %v1446
        %v1455 = vadd.f32 %v1377, %v1447
        %v1456 = vadd.f32 %v1378, %v1448
        %v1457 = vadd.f32 %v1379, %v1449
        %v1458 = vadd.f32 %v1380, %v1450
        %v1459 = vadd.f32 %v1381, %v1451
        %v1460 = vunpack.c.l.bf16 %v1220
        %v1461 = vlaneseq
        %v1462 = vshrl.u32 %v1461, 7
        %v1463 = vsub.s32 0, %v1462
        %v1464 = vrot.slane %v1460, %v1463
        %1466 = vbcast.lane.b32.xlu0 %v1464, 256
        %v1467 = vpop.permute.xlu0 %1466
        %v1468 = vlaneseq
        %v1469 = vshrl.u32 %v1468, 7
        %v1470 = vsub.s32 1, %v1469
        %v1471 = vrot.slane %v1460, %v1470
        %1473 = vbcast.lane.b32.xlu0 %v1471, 256
        %v1474 = vpop.permute.xlu0 %1473
        %v1475 = vlaneseq
        %v1476 = vshrl.u32 %v1475, 7
        %v1477 = vsub.s32 2, %v1476
        %v1478 = vrot.slane %v1460, %v1477
        %1480 = vbcast.lane.b32.xlu0 %v1478, 256
        %v1481 = vpop.permute.xlu0 %1480
        %v1482 = vlaneseq
        %v1483 = vshrl.u32 %v1482, 7
        %v1484 = vsub.s32 3, %v1483
        %v1485 = vrot.slane %v1460, %v1484
        %1487 = vbcast.lane.b32.xlu0 %v1485, 256
        %v1488 = vpop.permute.xlu0 %1487
        %v1489 = vlaneseq
        %v1490 = vshrl.u32 %v1489, 7
        %v1491 = vsub.s32 4, %v1490
        %v1492 = vrot.slane %v1460, %v1491
        %1494 = vbcast.lane.b32.xlu0 %v1492, 256
        %v1495 = vpop.permute.xlu0 %1494
        %v1496 = vlaneseq
        %v1497 = vshrl.u32 %v1496, 7
        %v1498 = vsub.s32 5, %v1497
        %v1499 = vrot.slane %v1460, %v1498
        %1501 = vbcast.lane.b32.xlu0 %v1499, 256
        %v1502 = vpop.permute.xlu0 %1501
        %v1503 = vlaneseq
        %v1504 = vshrl.u32 %v1503, 7
        %v1505 = vsub.s32 6, %v1504
        %v1506 = vrot.slane %v1460, %v1505
        %1508 = vbcast.lane.b32.xlu0 %v1506, 256
        %v1509 = vpop.permute.xlu0 %1508
        %v1510 = vlaneseq
        %v1511 = vshrl.u32 %v1510, 7
        %v1512 = vsub.s32 7, %v1511
        %v1513 = vrot.slane %v1460, %v1512
        %1515 = vbcast.lane.b32.xlu0 %v1513, 256
        %v1516 = vpop.permute.xlu0 %1515
        %v1517 = vld [vmem:[#allocation21 + $0x3] sm:$0x1]
        %v1518 = vlaneseq
        %v1519 = vshrl.u32 %v1518, 7
        %v1520 = vsub.s32 0, %v1519
        %v1521 = vrot.slane %v1517, %v1520
        %v1522 = vmul.f32 %v1467, %v1521
        %v1523 = vmul.f32 %v1474, %v1521
        %v1524 = vmul.f32 %v1481, %v1521
        %v1525 = vmul.f32 %v1488, %v1521
        %v1526 = vmul.f32 %v1495, %v1521
        %v1527 = vmul.f32 %v1502, %v1521
        %v1528 = vmul.f32 %v1509, %v1521
        %v1529 = vmul.f32 %v1516, %v1521
        %v1530 = vadd.f32 %v1452, %v1522
        %v1531 = vadd.f32 %v1453, %v1523
        %v1532 = vadd.f32 %v1454, %v1524
        %v1533 = vadd.f32 %v1455, %v1525
        %v1534 = vadd.f32 %v1456, %v1526
        %v1535 = vadd.f32 %v1457, %v1527
        %v1536 = vadd.f32 %v1458, %v1528
        %v1537 = vadd.f32 %v1459, %v1529
        %v1538 = vunpack.c.l.bf16 %v1221
        %v1539 = vlaneseq
        %v1540 = vshrl.u32 %v1539, 7
        %v1541 = vsub.s32 0, %v1540
        %v1542 = vrot.slane %v1538, %v1541
        %1544 = vbcast.lane.b32.xlu0 %v1542, 256
        %v1545 = vpop.permute.xlu0 %1544
        %v1546 = vlaneseq
        %v1547 = vshrl.u32 %v1546, 7
        %v1548 = vsub.s32 1, %v1547
        %v1549 = vrot.slane %v1538, %v1548
        %1551 = vbcast.lane.b32.xlu0 %v1549, 256
        %v1552 = vpop.permute.xlu0 %1551
        %v1553 = vlaneseq
        %v1554 = vshrl.u32 %v1553, 7
        %v1555 = vsub.s32 2, %v1554
        %v1556 = vrot.slane %v1538, %v1555
        %1558 = vbcast.lane.b32.xlu0 %v1556, 256
        %v1559 = vpop.permute.xlu0 %1558
        %v1560 = vlaneseq
        %v1561 = vshrl.u32 %v1560, 7
        %v1562 = vsub.s32 3, %v1561
        %v1563 = vrot.slane %v1538, %v1562
        %1565 = vbcast.lane.b32.xlu0 %v1563, 256
        %v1566 = vpop.permute.xlu0 %1565
        %v1567 = vlaneseq
        %v1568 = vshrl.u32 %v1567, 7
        %v1569 = vsub.s32 4, %v1568
        %v1570 = vrot.slane %v1538, %v1569
        %1572 = vbcast.lane.b32.xlu0 %v1570, 256
        %v1573 = vpop.permute.xlu0 %1572
        %v1574 = vlaneseq
        %v1575 = vshrl.u32 %v1574, 7
        %v1576 = vsub.s32 5, %v1575
        %v1577 = vrot.slane %v1538, %v1576
        %1579 = vbcast.lane.b32.xlu0 %v1577, 256
        %v1580 = vpop.permute.xlu0 %1579
        %v1581 = vlaneseq
        %v1582 = vshrl.u32 %v1581, 7
        %v1583 = vsub.s32 6, %v1582
        %v1584 = vrot.slane %v1538, %v1583
        %1586 = vbcast.lane.b32.xlu0 %v1584, 256
        %v1587 = vpop.permute.xlu0 %1586
        %v1588 = vlaneseq
        %v1589 = vshrl.u32 %v1588, 7
        %v1590 = vsub.s32 7, %v1589
        %v1591 = vrot.slane %v1538, %v1590
        %1593 = vbcast.lane.b32.xlu0 %v1591, 256
        %v1594 = vpop.permute.xlu0 %1593
        %v1595 = vld [vmem:[#allocation21 + $0x4] sm:$0x1]
        %v1596 = vlaneseq
        %v1597 = vshrl.u32 %v1596, 7
        %v1598 = vsub.s32 0, %v1597
        %v1599 = vrot.slane %v1595, %v1598
        %v1600 = vmul.f32 %v1545, %v1599
        %v1601 = vmul.f32 %v1552, %v1599
        %v1602 = vmul.f32 %v1559, %v1599
        %v1603 = vmul.f32 %v1566, %v1599
        %v1604 = vmul.f32 %v1573, %v1599
        %v1605 = vmul.f32 %v1580, %v1599
        %v1606 = vmul.f32 %v1587, %v1599
        %v1607 = vmul.f32 %v1594, %v1599
        %v1608 = vadd.f32 %v1530, %v1600
        %v1609 = vadd.f32 %v1531, %v1601
        %v1610 = vadd.f32 %v1532, %v1602
        %v1611 = vadd.f32 %v1533, %v1603
        %v1612 = vadd.f32 %v1534, %v1604
        %v1613 = vadd.f32 %v1535, %v1605
        %v1614 = vadd.f32 %v1536, %v1606
        %v1615 = vadd.f32 %v1537, %v1607
        %v1616 = vunpack.c.l.bf16 %v1222
        %v1617 = vlaneseq
        %v1618 = vshrl.u32 %v1617, 7
        %v1619 = vsub.s32 0, %v1618
        %v1620 = vrot.slane %v1616, %v1619
        %1622 = vbcast.lane.b32.xlu0 %v1620, 256
        %v1623 = vpop.permute.xlu0 %1622
        %v1624 = vlaneseq
        %v1625 = vshrl.u32 %v1624, 7
        %v1626 = vsub.s32 1, %v1625
        %v1627 = vrot.slane %v1616, %v1626
        %1629 = vbcast.lane.b32.xlu0 %v1627, 256
        %v1630 = vpop.permute.xlu0 %1629
        %v1631 = vlaneseq
        %v1632 = vshrl.u32 %v1631, 7
        %v1633 = vsub.s32 2, %v1632
        %v1634 = vrot.slane %v1616, %v1633
        %1636 = vbcast.lane.b32.xlu0 %v1634, 256
        %v1637 = vpop.permute.xlu0 %1636
        %v1638 = vlaneseq
        %v1639 = vshrl.u32 %v1638, 7
        %v1640 = vsub.s32 3, %v1639
        %v1641 = vrot.slane %v1616, %v1640
        %1643 = vbcast.lane.b32.xlu0 %v1641, 256
        %v1644 = vpop.permute.xlu0 %1643
        %v1645 = vlaneseq
        %v1646 = vshrl.u32 %v1645, 7
        %v1647 = vsub.s32 4, %v1646
        %v1648 = vrot.slane %v1616, %v1647
        %1650 = vbcast.lane.b32.xlu0 %v1648, 256
        %v1651 = vpop.permute.xlu0 %1650
        %v1652 = vlaneseq
        %v1653 = vshrl.u32 %v1652, 7
        %v1654 = vsub.s32 5, %v1653
        %v1655 = vrot.slane %v1616, %v1654
        %1657 = vbcast.lane.b32.xlu0 %v1655, 256
        %v1658 = vpop.permute.xlu0 %1657
        %v1659 = vlaneseq
        %v1660 = vshrl.u32 %v1659, 7
        %v1661 = vsub.s32 6, %v1660
        %v1662 = vrot.slane %v1616, %v1661
        %1664 = vbcast.lane.b32.xlu0 %v1662, 256
        %v1665 = vpop.permute.xlu0 %1664
        %v1666 = vlaneseq
        %v1667 = vshrl.u32 %v1666, 7
        %v1668 = vsub.s32 7, %v1667
        %v1669 = vrot.slane %v1616, %v1668
        %1671 = vbcast.lane.b32.xlu0 %v1669, 256
        %v1672 = vpop.permute.xlu0 %1671
        %v1673 = vld [vmem:[#allocation21 + $0x5] sm:$0x1]
        %v1674 = vlaneseq
        %v1675 = vshrl.u32 %v1674, 7
        %v1676 = vsub.s32 0, %v1675
        %v1677 = vrot.slane %v1673, %v1676
        %v1678 = vmul.f32 %v1623, %v1677
        %v1679 = vmul.f32 %v1630, %v1677
        %v1680 = vmul.f32 %v1637, %v1677
        %v1681 = vmul.f32 %v1644, %v1677
        %v1682 = vmul.f32 %v1651, %v1677
        %v1683 = vmul.f32 %v1658, %v1677
        %v1684 = vmul.f32 %v1665, %v1677
        %v1685 = vmul.f32 %v1672, %v1677
        %v1686 = vadd.f32 %v1608, %v1678
        %v1687 = vadd.f32 %v1609, %v1679
        %v1688 = vadd.f32 %v1610, %v1680
        %v1689 = vadd.f32 %v1611, %v1681
        %v1690 = vadd.f32 %v1612, %v1682
        %v1691 = vadd.f32 %v1613, %v1683
        %v1692 = vadd.f32 %v1614, %v1684
        %v1693 = vadd.f32 %v1615, %v1685
        %v1694 = vunpack.c.l.bf16 %v1223
        %v1695 = vlaneseq
        %v1696 = vshrl.u32 %v1695, 7
        %v1697 = vsub.s32 0, %v1696
        %v1698 = vrot.slane %v1694, %v1697
        %1700 = vbcast.lane.b32.xlu0 %v1698, 256
        %v1701 = vpop.permute.xlu0 %1700
        %v1702 = vlaneseq
        %v1703 = vshrl.u32 %v1702, 7
        %v1704 = vsub.s32 1, %v1703
        %v1705 = vrot.slane %v1694, %v1704
        %1707 = vbcast.lane.b32.xlu0 %v1705, 256
        %v1708 = vpop.permute.xlu0 %1707
        %v1709 = vlaneseq
        %v1710 = vshrl.u32 %v1709, 7
        %v1711 = vsub.s32 2, %v1710
        %v1712 = vrot.slane %v1694, %v1711
        %1714 = vbcast.lane.b32.xlu0 %v1712, 256
        %v1715 = vpop.permute.xlu0 %1714
        %v1716 = vlaneseq
        %v1717 = vshrl.u32 %v1716, 7
        %v1718 = vsub.s32 3, %v1717
        %v1719 = vrot.slane %v1694, %v1718
        %1721 = vbcast.lane.b32.xlu0 %v1719, 256
        %v1722 = vpop.permute.xlu0 %1721
        %v1723 = vlaneseq
        %v1724 = vshrl.u32 %v1723, 7
        %v1725 = vsub.s32 4, %v1724
        %v1726 = vrot.slane %v1694, %v1725
        %1728 = vbcast.lane.b32.xlu0 %v1726, 256
        %v1729 = vpop.permute.xlu0 %1728
        %v1730 = vlaneseq
        %v1731 = vshrl.u32 %v1730, 7
        %v1732 = vsub.s32 5, %v1731
        %v1733 = vrot.slane %v1694, %v1732
        %1735 = vbcast.lane.b32.xlu0 %v1733, 256
        %v1736 = vpop.permute.xlu0 %1735
        %v1737 = vlaneseq
        %v1738 = vshrl.u32 %v1737, 7
        %v1739 = vsub.s32 6, %v1738
        %v1740 = vrot.slane %v1694, %v1739
        %1742 = vbcast.lane.b32.xlu0 %v1740, 256
        %v1743 = vpop.permute.xlu0 %1742
        %v1744 = vlaneseq
        %v1745 = vshrl.u32 %v1744, 7
        %v1746 = vsub.s32 7, %v1745
        %v1747 = vrot.slane %v1694, %v1746
        %1749 = vbcast.lane.b32.xlu0 %v1747, 256
        %v1750 = vpop.permute.xlu0 %1749
        %v1751 = vld [vmem:[#allocation21 + $0x6] sm:$0x1]
        %v1752 = vlaneseq
        %v1753 = vshrl.u32 %v1752, 7
        %v1754 = vsub.s32 0, %v1753
        %v1755 = vrot.slane %v1751, %v1754
        %v1756 = vmul.f32 %v1701, %v1755
        %v1757 = vmul.f32 %v1708, %v1755
        %v1758 = vmul.f32 %v1715, %v1755
        %v1759 = vmul.f32 %v1722, %v1755
        %v1760 = vmul.f32 %v1729, %v1755
        %v1761 = vmul.f32 %v1736, %v1755
        %v1762 = vmul.f32 %v1743, %v1755
        %v1763 = vmul.f32 %v1750, %v1755
        %v1764 = vadd.f32 %v1686, %v1756
        %v1765 = vadd.f32 %v1687, %v1757
        %v1766 = vadd.f32 %v1688, %v1758
        %v1767 = vadd.f32 %v1689, %v1759
        %v1768 = vadd.f32 %v1690, %v1760
        %v1769 = vadd.f32 %v1691, %v1761
        %v1770 = vadd.f32 %v1692, %v1762
        %v1771 = vadd.f32 %v1693, %v1763
        %v1772 = vunpack.c.l.bf16 %v1224
        %v1773 = vlaneseq
        %v1774 = vshrl.u32 %v1773, 7
        %v1775 = vsub.s32 0, %v1774
        %v1776 = vrot.slane %v1772, %v1775
        %1778 = vbcast.lane.b32.xlu0 %v1776, 256
        %v1779 = vpop.permute.xlu0 %1778
        %v1780 = vlaneseq
        %v1781 = vshrl.u32 %v1780, 7
        %v1782 = vsub.s32 1, %v1781
        %v1783 = vrot.slane %v1772, %v1782
        %1785 = vbcast.lane.b32.xlu0 %v1783, 256
        %v1786 = vpop.permute.xlu0 %1785
        %v1787 = vlaneseq
        %v1788 = vshrl.u32 %v1787, 7
        %v1789 = vsub.s32 2, %v1788
        %v1790 = vrot.slane %v1772, %v1789
        %1792 = vbcast.lane.b32.xlu0 %v1790, 256
        %v1793 = vpop.permute.xlu0 %1792
        %v1794 = vlaneseq
        %v1795 = vshrl.u32 %v1794, 7
        %v1796 = vsub.s32 3, %v1795
        %v1797 = vrot.slane %v1772, %v1796
        %1799 = vbcast.lane.b32.xlu0 %v1797, 256
        %v1800 = vpop.permute.xlu0 %1799
        %v1801 = vlaneseq
        %v1802 = vshrl.u32 %v1801, 7
        %v1803 = vsub.s32 4, %v1802
        %v1804 = vrot.slane %v1772, %v1803
        %1806 = vbcast.lane.b32.xlu0 %v1804, 256
        %v1807 = vpop.permute.xlu0 %1806
        %v1808 = vlaneseq
        %v1809 = vshrl.u32 %v1808, 7
        %v1810 = vsub.s32 5, %v1809
        %v1811 = vrot.slane %v1772, %v1810
        %1813 = vbcast.lane.b32.xlu0 %v1811, 256
        %v1814 = vpop.permute.xlu0 %1813
        %v1815 = vlaneseq
        %v1816 = vshrl.u32 %v1815, 7
        %v1817 = vsub.s32 6, %v1816
        %v1818 = vrot.slane %v1772, %v1817
        %1820 = vbcast.lane.b32.xlu0 %v1818, 256
        %v1821 = vpop.permute.xlu0 %1820
        %v1822 = vlaneseq
        %v1823 = vshrl.u32 %v1822, 7
        %v1824 = vsub.s32 7, %v1823
        %v1825 = vrot.slane %v1772, %v1824
        %1827 = vbcast.lane.b32.xlu0 %v1825, 256
        %v1828 = vpop.permute.xlu0 %1827
        %v1829 = vld [vmem:[#allocation21 + $0x7] sm:$0x1]
        %v1830 = vlaneseq
        %v1831 = vshrl.u32 %v1830, 7
        %v1832 = vsub.s32 0, %v1831
        %v1833 = vrot.slane %v1829, %v1832
        %v1834 = vmul.f32 %v1779, %v1833
        %v1835 = vmul.f32 %v1786, %v1833
        %v1836 = vmul.f32 %v1793, %v1833
        %v1837 = vmul.f32 %v1800, %v1833
        %v1838 = vmul.f32 %v1807, %v1833
        %v1839 = vmul.f32 %v1814, %v1833
        %v1840 = vmul.f32 %v1821, %v1833
        %v1841 = vmul.f32 %v1828, %v1833
        %v1842 = vadd.f32 %v1764, %v1834
        %v1843 = vadd.f32 %v1765, %v1835
        %v1844 = vadd.f32 %v1766, %v1836
        %v1845 = vadd.f32 %v1767, %v1837
        %v1846 = vadd.f32 %v1768, %v1838
        %v1847 = vadd.f32 %v1769, %v1839
        %v1848 = vadd.f32 %v1770, %v1840
        %v1849 = vadd.f32 %v1771, %v1841
        %v1850 = vunpack.c.l.bf16 %v1225
        %v1851 = vlaneseq
        %v1852 = vshrl.u32 %v1851, 7
        %v1853 = vsub.s32 0, %v1852
        %v1854 = vrot.slane %v1850, %v1853
        %1856 = vbcast.lane.b32.xlu0 %v1854, 256
        %v1857 = vpop.permute.xlu0 %1856
        %v1858 = vlaneseq
        %v1859 = vshrl.u32 %v1858, 7
        %v1860 = vsub.s32 1, %v1859
        %v1861 = vrot.slane %v1850, %v1860
        %1863 = vbcast.lane.b32.xlu0 %v1861, 256
        %v1864 = vpop.permute.xlu0 %1863
        %v1865 = vlaneseq
        %v1866 = vshrl.u32 %v1865, 7
        %v1867 = vsub.s32 2, %v1866
        %v1868 = vrot.slane %v1850, %v1867
        %1870 = vbcast.lane.b32.xlu0 %v1868, 256
        %v1871 = vpop.permute.xlu0 %1870
        %v1872 = vlaneseq
        %v1873 = vshrl.u32 %v1872, 7
        %v1874 = vsub.s32 3, %v1873
        %v1875 = vrot.slane %v1850, %v1874
        %1877 = vbcast.lane.b32.xlu0 %v1875, 256
        %v1878 = vpop.permute.xlu0 %1877
        %v1879 = vlaneseq
        %v1880 = vshrl.u32 %v1879, 7
        %v1881 = vsub.s32 4, %v1880
        %v1882 = vrot.slane %v1850, %v1881
        %1884 = vbcast.lane.b32.xlu0 %v1882, 256
        %v1885 = vpop.permute.xlu0 %1884
        %v1886 = vlaneseq
        %v1887 = vshrl.u32 %v1886, 7
        %v1888 = vsub.s32 5, %v1887
        %v1889 = vrot.slane %v1850, %v1888
        %1891 = vbcast.lane.b32.xlu0 %v1889, 256
        %v1892 = vpop.permute.xlu0 %1891
        %v1893 = vlaneseq
        %v1894 = vshrl.u32 %v1893, 7
        %v1895 = vsub.s32 6, %v1894
        %v1896 = vrot.slane %v1850, %v1895
        %1898 = vbcast.lane.b32.xlu0 %v1896, 256
        %v1899 = vpop.permute.xlu0 %1898
        %v1900 = vlaneseq
        %v1901 = vshrl.u32 %v1900, 7
        %v1902 = vsub.s32 7, %v1901
        %v1903 = vrot.slane %v1850, %v1902
        %1905 = vbcast.lane.b32.xlu0 %v1903, 256
        %v1906 = vpop.permute.xlu0 %1905
        %v1907 = vld [vmem:[#allocation21 + $0x8] sm:$0x1]
        %v1908 = vlaneseq
        %v1909 = vshrl.u32 %v1908, 7
        %v1910 = vsub.s32 0, %v1909
        %v1911 = vrot.slane %v1907, %v1910
        %v1912 = vmul.f32 %v1857, %v1911
        %v1913 = vmul.f32 %v1864, %v1911
        %v1914 = vmul.f32 %v1871, %v1911
        %v1915 = vmul.f32 %v1878, %v1911
        %v1916 = vmul.f32 %v1885, %v1911
        %v1917 = vmul.f32 %v1892, %v1911
        %v1918 = vmul.f32 %v1899, %v1911
        %v1919 = vmul.f32 %v1906, %v1911
        %v1920 = vadd.f32 %v1842, %v1912
        %v1921 = vadd.f32 %v1843, %v1913
        %v1922 = vadd.f32 %v1844, %v1914
        %v1923 = vadd.f32 %v1845, %v1915
        %v1924 = vadd.f32 %v1846, %v1916
        %v1925 = vadd.f32 %v1847, %v1917
        %v1926 = vadd.f32 %v1848, %v1918
        %v1927 = vadd.f32 %v1849, %v1919
        %v1928 = vsel %vm952, %v1920, 0.0
        %1929 = vadd.xlane.f32.xlu0 %v1928
        %v1930 = vpop.xlane.xlu0 %1929
        %v1931 = vsel %vm952, %v1921, 0.0
        %1932 = vadd.xlane.f32.xlu0 %v1931
        %v1933 = vpop.xlane.xlu0 %1932
        %v1934 = vsel %vm952, %v1922, 0.0
        %1935 = vadd.xlane.f32.xlu0 %v1934
        %v1936 = vpop.xlane.xlu0 %1935
        %v1937 = vsel %vm952, %v1923, 0.0
        %1938 = vadd.xlane.f32.xlu0 %v1937
        %v1939 = vpop.xlane.xlu0 %1938
        %v1940 = vsel %vm952, %v1924, 0.0
        %1941 = vadd.xlane.f32.xlu0 %v1940
        %v1942 = vpop.xlane.xlu0 %1941
        %v1943 = vsel %vm952, %v1925, 0.0
        %1944 = vadd.xlane.f32.xlu0 %v1943
        %v1945 = vpop.xlane.xlu0 %1944
        %v1946 = vsel %vm952, %v1926, 0.0
        %1947 = vadd.xlane.f32.xlu0 %v1946
        %v1948 = vpop.xlane.xlu0 %1947
        %v1949 = vsel %vm952, %v1927, 0.0
        %1950 = vadd.xlane.f32.xlu0 %v1949
        %v1951 = vpop.xlane.xlu0 %1950
        %v1952 = vrcp.pop 32.0
        %v1953 = vmul.f32 %v1930, %v1952
        %v1954 = vmul.f32 %v1933, %v1952
        %v1955 = vmul.f32 %v1936, %v1952
        %v1956 = vmul.f32 %v1939, %v1952
        %v1957 = vmul.f32 %v1942, %v1952
        %v1958 = vmul.f32 %v1945, %v1952
        %v1959 = vmul.f32 %v1948, %v1952
        %v1960 = vmul.f32 %v1951, %v1952
        %v1961 = vsub.f32 %v1920, %v1953
        %v1962 = vsub.f32 %v1921, %v1954
        %v1963 = vsub.f32 %v1922, %v1955
        %v1964 = vsub.f32 %v1923, %v1956
        %v1965 = vsub.f32 %v1924, %v1957
        %v1966 = vsub.f32 %v1925, %v1958
        %v1967 = vsub.f32 %v1926, %v1959
        %v1968 = vsub.f32 %v1927, %v1960
        %v1969 = vmul.f32 %v1961, %v1961
        %v1970 = vmul.f32 %v1962, %v1962
        %v1971 = vmul.f32 %v1963, %v1963
        %v1972 = vmul.f32 %v1964, %v1964
        %v1973 = vmul.f32 %v1965, %v1965
        %v1974 = vmul.f32 %v1966, %v1966
        %v1975 = vmul.f32 %v1967, %v1967
        %v1976 = vmul.f32 %v1968, %v1968
        %v1977 = vsel %vm952, %v1969, 0.0
        %1978 = vadd.xlane.f32.xlu0 %v1977
        %v1979 = vpop.xlane.xlu0 %1978
        %v1980 = vsel %vm952, %v1970, 0.0
        %1981 = vadd.xlane.f32.xlu0 %v1980
        %v1982 = vpop.xlane.xlu0 %1981
        %v1983 = vsel %vm952, %v1971, 0.0
        %1984 = vadd.xlane.f32.xlu0 %v1983
        %v1985 = vpop.xlane.xlu0 %1984
        %v1986 = vsel %vm952, %v1972, 0.0
        %1987 = vadd.xlane.f32.xlu0 %v1986
        %v1988 = vpop.xlane.xlu0 %1987
        %v1989 = vsel %vm952, %v1973, 0.0
        %1990 = vadd.xlane.f32.xlu0 %v1989
        %v1991 = vpop.xlane.xlu0 %1990
        %v1992 = vsel %vm952, %v1974, 0.0
        %1993 = vadd.xlane.f32.xlu0 %v1992
        %v1994 = vpop.xlane.xlu0 %1993
        %v1995 = vsel %vm952, %v1975, 0.0
        %1996 = vadd.xlane.f32.xlu0 %v1995
        %v1997 = vpop.xlane.xlu0 %1996
        %v1998 = vsel %vm952, %v1976, 0.0
        %1999 = vadd.xlane.f32.xlu0 %v1998
        %v2000 = vpop.xlane.xlu0 %1999
        %v2001 = vmul.f32 %v1979, %v1952
        %v2002 = vmul.f32 %v1982, %v1952
        %v2003 = vmul.f32 %v1985, %v1952
        %v2004 = vmul.f32 %v1988, %v1952
        %v2005 = vmul.f32 %v1991, %v1952
        %v2006 = vmul.f32 %v1994, %v1952
        %v2007 = vmul.f32 %v1997, %v1952
        %v2008 = vmul.f32 %v2000, %v1952
        %v2009 = vadd.f32 %v2001, 1e-06
        %v2010 = vadd.f32 %v2002, 1e-06
        %v2011 = vadd.f32 %v2003, 1e-06
        %v2012 = vadd.f32 %v2004, 1e-06
        %v2013 = vadd.f32 %v2005, 1e-06
        %v2014 = vadd.f32 %v2006, 1e-06
        %v2015 = vadd.f32 %v2007, 1e-06
        %v2016 = vadd.f32 %v2008, 1e-06
        %v2017 = vrsqrt.pop %v2009
        %v2018 = vrsqrt.pop %v2010
        %v2019 = vrsqrt.pop %v2011
        %v2020 = vrsqrt.pop %v2012
        %v2021 = vrsqrt.pop %v2013
        %v2022 = vrsqrt.pop %v2014
        %v2023 = vrsqrt.pop %v2015
        %v2024 = vrsqrt.pop %v2016
        %v2025 = vmul.f32 %v1961, %v2017
        %v2026 = vmul.f32 %v1962, %v2018
        %v2027 = vmul.f32 %v1963, %v2019
        %v2028 = vmul.f32 %v1964, %v2020
        %v2029 = vmul.f32 %v1965, %v2021
        %v2030 = vmul.f32 %v1966, %v2022
        %v2031 = vmul.f32 %v1967, %v2023
        %v2032 = vmul.f32 %v1968, %v2024
        %v2033 = vadd.f32 %v946, 1.0
        %v2035 = vlaneseq
        %v2036 = vshrl.u32 %v2035, 7
        %v2037 = vsub.s32 0, %v2036
        %v2038 = vrot.slane %v2033, %v2037
        %2039 = vrot.lane.b32.xlu0 %v2038, 96
        %v2040 = vpop.permute.xlu0 %2039
        %v2042 = vmul.f32 %v2025, %v2040
        %v2043 = vmul.f32 %v2026, %v2040
        %v2044 = vmul.f32 %v2027, %v2040
        %v2045 = vmul.f32 %v2028, %v2040
        %v2046 = vmul.f32 %v2029, %v2040
        %v2047 = vmul.f32 %v2030, %v2040
        %v2048 = vmul.f32 %v2031, %v2040
        %v2049 = vmul.f32 %v2032, %v2040
        %v2051 = vlaneseq
        %v2052 = vshrl.u32 %v2051, 7
        %v2053 = vsub.s32 0, %v2052
        %v2054 = vrot.slane %v946, %v2053
        %v2056 = vadd.f32 %v2042, %v2054
        %v2057 = vadd.f32 %v2043, %v2054
        %v2058 = vadd.f32 %v2044, %v2054
        %v2059 = vadd.f32 %v2045, %v2054
        %v2060 = vadd.f32 %v2046, %v2054
        %v2061 = vadd.f32 %v2047, %v2054
        %v2062 = vadd.f32 %v2048, %v2054
        %v2063 = vadd.f32 %v2049, %v2054
        %v2064 = vpack.c.bf16 %v2057, %v2056
        %v2065 = vpack.c.bf16 %v2059, %v2058
        %v2066 = vpack.c.bf16 %v2061, %v2060
        %v2067 = vpack.c.bf16 %v2063, %v2062
        %v2068 = vld [vmem:[#allocation24] sm:$0xf]
        %v2069 = vld [vmem:[#allocation24 + $0x4] sm:$0xf]
        %v2070 = vld [vmem:[#allocation24 + $0x8] sm:$0xf]
        %v2071 = vld [vmem:[#allocation24 + $0xc] sm:$0xf]
        %v2072 = vld [vmem:[#allocation25] sm:$0x1]
        %v2074 = vlaneseq
        %v2075 = vshrl.u32 %v2074, 7
        %v2076 = vsub.s32 0, %v2075
        %v2077 = vrot.slane %v2072, %v2076
        %v2083 = vunpack.c.l.b16 %v2068
        %v2084 = vunpack.c.l.b16 %v2069
        %v2085 = vunpack.c.l.b16 %v2070
        %v2086 = vunpack.c.l.b16 %v2071
        %v2087 = vpack.c.b16 %v2084, %v2083
        %v2088 = vpack.c.b16 %v2086, %v2085
        %v2092 = vsel %vm952, %v2064, 0
        %v2095 = vsel %vm952, %v2065, 0
        %v2098 = vsel %vm952, %v2066, 0
        %v2101 = vsel %vm952, %v2067, 0
        %2103 = vmatprep.subr.bf16.mxu0 0
        %2104 = vmatpush1.bf16.msra.mxu0 %v2087
        %2105 = vmatprep.subr.bf16.mxu0 0
        %2106 = vmatpush1.bf16.msra.mxu0 %v2088
        %2107 = vmatprep.subr.bf16.mxu0 0
        %2108 = vmatpush1.bf16.msra.mxu0 0
        %2109 = vmatprep.subr.bf16.mxu0 0
        %2110 = vmatpush1.bf16.msra.mxu0 0
        %2111 = vmatprep.subr.bf16.mxu0 0
        %2112 = vmatpush1.bf16.msra.mxu0 0
        %2113 = vmatprep.subr.bf16.mxu0 0
        %2114 = vmatpush1.bf16.msra.mxu0 0
        %2115 = vmatprep.subr.bf16.mxu0 0
        %2116 = vmatpush1.bf16.msra.mxu0 0
        %2117 = vmatprep.subr.bf16.mxu0 0
        %2118 = vmatpush1.bf16.msra.mxu0 0
        %2119 = vmatprep.subr.bf16.mxu0 0
        %2120 = vmatpush1.bf16.msra.mxu0 0
        %2121 = vmatprep.subr.bf16.mxu0 0
        %2122 = vmatpush1.bf16.msra.mxu0 0
        %2123 = vmatprep.subr.bf16.mxu0 0
        %2124 = vmatpush1.bf16.msra.mxu0 0
        %2125 = vmatprep.subr.bf16.mxu0 0
        %2126 = vmatpush1.bf16.msra.mxu0 0
        %2127 = vmatprep.subr.bf16.mxu0 0
        %2128 = vmatpush1.bf16.msra.mxu0 0
        %2129 = vmatprep.subr.bf16.mxu0 0
        %2130 = vmatpush1.bf16.msra.mxu0 0
        %2131 = vmatprep.subr.bf16.mxu0 0
        %2132 = vmatpush1.bf16.msra.mxu0 0
        %2133 = vmatprep.subr.bf16.mxu0 0
        %2134 = vmatpush1.bf16.msra.mxu0 0
        %2135 = vmatprep.mubr.bf16.mxu0 0
        %2136 = vmatmul.mubr.bf16.gmra.mrb[0].mxu0 %v2092
        %v2137 = vpop.f32.mrb[0].mxu0
        %v2138 = vadd.f32 %v2077, %v2137
        %v2139 = vpop.f32.mrb[0].mxu0
        %v2140 = vpop.f32.mrb[0].mxu0
        %v2141 = vadd.f32 %v2077, %v2140
        %v2142 = vpop.f32.mrb[0].mxu0
        %2143 = vmatprep.mubr.bf16.mxu0 0
        %2144 = vmatmul.mubr.bf16.gmra.mrb[0].mxu0 %v2095
        %v2145 = vpop.f32.mrb[0].mxu0
        %v2146 = vadd.f32 %v2077, %v2145
        %v2147 = vpop.f32.mrb[0].mxu0
        %v2148 = vpop.f32.mrb[0].mxu0
        %v2149 = vadd.f32 %v2077, %v2148
        %v2150 = vpop.f32.mrb[0].mxu0
        %2151 = vmatprep.mubr.bf16.mxu0 0
        %2152 = vmatmul.mubr.bf16.gmra.mrb[0].mxu0 %v2098
        %v2153 = vpop.f32.mrb[0].mxu0
        %v2154 = vadd.f32 %v2077, %v2153
        %v2155 = vpop.f32.mrb[0].mxu0
        %v2156 = vpop.f32.mrb[0].mxu0
        %v2157 = vadd.f32 %v2077, %v2156
        %v2158 = vpop.f32.mrb[0].mxu0
        %2159 = vmatprep.mubr.bf16.mxu0 0
        %2160 = vmatmul.mubr.bf16.gmra.mrb[0].mxu0 %v2101
        %v2161 = vpop.f32.mrb[0].mxu0
        %v2162 = vadd.f32 %v2077, %v2161
        %v2163 = vpop.f32.mrb[0].mxu0
        %v2164 = vpop.f32.mrb[0].mxu0
        %v2165 = vadd.f32 %v2077, %v2164
        %v2166 = vpop.f32.mrb[0].mxu0
        %2167 = vdwg.mxu0
        %v2168 = vxor.u32 %v2138, 2147483648
        %v2169 = vxor.u32 %v2141, 2147483648
        %v2170 = vxor.u32 %v2146, 2147483648
        %v2171 = vxor.u32 %v2149, 2147483648
        %v2172 = vxor.u32 %v2154, 2147483648
        %v2173 = vxor.u32 %v2157, 2147483648
        %v2174 = vxor.u32 %v2162, 2147483648
        %v2175 = vxor.u32 %v2165, 2147483648
        %v2176 = vmul.f32 %v2168, 1.442695
        %v2177 = vpow.pop %v2176
        %v2178 = vmul.f32 %v2169, 1.442695
        %v2179 = vpow.pop %v2178
        %v2180 = vmul.f32 %v2170, 1.442695
        %v2181 = vpow.pop %v2180
        %v2182 = vmul.f32 %v2171, 1.442695
        %v2183 = vpow.pop %v2182
        %v2184 = vmul.f32 %v2172, 1.442695
        %v2185 = vpow.pop %v2184
        %v2186 = vmul.f32 %v2173, 1.442695
        %v2187 = vpow.pop %v2186
        %v2188 = vmul.f32 %v2174, 1.442695
        %v2189 = vpow.pop %v2188
        %v2190 = vmul.f32 %v2175, 1.442695
        %v2191 = vpow.pop %v2190
        %v2192 = vadd.f32 %v2177, 1.0
        %v2193 = vadd.f32 %v2179, 1.0
        %v2194 = vadd.f32 %v2181, 1.0
        %v2195 = vadd.f32 %v2183, 1.0
        %v2196 = vadd.f32 %v2185, 1.0
        %v2197 = vadd.f32 %v2187, 1.0
        %v2198 = vadd.f32 %v2189, 1.0
        %v2199 = vadd.f32 %v2191, 1.0
        %v2200 = vrcp.pop %v2192
        %v2201 = vmul.f32 1.0, %v2200
        %v2202 = vrcp.pop %v2193
        %v2203 = vmul.f32 1.0, %v2202
        %v2204 = vrcp.pop %v2194
        %v2205 = vmul.f32 1.0, %v2204
        %v2206 = vrcp.pop %v2195
        %v2207 = vmul.f32 1.0, %v2206
        %v2208 = vrcp.pop %v2196
        %v2209 = vmul.f32 1.0, %v2208
        %v2210 = vrcp.pop %v2197
        %v2211 = vmul.f32 1.0, %v2210
        %v2212 = vrcp.pop %v2198
        %v2213 = vmul.f32 1.0, %v2212
        %v2214 = vrcp.pop %v2199
        %v2215 = vmul.f32 1.0, %v2214
        %v2216 = vmul.f32 %v2138, %v2201
        %v2217 = vmul.f32 %v2141, %v2203
        %v2218 = vmul.f32 %v2146, %v2205
        %v2219 = vmul.f32 %v2149, %v2207
        %v2220 = vmul.f32 %v2154, %v2209
        %v2221 = vmul.f32 %v2157, %v2211
        %v2222 = vmul.f32 %v2162, %v2213
        %v2223 = vmul.f32 %v2165, %v2215
        %v2224 = vpack.c.bf16 %v2217, %v2216
        %v2225 = vpack.c.bf16 %v2219, %v2218
        %v2226 = vpack.c.bf16 %v2221, %v2220
        %v2227 = vpack.c.bf16 %v2223, %v2222
        %v2228 = vld [vmem:[#allocation27] sm:$0xf]
        %v2229 = vld [vmem:[#allocation27 + $0x4] sm:$0xf]
        %v2230 = vld [vmem:[#allocation27 + $0x8] sm:$0xf]
        %v2231 = vld [vmem:[#allocation27 + $0xc] sm:$0xf]
        %v2236 = vunpack.c.l.b16 %v2228
        %v2237 = vunpack.c.l.b16 %v2229
        %v2238 = vunpack.c.l.b16 %v2230
        %v2239 = vunpack.c.l.b16 %v2231
        %v2240 = vpack.c.b16 %v2237, %v2236
        %v2241 = vpack.c.b16 %v2239, %v2238
        %v2245 = vsel %vm952, %v2224, 0
        %v2248 = vsel %vm952, %v2225, 0
        %v2251 = vsel %vm952, %v2226, 0
        %v2254 = vsel %vm952, %v2227, 0
        %2256 = vmatprep.subr.bf16.mxu0 0
        %2257 = vmatpush1.bf16.msra.mxu0 %v2240
        %2258 = vmatprep.subr.bf16.mxu0 0
        %2259 = vmatpush1.bf16.msra.mxu0 %v2241
        %2260 = vmatprep.subr.bf16.mxu0 0
        %2261 = vmatpush1.bf16.msra.mxu0 0
        %2262 = vmatprep.subr.bf16.mxu0 0
        %2263 = vmatpush1.bf16.msra.mxu0 0
        %2264 = vmatprep.subr.bf16.mxu0 0
        %2265 = vmatpush1.bf16.msra.mxu0 0
        %2266 = vmatprep.subr.bf16.mxu0 0
        %2267 = vmatpush1.bf16.msra.mxu0 0
        %2268 = vmatprep.subr.bf16.mxu0 0
        %2269 = vmatpush1.bf16.msra.mxu0 0
        %2270 = vmatprep.subr.bf16.mxu0 0
        %2271 = vmatpush1.bf16.msra.mxu0 0
        %2272 = vmatprep.subr.bf16.mxu0 0
        %2273 = vmatpush1.bf16.msra.mxu0 0
        %2274 = vmatprep.subr.bf16.mxu0 0
        %2275 = vmatpush1.bf16.msra.mxu0 0
        %2276 = vmatprep.subr.bf16.mxu0 0
        %2277 = vmatpush1.bf16.msra.mxu0 0
        %2278 = vmatprep.subr.bf16.mxu0 0
        %2279 = vmatpush1.bf16.msra.mxu0 0
        %2280 = vmatprep.subr.bf16.mxu0 0
        %2281 = vmatpush1.bf16.msra.mxu0 0
        %2282 = vmatprep.subr.bf16.mxu0 0
        %2283 = vmatpush1.bf16.msra.mxu0 0
        %2284 = vmatprep.subr.bf16.mxu0 0
        %2285 = vmatpush1.bf16.msra.mxu0 0
        %2286 = vmatprep.subr.bf16.mxu0 0
        %2287 = vmatpush1.bf16.msra.mxu0 0
        %2288 = vmatprep.mubr.bf16.mxu0 0
        %2289 = vmatmul.mubr.bf16.gmra.mrb[0].mxu0 %v2245
        %v2290 = vpop.f32.mrb[0].mxu0
        %v2291 = vadd.f32 0.0, %v2290
        %v2292 = vpop.f32.mrb[0].mxu0
        %v2293 = vpop.f32.mrb[0].mxu0
        %v2294 = vadd.f32 0.0, %v2293
        %v2295 = vpop.f32.mrb[0].mxu0
        %2296 = vmatprep.mubr.bf16.mxu0 0
        %2297 = vmatmul.mubr.bf16.gmra.mrb[0].mxu0 %v2248
        %v2298 = vpop.f32.mrb[0].mxu0
        %v2299 = vadd.f32 0.0, %v2298
        %v2300 = vpop.f32.mrb[0].mxu0
        %v2301 = vpop.f32.mrb[0].mxu0
        %v2302 = vadd.f32 0.0, %v2301
        %v2303 = vpop.f32.mrb[0].mxu0
        %2304 = vmatprep.mubr.bf16.mxu0 0
        %2305 = vmatmul.mubr.bf16.gmra.mrb[0].mxu0 %v2251
        %v2306 = vpop.f32.mrb[0].mxu0
        %v2307 = vadd.f32 0.0, %v2306
        %v2308 = vpop.f32.mrb[0].mxu0
        %v2309 = vpop.f32.mrb[0].mxu0
        %v2310 = vadd.f32 0.0, %v2309
        %v2311 = vpop.f32.mrb[0].mxu0
        %2312 = vmatprep.mubr.bf16.mxu0 0
        %2313 = vmatmul.mubr.bf16.gmra.mrb[0].mxu0 %v2254
        %v2314 = vpop.f32.mrb[0].mxu0
        %v2315 = vadd.f32 0.0, %v2314
        %v2316 = vpop.f32.mrb[0].mxu0
        %v2317 = vpop.f32.mrb[0].mxu0
        %v2318 = vadd.f32 0.0, %v2317
        %v2319 = vpop.f32.mrb[0].mxu0
        %2320 = vdwg.mxu0
        %v2321 = vld [vmem:[%s828] sm:$0xf]
        %v2322 = vld [vmem:[%s828 + $0x4] sm:$0xf]
        %v2323 = vtanh.pop %v2291
        %v2324 = vtanh.pop %v2294
        %v2325 = vtanh.pop %v2299
        %v2326 = vtanh.pop %v2302
        %v2327 = vtanh.pop %v2307
        %v2328 = vtanh.pop %v2310
        %v2329 = vtanh.pop %v2315
        %v2330 = vtanh.pop %v2318
        %v2331 = vunpack.c.l.bf16 %v2321
        %v2333 = vlaneseq
        %v2334 = vshrl.u32 %v2333, 7
        %v2335 = vsub.s32 0, %v2334
        %v2336 = vrot.slane %v2331, %v2335
        %2338 = vbcast.lane.b32.xlu0 %v2336, 256
        %v2339 = vpop.permute.xlu0 %2338
        %v2340 = vlaneseq
        %v2341 = vshrl.u32 %v2340, 7
        %v2342 = vsub.s32 1, %v2341
        %v2343 = vrot.slane %v2331, %v2342
        %2345 = vbcast.lane.b32.xlu0 %v2343, 256
        %v2346 = vpop.permute.xlu0 %2345
        %v2347 = vlaneseq
        %v2348 = vshrl.u32 %v2347, 7
        %v2349 = vsub.s32 2, %v2348
        %v2350 = vrot.slane %v2331, %v2349
        %2352 = vbcast.lane.b32.xlu0 %v2350, 256
        %v2353 = vpop.permute.xlu0 %2352
        %v2354 = vlaneseq
        %v2355 = vshrl.u32 %v2354, 7
        %v2356 = vsub.s32 3, %v2355
        %v2357 = vrot.slane %v2331, %v2356
        %2359 = vbcast.lane.b32.xlu0 %v2357, 256
        %v2360 = vpop.permute.xlu0 %2359
        %v2361 = vlaneseq
        %v2362 = vshrl.u32 %v2361, 7
        %v2363 = vsub.s32 4, %v2362
        %v2364 = vrot.slane %v2331, %v2363
        %2366 = vbcast.lane.b32.xlu0 %v2364, 256
        %v2367 = vpop.permute.xlu0 %2366
        %v2368 = vlaneseq
        %v2369 = vshrl.u32 %v2368, 7
        %v2370 = vsub.s32 5, %v2369
        %v2371 = vrot.slane %v2331, %v2370
        %2373 = vbcast.lane.b32.xlu0 %v2371, 256
        %v2374 = vpop.permute.xlu0 %2373
        %v2375 = vlaneseq
        %v2376 = vshrl.u32 %v2375, 7
        %v2377 = vsub.s32 6, %v2376
        %v2378 = vrot.slane %v2331, %v2377
        %2380 = vbcast.lane.b32.xlu0 %v2378, 256
        %v2381 = vpop.permute.xlu0 %2380
        %v2382 = vlaneseq
        %v2383 = vshrl.u32 %v2382, 7
        %v2384 = vsub.s32 7, %v2383
        %v2385 = vrot.slane %v2331, %v2384
        %2387 = vbcast.lane.b32.xlu0 %v2385, 256
        %v2388 = vpop.permute.xlu0 %2387
        %v2397 = vmul.f32 %v2323, %v2339
        %v2398 = vmul.f32 %v2324, %v2346
        %v2399 = vmul.f32 %v2325, %v2353
        %v2400 = vmul.f32 %v2326, %v2360
        %v2401 = vmul.f32 %v2327, %v2367
        %v2402 = vmul.f32 %v2328, %v2374
        %v2403 = vmul.f32 %v2329, %v2381
        %v2404 = vmul.f32 %v2330, %v2388
        %2413 = vrot.lane.b32.xlu0 %v2397, 127
        %v2414 = vpop.permute.xlu0 %2413
        %2415 = vrot.lane.b32.xlu0 %v2398, 127
        %v2416 = vpop.permute.xlu0 %2415
        %2417 = vrot.lane.b32.xlu0 %v2399, 127
        %v2418 = vpop.permute.xlu0 %2417
        %2419 = vrot.lane.b32.xlu0 %v2400, 127
        %v2420 = vpop.permute.xlu0 %2419
        %2421 = vrot.lane.b32.xlu0 %v2401, 127
        %v2422 = vpop.permute.xlu0 %2421
        %2423 = vrot.lane.b32.xlu0 %v2402, 127
        %v2424 = vpop.permute.xlu0 %2423
        %2425 = vrot.lane.b32.xlu0 %v2403, 127
        %v2426 = vpop.permute.xlu0 %2425
        %2427 = vrot.lane.b32.xlu0 %v2404, 127
        %v2428 = vpop.permute.xlu0 %2427
        %v2437 = vadd.f32 %v2323, %v2414
        %v2438 = vadd.f32 %v2324, %v2416
        %v2439 = vadd.f32 %v2325, %v2418
        %v2440 = vadd.f32 %v2326, %v2420
        %v2441 = vadd.f32 %v2327, %v2422
        %v2442 = vadd.f32 %v2328, %v2424
        %v2443 = vadd.f32 %v2329, %v2426
        %v2444 = vadd.f32 %v2330, %v2428
        %v2445 = vunpack.c.l.bf16 %v2322
        %v2447 = vlaneseq
        %v2448 = vshrl.u32 %v2447, 7
        %v2449 = vsub.s32 0, %v2448
        %v2450 = vrot.slane %v2445, %v2449
        %2452 = vbcast.lane.b32.xlu0 %v2450, 256
        %v2453 = vpop.permute.xlu0 %2452
        %v2454 = vlaneseq
        %v2455 = vshrl.u32 %v2454, 7
        %v2456 = vsub.s32 1, %v2455
        %v2457 = vrot.slane %v2445, %v2456
        %2459 = vbcast.lane.b32.xlu0 %v2457, 256
        %v2460 = vpop.permute.xlu0 %2459
        %v2461 = vlaneseq
        %v2462 = vshrl.u32 %v2461, 7
        %v2463 = vsub.s32 2, %v2462
        %v2464 = vrot.slane %v2445, %v2463
        %2466 = vbcast.lane.b32.xlu0 %v2464, 256
        %v2467 = vpop.permute.xlu0 %2466
        %v2468 = vlaneseq
        %v2469 = vshrl.u32 %v2468, 7
        %v2470 = vsub.s32 3, %v2469
        %v2471 = vrot.slane %v2445, %v2470
        %2473 = vbcast.lane.b32.xlu0 %v2471, 256
        %v2474 = vpop.permute.xlu0 %2473
        %v2475 = vlaneseq
        %v2476 = vshrl.u32 %v2475, 7
        %v2477 = vsub.s32 4, %v2476
        %v2478 = vrot.slane %v2445, %v2477
        %2480 = vbcast.lane.b32.xlu0 %v2478, 256
        %v2481 = vpop.permute.xlu0 %2480
        %v2482 = vlaneseq
        %v2483 = vshrl.u32 %v2482, 7
        %v2484 = vsub.s32 5, %v2483
        %v2485 = vrot.slane %v2445, %v2484
        %2487 = vbcast.lane.b32.xlu0 %v2485, 256
        %v2488 = vpop.permute.xlu0 %2487
        %v2489 = vlaneseq
        %v2490 = vshrl.u32 %v2489, 7
        %v2491 = vsub.s32 6, %v2490
        %v2492 = vrot.slane %v2445, %v2491
        %2494 = vbcast.lane.b32.xlu0 %v2492, 256
        %v2495 = vpop.permute.xlu0 %2494
        %v2496 = vlaneseq
        %v2497 = vshrl.u32 %v2496, 7
        %v2498 = vsub.s32 7, %v2497
        %v2499 = vrot.slane %v2445, %v2498
        %2501 = vbcast.lane.b32.xlu0 %v2499, 256
        %v2502 = vpop.permute.xlu0 %2501
        %v2511 = vmul.f32 %v2323, %v2453
        %v2512 = vmul.f32 %v2324, %v2460
        %v2513 = vmul.f32 %v2325, %v2467
        %v2514 = vmul.f32 %v2326, %v2474
        %v2515 = vmul.f32 %v2327, %v2481
        %v2516 = vmul.f32 %v2328, %v2488
        %v2517 = vmul.f32 %v2329, %v2495
        %v2518 = vmul.f32 %v2330, %v2502
        %2527 = vrot.lane.b32.xlu0 %v2511, 126
        %v2528 = vpop.permute.xlu0 %2527
        %2529 = vrot.lane.b32.xlu0 %v2512, 126
        %v2530 = vpop.permute.xlu0 %2529
        %2531 = vrot.lane.b32.xlu0 %v2513, 126
        %v2532 = vpop.permute.xlu0 %2531
        %2533 = vrot.lane.b32.xlu0 %v2514, 126
        %v2534 = vpop.permute.xlu0 %2533
        %2535 = vrot.lane.b32.xlu0 %v2515, 126
        %v2536 = vpop.permute.xlu0 %2535
        %2537 = vrot.lane.b32.xlu0 %v2516, 126
        %v2538 = vpop.permute.xlu0 %2537
        %2539 = vrot.lane.b32.xlu0 %v2517, 126
        %v2540 = vpop.permute.xlu0 %2539
        %2541 = vrot.lane.b32.xlu0 %v2518, 126
        %v2542 = vpop.permute.xlu0 %2541
        %v2551 = vadd.f32 %v2437, %v2528
        %v2552 = vadd.f32 %v2438, %v2530
        %v2553 = vadd.f32 %v2439, %v2532
        %v2554 = vadd.f32 %v2440, %v2534
        %v2555 = vadd.f32 %v2441, %v2536
        %v2556 = vadd.f32 %v2442, %v2538
        %v2557 = vadd.f32 %v2443, %v2540
        %v2558 = vadd.f32 %v2444, %v2542
        %v2559 = vmul.f32 %v2551, 0.33333334
        %v2560 = vmul.f32 %v2552, 0.33333334
        %v2561 = vmul.f32 %v2553, 0.33333334
        %v2562 = vmul.f32 %v2554, 0.33333334
        %v2563 = vmul.f32 %v2555, 0.33333334
        %v2564 = vmul.f32 %v2556, 0.33333334
        %v2565 = vmul.f32 %v2557, 0.33333334
        %v2566 = vmul.f32 %v2558, 0.33333334
        %v2567 = vld [vmem:[%s792] sm:$0x7]
        %v2568 = vld [vmem:[%s801] sm:$0x7]
        %v2569 = vlaneseq
        %v2570 = vshrl.u32 %v2569, 7
        %v2571 = vsub.s32 0, %v2570
        %v2572 = vrot.slane %v2567, %v2571
        %2574 = vbcast.lane.b32.xlu0 %v2572, 256
        %v2575 = vpop.permute.xlu0 %2574
        %v2576 = vlaneseq
        %v2577 = vshrl.u32 %v2576, 7
        %v2578 = vsub.s32 1, %v2577
        %v2579 = vrot.slane %v2567, %v2578
        %2581 = vbcast.lane.b32.xlu0 %v2579, 256
        %v2582 = vpop.permute.xlu0 %2581
        %v2583 = vlaneseq
        %v2584 = vshrl.u32 %v2583, 7
        %v2585 = vsub.s32 2, %v2584
        %v2586 = vrot.slane %v2567, %v2585
        %2588 = vbcast.lane.b32.xlu0 %v2586, 256
        %v2589 = vpop.permute.xlu0 %2588
        %v2592 = vunpack.c.l.s4 1966171168
        %v2593 = vunpack.c.0.s8 %v2592
        %v2594 = vlaneseq
        %v2595 = vshrl.u32 %v2594, 7
        %v2596 = vsub.s32 %v2593, %v2595
        %v2597 = vrot.slane %v2568, %v2596
        %v2598 = vcombine.high %v2597, %v2597
        %v2600 = vunpack.c.l.s4 1966171168
        %v2601 = vunpack.c.0.s8 %v2600
        %v2602 = vlaneseq
        %v2603 = vshrl.u32 %v2602, 7
        %v2604 = vsub.s32 %v2601, %v2603
        %v2605 = vrot.slane %v2597, %v2604
        %v2607 = vunpack.c.l.s4 1966171168
        %v2608 = vunpack.c.0.s8 %v2607
        %v2609 = vlaneseq
        %v2610 = vshrl.u32 %v2609, 7
        %v2611 = vsub.s32 %v2608, %v2610
        %v2612 = vrot.slane %v2598, %v2611
        %v2613 = vcombine.high %v2605, %v2605
        %v2614 = vlaneseq
        %v2615 = vshrl.u32 %v2614, 7
        %v2616 = vsub.s32 0, %v2615
        %v2617 = vrot.slane %v2605, %v2616
        %v2618 = vlaneseq
        %v2619 = vshrl.u32 %v2618, 7
        %v2620 = vsub.s32 0, %v2619
        %v2621 = vrot.slane %v2612, %v2620
        %v2622 = vlaneseq
        %v2623 = vshrl.u32 %v2622, 7
        %v2624 = vsub.s32 0, %v2623
        %v2625 = vrot.slane %v2613, %v2624
        %v2629 = vsub.f32 %v2575, %v2617
        %v2630 = vsub.f32 %v2582, %v2621
        %v2631 = vsub.f32 %v2589, %v2625
        %v2632 = vmul.f32 %v2629, %v2629
        %v2633 = vmul.f32 %v2630, %v2630
        %v2634 = vmul.f32 %v2631, %v2631
        %vm2635 = vcmask 64512
        %v2636 = vsel %vm2635, %v2632, 0.0
        %v2637 = vsel %vm2635, %v2633, 0.0
        %v2638 = vadd.f32 %v2636, %v2637
        %v2639 = vsel %vm2635, %v2634, 0.0
        %v2640 = vadd.f32 %v2638, %v2639
        %v2641 = vrsqrt.pop %v2640
        %v2642 = vmul.f32 %v2640, %v2641
        %vm2643 = vcmp.eq.f32.partialorder %v2640, inf
        %v2644 = vsel %vm2643, %v2640, %v2642
        %vm2645 = vcmp.eq.f32.partialorder %v2640, 0.0
        %v2646 = vand.u32 %v2640, 2147483648
        %v2647 = vsel %vm2645, %v2646, %v2644
        %v2648 = vld [vmem:[%s819] sm:$0xf]
        %v2649 = vunpack.c.l.bf16 %v2648
        %2658 = vset.pattern.permute.xlu0 0
        %2659 = vperm.xlu0 %2658, %v2559
        %v2660 = vpop.permute.xlu0 %2659
        %2661 = vset.pattern.permute.xlu0 0
        %2662 = vperm.xlu0 %2661, %v2560
        %v2663 = vpop.permute.xlu0 %2662
        %2664 = vset.pattern.permute.xlu0 0
        %2665 = vperm.xlu0 %2664, %v2561
        %v2666 = vpop.permute.xlu0 %2665
        %2667 = vset.pattern.permute.xlu0 0
        %2668 = vperm.xlu0 %2667, %v2562
        %v2669 = vpop.permute.xlu0 %2668
        %2670 = vset.pattern.permute.xlu0 0
        %2671 = vperm.xlu0 %2670, %v2563
        %v2672 = vpop.permute.xlu0 %2671
        %2673 = vset.pattern.permute.xlu0 0
        %2674 = vperm.xlu0 %2673, %v2564
        %v2675 = vpop.permute.xlu0 %2674
        %2676 = vset.pattern.permute.xlu0 0
        %2677 = vperm.xlu0 %2676, %v2565
        %v2678 = vpop.permute.xlu0 %2677
        %2679 = vset.pattern.permute.xlu0 0
        %2680 = vperm.xlu0 %2679, %v2566
        %v2681 = vpop.permute.xlu0 %2680
        %v2682 = vlaneseq
        %v2683 = vand.u32 %v2682, 127
        %v2684 = vlaneseq
        %v2685 = vshrl.u32 %v2684, 7
        %v2686 = vsub.s32 %v2683, %v2685
        %v2687 = vrot.slane %v2660, %v2686
        %v2688 = vlaneseq
        %v2689 = vshrl.u32 %v2688, 7
        %v2690 = vsub.s32 %v2683, %v2689
        %v2691 = vrot.slane %v2663, %v2690
        %v2692 = vlaneseq
        %v2693 = vshrl.u32 %v2692, 7
        %v2694 = vsub.s32 %v2683, %v2693
        %v2695 = vrot.slane %v2666, %v2694
        %v2696 = vlaneseq
        %v2697 = vshrl.u32 %v2696, 7
        %v2698 = vsub.s32 %v2683, %v2697
        %v2699 = vrot.slane %v2669, %v2698
        %v2700 = vlaneseq
        %v2701 = vshrl.u32 %v2700, 7
        %v2702 = vsub.s32 %v2683, %v2701
        %v2703 = vrot.slane %v2672, %v2702
        %v2704 = vlaneseq
        %v2705 = vshrl.u32 %v2704, 7
        %v2706 = vsub.s32 %v2683, %v2705
        %v2707 = vrot.slane %v2675, %v2706
        %v2708 = vlaneseq
        %v2709 = vshrl.u32 %v2708, 7
        %v2710 = vsub.s32 %v2683, %v2709
        %v2711 = vrot.slane %v2678, %v2710
        %v2712 = vlaneseq
        %v2713 = vshrl.u32 %v2712, 7
        %v2714 = vsub.s32 %v2683, %v2713
        %v2715 = vrot.slane %v2681, %v2714
        %vm2716 = vcmask 1041409
        %v2717 = vsel %vm2716, %v2691, %v2687
        %vm2718 = vcmask 1042434
        %v2719 = vsel %vm2718, %v2695, %v2717
        %vm2720 = vcmask 1043459
        %v2721 = vsel %vm2720, %v2699, %v2719
        %vm2722 = vcmask 1044484
        %v2723 = vsel %vm2722, %v2703, %v2721
        %vm2724 = vcmask 1045509
        %v2725 = vsel %vm2724, %v2707, %v2723
        %vm2726 = vcmask 1046534
        %v2727 = vsel %vm2726, %v2711, %v2725
        %vm2728 = vcmask 1047559
        %v2729 = vsel %vm2728, %v2715, %v2727
        %v2731 = vmul.f32 %v2649, %v2729
        %s2732 = sld [smem:[#allocation3]]
        %v2733 = vmax.f32 %v2647, 1e-08
        %v2734 = vstv %s2732
        %v2735 = vrcp.pop %v2733
        %v2736 = vmul.f32 %v2734, %v2735
        %v2737 = vmul.f32 %v2731, %v2736
        %v2738 = vld [vmem:[#allocation2] sm:$0x7]
        %v2739 = vmul.f32 %v2629, %v2737
        %v2740 = vmul.f32 %v2630, %v2737
        %v2741 = vmul.f32 %v2631, %v2737
        %v2742 = vsel %vm2635, %v2739, 0.0
        %2743 = vadd.xlane.f32.xlu0 %v2742
        %v2744 = vpop.xlane.xlu0 %2743
        %v2745 = vsel %vm2635, %v2740, 0.0
        %2746 = vadd.xlane.f32.xlu0 %v2745
        %v2747 = vpop.xlane.xlu0 %2746
        %v2748 = vsel %vm2635, %v2741, 0.0
        %2749 = vadd.xlane.f32.xlu0 %v2748
        %v2750 = vpop.xlane.xlu0 %2749
        %v2754 = vlaneseq
        %v2755 = vshrl.u32 %v2754, 7
        %v2756 = vsub.s32 %v2683, %v2755
        %v2757 = vrot.slane %v2744, %v2756
        %v2758 = vlaneseq
        %v2759 = vshrl.u32 %v2758, 7
        %v2760 = vsub.s32 %v2683, %v2759
        %v2761 = vrot.slane %v2747, %v2760
        %v2762 = vlaneseq
        %v2763 = vshrl.u32 %v2762, 7
        %v2764 = vsub.s32 %v2683, %v2763
        %v2765 = vrot.slane %v2750, %v2764
        %v2766 = vsel %vm2716, %v2761, %v2757
        %v2767 = vsel %vm2718, %v2765, %v2766
        %v2769 = vadd.f32 %v2738, %v2767
        %vm2770 = vcmask 59392
        %2771 = vst.msk [vmem:[#allocation2] sm:$0x7] %vm2770, %v2769
        // Predicated region
        $region149: #{multi_cond_equi_update.1} parent=83 // pred_check
          %p2772 = pneg %p940
        $region150: #{multi_cond_equi_update.1} parent=83 // pred_check_branch
          %2774 = sbr.rel (%p2772) target = $region152
        $region151: #{multi_cond_equi_update.1} parent=83 // pred_region
          %v2775 = vld [vmem:[#allocation2] sm:$0x7]
          %v2776 = vadd.f32 %v2567, %v2775
          %2777 = vst.msk [vmem:[%s938] sm:$0x7] %vm2770, %v2776
        $region152: #{multi_cond_equi_update.1} parent=83 // pred_fallthru
          _
        %s2778 = sand.u32 %s474, 1
        %s2779 = scalar_lea.sflag [#allocation6], %s2778
        %s2780 = sand.u32 %s474, 1
        %s2781 = smul.addr %s2780, 4
        %s2782 = scalar_lea.vmem [#allocation28], %s2781
        // Predicated region
        $region153: #{multi_cond_equi_update.1} parent=83 // pred_check
          %p2783 = pneg %p484
        $region154: #{multi_cond_equi_update.1} parent=83 // pred_check_branch
          %2785 = sbr.rel (%p2783) target = $region156
        $region155: #{multi_cond_equi_update.1} parent=83 // pred_region
          %s2787 = ssub.s32 64, 64
          %2788 = vsyncadd %s2779, %s2787
          %s2789 = sadd.s32 %s55, %s54
          %s2790 = smul.addr %s2789, 64
          %s2791 = scalar_lea.hbm %s16, %s2790
          %s2793 = sshll.u32 %s2782, 4
          %s2794 = int_to_ptr.vmem [resolvable:$true] %s2793
          %2796 = dma.vmem_to_hbm [thread:$0]  %s2794, 64, %s2791, %s2779
        $region156: #{multi_cond_equi_update.1} parent=83 // pred_fallthru
          _
      $region84: #{multi_cond_equi_update.1} parent=5 // pred_fallthru
        _
      %p2797 = scmp.le.s32.totalorder 2, %s44
      // Predicated region
      $region157: #{multi_cond_equi_update.1} parent=5 // pred_check
        %p2798 = pneg %p2797
      $region158: #{multi_cond_equi_update.1} parent=5 // pred_check_branch
        %2800 = sbr.rel (%p2798) target = $region160
      $region159: #{multi_cond_equi_update.1} parent=5 // pred_region
        %s2801 = ssub.s32 %s44, 2
        // Predicated region
        $region161: #{multi_cond_equi_update.1} parent=159 // pred_check
          %p2802 = pneg %p490
        $region162: #{multi_cond_equi_update.1} parent=159 // pred_check_branch
          %2804 = sbr.rel (%p2802) target = $region164
        $region163: #{multi_cond_equi_update.1} parent=159 // pred_region
          %s2805 = sand.u32 %s475, 1
          %s2806 = scalar_lea.sflag [#allocation6], %s2805
          %s2807 = sand.u32 %s475, 1
          %s2808 = smul.addr %s2807, 4
          %s2809 = scalar_lea.vmem [#allocation28], %s2808
          %2810 = dma.done %s2806, 64
        $region164: #{multi_cond_equi_update.1} parent=159 // pred_fallthru
          _
      $region160: #{multi_cond_equi_update.1} parent=5 // pred_fallthru
        _
    $region6: #{multi_cond_equi_update.1} parent=1 // loop_footer
      %s48 = sadd.s32 1, %s44
    $region7: #{multi_cond_equi_update.1} parent=1 // loop_footer_branch
      %43 = sbr.rel target = $region3
    $region8: #{multi_cond_equi_update.1} parent=1 // loop_exit
      _
    %2811 = vsyncpa [#allocation5], 1
    %s2812 = scalar_lea.sflag [#allocation5], 1
    %2813 = vsyncpa %s2812, 1
    %2814 = vsyncpa [#allocation8], 1
    %s2815 = scalar_lea.sflag [#allocation8], 1
    %2816 = vsyncpa %s2815, 1
    %2817 = vsyncpa [#allocation11], 1
    %s2818 = scalar_lea.sflag [#allocation11], 1
    %2819 = vsyncpa %s2818, 1
    %2820 = vsyncpa [#allocation14], 1
    %s2821 = scalar_lea.sflag [#allocation14], 1
    %2822 = vsyncpa %s2821, 1
    %2823 = vsyncpa [#allocation17], 1
    %s2824 = scalar_lea.sflag [#allocation17], 1
    %2825 = vsyncpa %s2824, 1
    %2826 = vsyncpa [#allocation20], 1
    %2827 = vsyncpa [#allocation23], 1
    %2828 = vsyncpa [#allocation26], 1
    %2829 = vsyncpa [#allocation6], 1
    %s2830 = scalar_lea.sflag [#allocation6], 1
    %2831 = vsyncpa %s2830, 1

</llo_original>
